<compile_context>
chip_gen: v7x
topology: tpu7x:2x2x1
jax: 0.10.0
libtpu: 0.0.40
codegen_flags: <defaults>
</compile_context>

<pallas_src>
import functools

import jax
import jax.numpy as jnp
from jax.experimental import pallas as pl
from jax.experimental.pallas import tpu as pltpu


# ---------------------------------------------------------------------------
# Kernel
# ---------------------------------------------------------------------------
def _dist_sim_kernel(vd_ref, ed_ref, eye_ref, w1_ref, w2_ref, p_ref, out_ref, *,
                     distance_metric, n, h1, h2, matmul_dtype):
    bt = vd_ref.shape[0]
    d = vd_ref.shape[2]
    r = bt * n * n

    # pairwise similarity Vd_i vs Vd_j, flattened to rows (b, i, j) for the MXU
    vd = vd_ref[...]                                     # (Bt, N, D)
    diff = vd[:, :, None, :] - vd[:, None, :, :]         # (Bt, N, N, D)
    if distance_metric == 'l2':
        sim = diff * diff
    else:  # 'l1'
        sim = jnp.abs(diff)
    sim2 = sim.reshape(r, d)                             # leading-dim collapse (layout-trivial)

    w1 = w1_ref[...]                                     # (D, H1), BN1 scale pre-folded
    w2 = w2_ref[...]                                     # (H1, H2), BN2 scale pre-folded
    if matmul_dtype is not None:                         # bf16 MXU path (f32 accumulation)
        sim2 = sim2.astype(matmul_dtype)
        w1 = w1.astype(matmul_dtype)
        w2 = w2.astype(matmul_dtype)

    # packed small params: row0=bn1 bias, row1=bn2 bias, row2=conv3 weight, row3[0]=conv3 bias
    b1 = p_ref[0:1, 0:h1]                                # (1, H1)
    b2 = p_ref[1:2, 0:h2]                                # (1, H2)
    w3 = p_ref[2:3, 0:h2]                                # (1, H2)
    b3 = p_ref[3:4, 0:1]                                 # (1, 1)

    # conv1 (1x1, BN scale folded) + bias + LeakyReLU(0.01)  -> (R, H1)
    x = jnp.dot(sim2, w1, preferred_element_type=jnp.float32) + b1
    x = jnp.where(x > 0, x, 0.01 * x)
    if matmul_dtype is not None:
        x = x.astype(matmul_dtype)

    # conv2 (1x1, BN scale folded) + bias + LeakyReLU(0.01)  -> (R, H2)
    x = jnp.dot(x, w2, preferred_element_type=jnp.float32) + b2
    x = jnp.where(x > 0, x, 0.01 * x)

    # conv3 (1x1 -> 1 channel, with bias) + sigmoid; move j into the lane dim
    x3 = x.reshape(bt * n, n, h2)                        # leading-dim split (layout-trivial)
    logit = jnp.sum(x3 * w3[None], axis=-1) + b3         # (Bt*N, N)
    sig = jax.nn.sigmoid(logit)

    # edge normalization vs last generation; rows = (b, i), lanes = j.
    # The diagonal mask is a hoisted input (constant index_map) -> no per-step iota.
    ed = ed_ref[...].reshape(bt * n, n)                  # leading-dim collapse (layout-trivial)
    eye = eye_ref[...]                                   # (Bt*N, N) pre-tiled identity

    ed_m = ed * (1.0 - eye)                              # zero diagonal
    ed_sum = jnp.sum(ed_m, axis=-1, keepdims=True)       # (Bt*N, 1)

    prod = sig * ed_m
    # keep abs() for exact parity with F.normalize(p=1) even though ed >= 0 here
    l1 = jnp.maximum(jnp.sum(jnp.abs(prod), axis=-1, keepdims=True), 1e-12)
    e = prod / l1 * ed_sum
    e = e + eye + 1e-6
    e = e / jnp.sum(e, axis=-1, keepdims=True)

    out_ref[...] = e.reshape(bt, n, n)                   # leading-dim split (layout-trivial)


# ---------------------------------------------------------------------------
# Tiling / budgeting helpers
# ---------------------------------------------------------------------------
def _vmem_capacity_bytes():
    """Physical VMEM per TensorCore (v5e/v6e: 128 MiB, v7x: 64 MiB)."""
    try:
        return int(pltpu.get_tpu_info().vmem_capacity_bytes)
    except Exception:
        return 64 * 1024 * 1024   # conservative fallback = v7x


def _estimate_vmem_bytes(bt, n, d, h1, h2, p, matmul_dtype):
    """Conservative live-VMEM model for one grid step at batch tile `bt`."""
    pairs = bt * n * n
    mm = jnp.dtype(matmul_dtype).itemsize if matmul_dtype is not None else 4
    est = 0
    # double-buffered pipeline blocks
    est += 2 * 4 * bt * n * d                 # vd block
    est += 2 * 4 * bt * n * n * 2             # ed block + out block
    est += 2 * 4 * bt * n * n                 # eye block (constant index map)
    est += 2 * 4 * (d * h1 + h1 * h2 + 8 * p)  # weights + packed params
    # in-kernel intermediates (diff and sim both live; bf16 copies when enabled)
    est += 4 * pairs * d * 2                  # diff + sim
    est += mm * pairs * d                     # sim2 (cast copy in the bf16 path)
    est += 4 * pairs * h1 + mm * pairs * h1   # x1 f32 + cast copy
    est += 4 * pairs * h2                     # x2 f32
    est += 4 * pairs * 2                      # logit + sigmoid
    est += 4 * bt * n * n * 4                 # ed_m / prod / e working copies
    return est


_MEGACORE_MIN_PAIRS = 8192   # below this, per-step (~0.35 us) overhead dominates


def _choose_block_b(B, n, d, h1, h2, p, budget_bytes, matmul_dtype, prefer_multi_step):
    fits = [bt for bt in range(B, 0, -1)
            if B % bt == 0 and
            _estimate_vmem_bytes(bt, n, d, h1, h2, p, matmul_dtype) <= budget_bytes]
    if not fits:
        return 1
    if prefer_multi_step:
        # Prefer an even grid step count >= 2 so dimension_semantics=("parallel",)
        # can shard across v7x's two TensorCores.
        for bt in fits:
            steps = B // bt
            if steps >= 2 and steps % 2 == 0:
                return bt
    return fits[0]


# ---------------------------------------------------------------------------
# Wrapper
# ---------------------------------------------------------------------------
def distribution_similarity(vd, ed_last, params, distance_metric='l2',
                            block_b=None, matmul_dtype='auto'):
    """vd: (B, N, D) f32, ed_last: (B, N, N) f32 -> (B, N, N) f32.

    `params` must come from `fold_params`.  `matmul_dtype='auto'` picks the bf16
    MXU path (f32 accumulation) when the pair count is large; pass None to force
    full-f32 (1e-5 parity) or jnp.bfloat16 to force the fast path.
    """
    w1f, w2f, packed = params
    B, N, D = vd.shape
    H1 = w1f.shape[1]
    H2 = w2f.shape[1]
    P = packed.shape[1]
    total_pairs = B * N * N

    if matmul_dtype == 'auto':
        # bf16 MXU rate only matters once there is real matmul work; tiny shapes
        # stay f32 (launch-latency bound, and keeps exact parity).
        matmul_dtype = jnp.bfloat16 if total_pairs >= 4096 else None

    cap = _vmem_capacity_bytes()
    budget = (3 * cap) // 8            # tile-sizing budget with double-buffer headroom
    vmem_limit = cap // 2              # explicit scoped-VMEM ceiling passed to Mosaic

    if block_b is None:
        block_b = _choose_block_b(
            B, N, D, H1, H2, P, budget, matmul_dtype,
            prefer_multi_step=(total_pairs >= _MEGACORE_MIN_PAIRS and B >= 2))
    assert B % block_b == 0, (B, block_b)
    grid = (B // block_b,)

    if matmul_dtype is not None:
        vd = vd.astype(matmul_dtype)   # halves vd HBM traffic on the bf16 path

    # Hoisted diagonal mask, pre-tiled to the batch tile (constant index_map).
    eye_tiled = jnp.tile(jnp.eye(N, dtype=jnp.float32), (block_b, 1))   # (block_b*N, N)

    flops = int(total_pairs * (2 * (D * H1 + H1 * H2 + H2) + 3 * D + 16))
    bytes_accessed = int(
        vd.size * vd.dtype.itemsize + 2 * total_pairs * 4
        + (D * H1 + H1 * H2 + 8 * P) * 4 + eye_tiled.size * 4)
    cost = pl.CostEstimate(flops=flops, transcendentals=int(total_pairs),
                           bytes_accessed=bytes_accessed)

    kernel = functools.partial(_dist_sim_kernel, distance_metric=distance_metric,
                               n=N, h1=H1, h2=H2, matmul_dtype=matmul_dtype)
    return pl.pallas_call(
        kernel,
        out_shape=jax.ShapeDtypeStruct((B, N, N), jnp.float32),
        grid_spec=pltpu.PrefetchScalarGridSpec(
            num_scalar_prefetch=0,
            grid=grid,
            in_specs=[
                pl.BlockSpec((block_b, N, D), lambda g: (g, 0, 0)),     # vd
                pl.BlockSpec((block_b, N, N), lambda g: (g, 0, 0)),     # ed_last
                # Constant index maps: Pallas skips the re-copy when the block
                # index is unchanged between grid steps, so eye/weights/params
                # are DMA'd into VMEM only once.
                pl.BlockSpec((block_b * N, N), lambda g: (0, 0)),       # eye (hoisted mask)
                pl.BlockSpec((D, H1), lambda g: (0, 0)),                # w1 (BN1 folded)
                pl.BlockSpec((H1, H2), lambda g: (0, 0)),               # w2 (BN2 folded)
                pl.BlockSpec((8, P), lambda g: (0, 0)),                 # packed small params
            ],
            out_specs=pl.BlockSpec((block_b, N, N), lambda g: (g, 0, 0)),
        ),
        compiler_params=pltpu.CompilerParams(
            dimension_semantics=("parallel",),
            vmem_limit_bytes=vmem_limit),
        cost_estimate=cost,
    )(vd, ed_last, eye_tiled, w1f, w2f, packed)


# ---------------------------------------------------------------------------
# Parameters, folding, pure-JAX reference
# ---------------------------------------------------------------------------
def init_params(key, in_c, base_c):
    """Deterministic synthetic parameters in 'PyTorch-like' form; BatchNorm is
    eval mode (running_mean=0, running_var=1) expressed as per-channel scale/bias."""
    h1, h2 = base_c * 2, base_c
    ks = jax.random.split(key, 8)
    eps = 1e-5

    # Conv weights stored as (in, out) matrices (PyTorch stores (out, in, 1, 1)).
    w1 = jax.random.normal(ks[0], (in_c, h1), jnp.float32) / jnp.sqrt(float(in_c))
    w2 = jax.random.normal(ks[1], (h1, h2), jnp.float32) / jnp.sqrt(float(h1))
    w3 = jax.random.normal(ks[2], (1, h2), jnp.float32) / jnp.sqrt(float(h2))
    b3 = 0.1 * jax.random.normal(ks[3], (1, 1), jnp.float32)

    g1 = 1.0 + 0.1 * jax.random.normal(ks[4], (1, h1), jnp.float32)
    be1 = 0.1 * jax.random.normal(ks[5], (1, h1), jnp.float32)
    s1 = g1 / jnp.sqrt(1.0 + eps)
    bb1 = be1  # running_mean = 0

    g2 = 1.0 + 0.1 * jax.random.normal(ks[6], (1, h2), jnp.float32)
    be2 = 0.1 * jax.random.normal(ks[7], (1, h2), jnp.float32)
    s2 = g2 / jnp.sqrt(1.0 + eps)
    bb2 = be2

    return (w1, s1, bb1, w2, s2, bb2, w3, b3)


def fold_params(raw_params):
    """One-time constant fold: BN scales into conv weights, small params packed
    into a single (8, P) block (P = 128-multiple), conv3 bias baked in at [3, 0]."""
    w1, s1, b1, w2, s2, b2, w3, b3 = raw_params
    w1f = w1 * s1            # column scale:  (x @ w1) * s1 == x @ (w1 * s1)
    w2f = w2 * s2
    H1, H2 = w1.shape[1], w2.shape[1]
    P = 128 * max(1, -(-max(H1, H2, 1) // 128))
    packed = jnp.zeros((8, P), jnp.float32)
    packed = packed.at[0, :H1].set(b1[0])
    packed = packed.at[1, :H2].set(b2[0])
    packed = packed.at[2, :H2].set(w3[0])
    packed = packed.at[3, 0].set(b3[0, 0])
    return (w1f, w2f, packed)


def reference(vd, ed_last, raw_params, distance_metric='l2'):
    """Pure-JAX reference mirroring the PyTorch forward (eval mode, dropout=0),
    using the *unfolded* parameters."""
    w1, s1, b1, w2, s2, b2, w3, b3 = raw_params
    B, N, _ = vd.shape
    vd_i = vd[:, :, None, :]
    vd_j = vd[:, None, :, :]
    sim = (vd_i - vd_j) ** 2 if distance_metric == 'l2' else jnp.abs(vd_i - vd_j)

    x = jnp.einsum('bijd,dh->bijh', sim, w1)
    x = x * s1[0] + b1[0]
    x = jnp.where(x > 0, x, 0.01 * x)
    x = jnp.einsum('bijh,hk->bijk', x, w2)
    x = x * s2[0] + b2[0]
    x = jnp.where(x > 0, x, 0.01 * x)
    sig = jax.nn.sigmoid(jnp.sum(x * w3[0], axis=-1) + b3[0, 0])

    eye = jnp.eye(N, dtype=jnp.float32)[None]
    ed_m = ed_last * (1.0 - eye)
    ed_sum = jnp.sum(ed_m, axis=-1, keepdims=True)
    prod = sig * ed_m
    l1 = jnp.maximum(jnp.sum(jnp.abs(prod), axis=-1, keepdims=True), 1e-12)
    e = prod / l1 * ed_sum
    e = e + eye + 1e-6
    e = e / jnp.sum(e, axis=-1, keepdims=True)
    return e


if __name__ == "__main__":
    B, N, in_c, base_c = 2, 16, 32, 16   # dropout=0 -> no Dropout2d layers
    key = jax.random.PRNGKey(0)
    k_par, k_vd, k_ed = jax.random.split(key, 3)

    raw_params = init_params(k_par, in_c, base_c)
    params = fold_params(raw_params)

    vd = jax.random.normal(k_vd, (B, N, in_c), jnp.float32)
    # last-generation distribution-graph edges (non-negative similarities)
    ed_last = jax.nn.sigmoid(jax.random.normal(k_ed, (B, N, N), jnp.float32))

    ref = reference(vd, ed_last, raw_params, distance_metric='l2')

    # f32 path ('auto' resolves to f32 at this tiny pair count): exact parity.
    out = distribution_similarity(vd, ed_last, params, distance_metric='l2')
    out = jax.block_until_ready(out)
    assert out.shape == (B, N, N)
    assert jnp.allclose(out, ref, rtol=1e-5, atol=1e-5), (
        f"max abs err {jnp.max(jnp.abs(out - ref))}")

    # l1 distance metric path.
    out_l1 = jax.block_until_ready(
        distribution_similarity(vd, ed_last, params, distance_metric='l1'))
    ref_l1 = reference(vd, ed_last, raw_params, distance_metric='l1')
    assert jnp.allclose(out_l1, ref_l1, rtol=1e-5, atol=1e-5), (
        f"max abs err (l1) {jnp.max(jnp.abs(out_l1 - ref_l1))}")

    # bf16 MXU path (what 'auto' selects at production-sized R on v6e/v7x):
    # check it runs, stays a valid row-normalized distribution, and is close.
    out_bf16 = jax.block_until_ready(
        distribution_similarity(vd, ed_last, params, distance_metric='l2',
                                matmul_dtype=jnp.bfloat16))
    assert bool(jnp.all(jnp.isfinite(out_bf16)))
    assert jnp.allclose(jnp.sum(out_bf16, axis=-1), 1.0, atol=1e-3)
    assert float(jnp.max(jnp.abs(out_bf16 - ref))) < 5e-2

    # TODO(synk): training-mode BatchNorm statistics and Dropout2d (dropout>0)
    # are not modeled; eval-mode BN is folded into the conv weights/bias.
    print("KERNEL_OK")
</pallas_src>

<mosaic_0001>
module attributes {stable_mosaic.version = 11 : i64} {
  func.func @_dist_sim_kernel(%arg0: i32, %arg1: memref<2x16x32xf32, #tpu.memory_space<vmem>>, %arg2: memref<2x16x16xf32, #tpu.memory_space<vmem>>, %arg3: memref<32x16xf32, #tpu.memory_space<vmem>>, %arg4: memref<32x32xf32, #tpu.memory_space<vmem>>, %arg5: memref<32x16xf32, #tpu.memory_space<vmem>>, %arg6: memref<8x128xf32, #tpu.memory_space<vmem>>, %arg7: memref<2x16x16xf32, #tpu.memory_space<vmem>>) attributes {dimension_semantics = [#tpu.dimension_semantics<parallel>], iteration_bounds = array<i64: 1>, scalar_prefetch = 0 : i64, scratch_operands = 0 : i64, tpu.core_type = #tpu.core_type<tc>, window_params = [{transform_indices = @transform_0, window_bounds = array<i64: 2, 16, 32>}, {transform_indices = @transform_1, window_bounds = array<i64: 2, 16, 16>}, {pipeline_mode = #tpu.pipeline_mode<synchronous>, transform_indices = @transform_2, window_bounds = array<i64: 32, 16>}, {pipeline_mode = #tpu.pipeline_mode<synchronous>, transform_indices = @transform_3, window_bounds = array<i64: 32, 32>}, {pipeline_mode = #tpu.pipeline_mode<synchronous>, transform_indices = @transform_4, window_bounds = array<i64: 32, 16>}, {pipeline_mode = #tpu.pipeline_mode<synchronous>, transform_indices = @transform_5, window_bounds = array<i64: 8, 128>}, {transform_indices = @transform_6, window_bounds = array<i64: 2, 16, 16>}]} {
    %c0 = arith.constant 0 : index
    %c0_0 = arith.constant 0 : index
    %c0_1 = arith.constant 0 : index
    %0 = vector.load %arg1[%c0, %c0_0, %c0_1] : memref<2x16x32xf32, #tpu.memory_space<vmem>>, vector<2x16x32xf32>
    %1 = vector.shape_cast %0 : vector<2x16x32xf32> to vector<2x16x1x32xf32>
    %2 = vector.shape_cast %0 : vector<2x16x32xf32> to vector<2x1x16x32xf32>
    %3 = vector.broadcast %1 : vector<2x16x1x32xf32> to vector<2x16x16x32xf32>
    %4 = vector.broadcast %2 : vector<2x1x16x32xf32> to vector<2x16x16x32xf32>
    %5 = arith.subf %3, %4 : vector<2x16x16x32xf32>
    %6 = arith.mulf %5, %5 : vector<2x16x16x32xf32>
    %7 = vector.shape_cast %6 : vector<2x16x16x32xf32> to vector<512x32xf32>
    %c0_2 = arith.constant 0 : index
    %c0_3 = arith.constant 0 : index
    %8 = vector.load %arg4[%c0_2, %c0_3] : memref<32x32xf32, #tpu.memory_space<vmem>>, vector<32x32xf32>
    %c0_4 = arith.constant 0 : index
    %c0_5 = arith.constant 0 : index
    %9 = vector.load %arg5[%c0_4, %c0_5] : memref<32x16xf32, #tpu.memory_space<vmem>>, vector<32x16xf32>
    %c0_6 = arith.constant 0 : index
    %c0_7 = arith.constant 0 : index
    %10 = vector.load %arg6[%c0_6, %c0_7] : memref<8x128xf32, #tpu.memory_space<vmem>>, vector<1x32xf32>
    %c1 = arith.constant 1 : index
    %c0_8 = arith.constant 0 : index
    %11 = vector.load %arg6[%c1, %c0_8] : memref<8x128xf32, #tpu.memory_space<vmem>>, vector<1x16xf32>
    %c2 = arith.constant 2 : index
    %c0_9 = arith.constant 0 : index
    %12 = vector.load %arg6[%c2, %c0_9] : memref<8x128xf32, #tpu.memory_space<vmem>>, vector<1x16xf32>
    %c3 = arith.constant 3 : index
    %c0_10 = arith.constant 0 : index
    %13 = vector.load %arg6[%c3, %c0_10] : memref<8x128xf32, #tpu.memory_space<vmem>>, vector<1x1xf32>
    %cst = arith.constant dense<0.000000e+00> : vector<512x32xf32>
    %14 = tpu.matmul %7, %8, %cst {dimension_numbers = #tpu.dot_dimension_numbers<[1], [0], [0], [1], [0, 0, 1, 1], [], []>} : vector<512x32xf32>, vector<32x32xf32>, vector<512x32xf32> -> vector<512x32xf32>
    %15 = vector.broadcast %10 : vector<1x32xf32> to vector<512x32xf32>
    %16 = arith.addf %14, %15 : vector<512x32xf32>
    %cst_11 = arith.constant 0.000000e+00 : f32
    %17 = vector.broadcast %cst_11 : f32 to vector<512x32xf32>
    %18 = arith.cmpf ogt, %16, %17 : vector<512x32xf32>
    %cst_12 = arith.constant 0.00999999977 : f32
    %19 = vector.broadcast %cst_12 : f32 to vector<512x32xf32>
    %20 = arith.mulf %19, %16 : vector<512x32xf32>
    %21 = arith.select %18, %16, %20 : vector<512x32xi1>, vector<512x32xf32>
    %cst_13 = arith.constant dense<0.000000e+00> : vector<512x16xf32>
    %22 = tpu.matmul %21, %9, %cst_13 {dimension_numbers = #tpu.dot_dimension_numbers<[1], [0], [0], [1], [0, 0, 1, 1], [], []>} : vector<512x32xf32>, vector<32x16xf32>, vector<512x16xf32> -> vector<512x16xf32>
    %23 = vector.broadcast %11 : vector<1x16xf32> to vector<512x16xf32>
    %24 = arith.addf %22, %23 : vector<512x16xf32>
    %cst_14 = arith.constant 0.000000e+00 : f32
    %25 = vector.broadcast %cst_14 : f32 to vector<512x16xf32>
    %26 = arith.cmpf ogt, %24, %25 : vector<512x16xf32>
    %cst_15 = arith.constant 0.00999999977 : f32
    %27 = vector.broadcast %cst_15 : f32 to vector<512x16xf32>
    %28 = arith.mulf %27, %24 : vector<512x16xf32>
    %29 = arith.select %26, %24, %28 : vector<512x16xi1>, vector<512x16xf32>
    %30 = vector.shape_cast %29 : vector<512x16xf32> to vector<32x16x16xf32>
    %31 = vector.shape_cast %12 : vector<1x16xf32> to vector<1x1x16xf32>
    %32 = vector.broadcast %31 : vector<1x1x16xf32> to vector<32x16x16xf32>
    %33 = arith.mulf %30, %32 : vector<32x16x16xf32>
    %cst_16 = arith.constant dense<0.000000e+00> : vector<32x16xf32>
    %34 = vector.multi_reduction <add>, %33, %cst_16 [2] : vector<32x16x16xf32> to vector<32x16xf32>
    %35 = vector.broadcast %13 : vector<1x1xf32> to vector<32x16xf32>
    %36 = arith.addf %34, %35 : vector<32x16xf32>
    %37 = arith.negf %36 : vector<32x16xf32>
    %38 = math.exp %37 : vector<32x16xf32>
    %cst_17 = arith.constant 1.000000e+00 : f32
    %39 = vector.broadcast %cst_17 : f32 to vector<32x16xf32>
    %40 = arith.addf %39, %38 : vector<32x16xf32>
    %41 = arith.divf %39, %40 : vector<32x16xf32>
    %c0_18 = arith.constant 0 : index
    %c0_19 = arith.constant 0 : index
    %c0_20 = arith.constant 0 : index
    %42 = vector.load %arg2[%c0_18, %c0_19, %c0_20] : memref<2x16x16xf32, #tpu.memory_space<vmem>>, vector<2x16x16xf32>
    %43 = vector.shape_cast %42 : vector<2x16x16xf32> to vector<32x16xf32>
    %c0_21 = arith.constant 0 : index
    %c0_22 = arith.constant 0 : index
    %44 = vector.load %arg3[%c0_21, %c0_22] : memref<32x16xf32, #tpu.memory_space<vmem>>, vector<32x16xf32>
    %cst_23 = arith.constant 1.000000e+00 : f32
    %45 = vector.broadcast %cst_23 : f32 to vector<32x16xf32>
    %46 = arith.subf %45, %44 : vector<32x16xf32>
    %47 = arith.mulf %43, %46 : vector<32x16xf32>
    %cst_24 = arith.constant dense<0.000000e+00> : vector<32xf32>
    %48 = vector.multi_reduction <add>, %47, %cst_24 [1] : vector<32x16xf32> to vector<32xf32>
    %49 = vector.shape_cast %48 : vector<32xf32> to vector<32x1xf32>
    %50 = arith.mulf %41, %47 : vector<32x16xf32>
    %51 = math.absf %50 : vector<32x16xf32>
    %cst_25 = arith.constant dense<0.000000e+00> : vector<32xf32>
    %52 = vector.multi_reduction <add>, %51, %cst_25 [1] : vector<32x16xf32> to vector<32xf32>
    %53 = vector.shape_cast %52 : vector<32xf32> to vector<32x1xf32>
    %cst_26 = arith.constant 9.99999996E-13 : f32
    %54 = vector.broadcast %cst_26 : f32 to vector<32x1xf32>
    %55 = arith.maximumf %53, %54 : vector<32x1xf32>
    %56 = vector.broadcast %55 : vector<32x1xf32> to vector<32x16xf32>
    %57 = arith.divf %50, %56 : vector<32x16xf32>
    %58 = vector.broadcast %49 : vector<32x1xf32> to vector<32x16xf32>
    %59 = arith.mulf %57, %58 : vector<32x16xf32>
    %60 = arith.addf %59, %44 : vector<32x16xf32>
    %cst_27 = arith.constant 9.99999997E-7 : f32
    %61 = vector.broadcast %cst_27 : f32 to vector<32x16xf32>
    %62 = arith.addf %60, %61 : vector<32x16xf32>
    %cst_28 = arith.constant dense<0.000000e+00> : vector<32xf32>
    %63 = vector.multi_reduction <add>, %62, %cst_28 [1] : vector<32x16xf32> to vector<32xf32>
    %64 = vector.shape_cast %63 : vector<32xf32> to vector<32x1xf32>
    %65 = vector.broadcast %64 : vector<32x1xf32> to vector<32x16xf32>
    %66 = arith.divf %62, %65 : vector<32x16xf32>
    %67 = vector.shape_cast %66 : vector<32x16xf32> to vector<2x16x16xf32>
    %c0_29 = arith.constant 0 : index
    %c0_30 = arith.constant 0 : index
    %c0_31 = arith.constant 0 : index
    %68 = vector.load %arg7[%c0_29, %c0_30, %c0_31] : memref<2x16x16xf32, #tpu.memory_space<vmem>>, vector<2x16x16xf32>
    tpu.vector_store %arg7[%c0_29, %c0_30, %c0_31], %67 {strides = array<i32>} : memref<2x16x16xf32, #tpu.memory_space<vmem>>, vector<2x16x16xf32>,
    return
  }
  func.func @transform_0(%arg0: i32) -> (i32, i32, i32) {
    %c0_i32 = arith.constant 0 : i32
    %c0_i32_0 = arith.constant 0 : i32
    %c0_i32_1 = arith.constant 0 : i32
    return %arg0, %c0_i32, %c0_i32_0 : i32, i32, i32
  }
  func.func @transform_1(%arg0: i32) -> (i32, i32, i32) {
    %c0_i32 = arith.constant 0 : i32
    %c0_i32_0 = arith.constant 0 : i32
    %c0_i32_1 = arith.constant 0 : i32
    return %arg0, %c0_i32, %c0_i32_0 : i32, i32, i32
  }
  func.func @transform_2(%arg0: i32) -> (i32, i32) {
    %c0_i32 = arith.constant 0 : i32
    %c0_i32_0 = arith.constant 0 : i32
    %c0_i32_1 = arith.constant 0 : i32
    return %c0_i32, %c0_i32_0 : i32, i32
  }
  func.func @transform_3(%arg0: i32) -> (i32, i32) {
    %c0_i32 = arith.constant 0 : i32
    %c0_i32_0 = arith.constant 0 : i32
    %c0_i32_1 = arith.constant 0 : i32
    return %c0_i32, %c0_i32_0 : i32, i32
  }
  func.func @transform_4(%arg0: i32) -> (i32, i32) {
    %c0_i32 = arith.constant 0 : i32
    %c0_i32_0 = arith.constant 0 : i32
    %c0_i32_1 = arith.constant 0 : i32
    return %c0_i32, %c0_i32_0 : i32, i32
  }
  func.func @transform_5(%arg0: i32) -> (i32, i32) {
    %c0_i32 = arith.constant 0 : i32
    %c0_i32_0 = arith.constant 0 : i32
    %c0_i32_1 = arith.constant 0 : i32
    return %c0_i32, %c0_i32_0 : i32, i32
  }
  func.func @transform_6(%arg0: i32) -> (i32, i32, i32) {
    %c0_i32 = arith.constant 0 : i32
    %c0_i32_0 = arith.constant 0 : i32
    %c0_i32_1 = arith.constant 0 : i32
    return %arg0, %c0_i32, %c0_i32_0 : i32, i32, i32
  }
}

</mosaic_0001>

<llo_original>
// kernel: tpu_custom_call.1
$region0: #{tpu_custom_call.1}
  #allocation0 [shape = 'u32[]', space=smem, size = 0x4, offset = 0x4, fixed_abs, tag = 'smem constant byte address 0x4 - core index']
  #allocation1 [shape = 'u32[144,128]{1,0:T(1,128)}', space=vmem, size = 0x12000, scoped, tag = 'internal scratch']
  %s0 = inlined_call_operand.vmem [shape: f32[2,16,32], index: 0, kind: input, shape index: {}]
  %s1 = inlined_call_operand.vmem [shape: f32[2,16,16], index: 1, kind: input, shape index: {}]
  %s2 = inlined_call_operand.vmem [shape: f32[32,16], index: 2, kind: input, shape index: {}]
  %s3 = inlined_call_operand.vmem [shape: f32[32,32], index: 3, kind: input, shape index: {}]
  %s4 = inlined_call_operand.vmem [shape: f32[32,16], index: 4, kind: input, shape index: {}]
  %s5 = inlined_call_operand.vmem [shape: f32[8,128], index: 5, kind: input, shape index: {}]
  %s6 = inlined_call_operand.hbm [shape: f32[2,16,16], index: 6, kind: output, shape index: {}]
  %s7 = sld [smem:[#allocation0]]
  $region34: #{tpu_custom_call.1} parent=0
    _
  %s9 = ssub.s32 1, %s7
  %s10 = scalar_select 0, %s9, %s7
  $region1: #{tpu_custom_call.1} parent=0
    #allocation2 [shape = 'u8[16384]{0}', space=vmem, size = 0x4000, scoped, tag = 'output window, operand 0, single buffered']
    #allocation3 [shape = 's32[1]{0}', space=sflag, size = 0x4, scoped, tag = 'scoped memory for tpu_custom_call.1']
    %11 = vsyncpa [#allocation3], 0
    // Predicated region
    $region2: #{tpu_custom_call.1} parent=1 // pred_check
      _
    $region3: #{tpu_custom_call.1} parent=1 // pred_check_branch
      %13 = sbr.rel (0) target = $region5
    $region4: #{tpu_custom_call.1} parent=1 // pred_region
      _
    $region5: #{tpu_custom_call.1} parent=1 // pred_fallthru
      _
    // Predicated region
    $region6: #{tpu_custom_call.1} parent=1 // pred_check
      _
    $region7: #{tpu_custom_call.1} parent=1 // pred_check_branch
      %15 = sbr.rel (0) target = $region9
    $region8: #{tpu_custom_call.1} parent=1 // pred_region
      _
    $region9: #{tpu_custom_call.1} parent=1 // pred_fallthru
      _
    // Predicated region
    $region10: #{tpu_custom_call.1} parent=1 // pred_check
      _
    $region11: #{tpu_custom_call.1} parent=1 // pred_check_branch
      %17 = sbr.rel (0) target = $region13
    $region12: #{tpu_custom_call.1} parent=1 // pred_region
      _
    $region13: #{tpu_custom_call.1} parent=1 // pred_fallthru
      _
    // Predicated region
    $region14: #{tpu_custom_call.1} parent=1 // pred_check
      _
    $region15: #{tpu_custom_call.1} parent=1 // pred_check_branch
      %19 = sbr.rel (0) target = $region17
    $region16: #{tpu_custom_call.1} parent=1 // pred_region
      _
    $region17: #{tpu_custom_call.1} parent=1 // pred_fallthru
      _
    // Predicated region
    $region18: #{tpu_custom_call.1} parent=1 // pred_check
      _
    $region19: #{tpu_custom_call.1} parent=1 // pred_check_branch
      %21 = sbr.rel (0) target = $region21
    $region20: #{tpu_custom_call.1} parent=1 // pred_region
      _
    $region21: #{tpu_custom_call.1} parent=1 // pred_fallthru
      _
    // Predicated region
    $region22: #{tpu_custom_call.1} parent=1 // pred_check
      _
    $region23: #{tpu_custom_call.1} parent=1 // pred_check_branch
      %23 = sbr.rel (0) target = $region25
    $region24: #{tpu_custom_call.1} parent=1 // pred_region
      _
    $region25: #{tpu_custom_call.1} parent=1 // pred_fallthru
      _
    %v24 = vld [vmem:[%s0] sm:$0xff]
    %v25 = vld [vmem:[%s0 + $0x8] sm:$0xff]
    %v26 = vld [vmem:[%s0 + $0x10] sm:$0xff]
    %v27 = vld [vmem:[%s0 + $0x18] sm:$0xff]
    %v32 = vcombine.high %v24, %v24
    %v34 = vunpack.c.l.s4 1966171168
    %v35 = vunpack.c.0.s8 %v34
    %v36 = vlaneseq
    %v37 = vshrl.u32 %v36, 7
    %v38 = vsub.s32 %v35, %v37
    %v39 = vrot.slane %v24, %v38
    %v41 = vunpack.c.l.s4 1966171168
    %v42 = vunpack.c.0.s8 %v41
    %v43 = vlaneseq
    %v44 = vshrl.u32 %v43, 7
    %v45 = vsub.s32 %v42, %v44
    %v46 = vrot.slane %v32, %v45
    %v47 = vcombine.high %v39, %v39
    %v48 = vcombine.high %v46, %v46
    %v50 = vunpack.c.l.s4 1966171168
    %v51 = vunpack.c.0.s8 %v50
    %v52 = vlaneseq
    %v53 = vshrl.u32 %v52, 7
    %v54 = vsub.s32 %v51, %v53
    %v55 = vrot.slane %v39, %v54
    %v57 = vunpack.c.l.s4 1966171168
    %v58 = vunpack.c.0.s8 %v57
    %v59 = vlaneseq
    %v60 = vshrl.u32 %v59, 7
    %v61 = vsub.s32 %v58, %v60
    %v62 = vrot.slane %v46, %v61
    %v64 = vunpack.c.l.s4 1966171168
    %v65 = vunpack.c.0.s8 %v64
    %v66 = vlaneseq
    %v67 = vshrl.u32 %v66, 7
    %v68 = vsub.s32 %v65, %v67
    %v69 = vrot.slane %v47, %v68
    %v71 = vunpack.c.l.s4 1966171168
    %v72 = vunpack.c.0.s8 %v71
    %v73 = vlaneseq
    %v74 = vshrl.u32 %v73, 7
    %v75 = vsub.s32 %v72, %v74
    %v76 = vrot.slane %v48, %v75
    %v77 = vcombine.high %v55, %v55
    %v78 = vcombine.high %v62, %v62
    %v79 = vcombine.high %v69, %v69
    %v80 = vcombine.high %v76, %v76
    %v81 = vcombine.high %v25, %v25
    %v83 = vunpack.c.l.s4 1966171168
    %v84 = vunpack.c.0.s8 %v83
    %v85 = vlaneseq
    %v86 = vshrl.u32 %v85, 7
    %v87 = vsub.s32 %v84, %v86
    %v88 = vrot.slane %v25, %v87
    %v90 = vunpack.c.l.s4 1966171168
    %v91 = vunpack.c.0.s8 %v90
    %v92 = vlaneseq
    %v93 = vshrl.u32 %v92, 7
    %v94 = vsub.s32 %v91, %v93
    %v95 = vrot.slane %v81, %v94
    %v96 = vcombine.high %v88, %v88
    %v97 = vcombine.high %v95, %v95
    %v99 = vunpack.c.l.s4 1966171168
    %v100 = vunpack.c.0.s8 %v99
    %v101 = vlaneseq
    %v102 = vshrl.u32 %v101, 7
    %v103 = vsub.s32 %v100, %v102
    %v104 = vrot.slane %v88, %v103
    %v106 = vunpack.c.l.s4 1966171168
    %v107 = vunpack.c.0.s8 %v106
    %v108 = vlaneseq
    %v109 = vshrl.u32 %v108, 7
    %v110 = vsub.s32 %v107, %v109
    %v111 = vrot.slane %v95, %v110
    %v113 = vunpack.c.l.s4 1966171168
    %v114 = vunpack.c.0.s8 %v113
    %v115 = vlaneseq
    %v116 = vshrl.u32 %v115, 7
    %v117 = vsub.s32 %v114, %v116
    %v118 = vrot.slane %v96, %v117
    %v120 = vunpack.c.l.s4 1966171168
    %v121 = vunpack.c.0.s8 %v120
    %v122 = vlaneseq
    %v123 = vshrl.u32 %v122, 7
    %v124 = vsub.s32 %v121, %v123
    %v125 = vrot.slane %v97, %v124
    %v126 = vcombine.high %v104, %v104
    %v127 = vcombine.high %v111, %v111
    %v128 = vcombine.high %v118, %v118
    %v129 = vcombine.high %v125, %v125
    %v130 = vcombine.high %v26, %v26
    %v132 = vunpack.c.l.s4 1966171168
    %v133 = vunpack.c.0.s8 %v132
    %v134 = vlaneseq
    %v135 = vshrl.u32 %v134, 7
    %v136 = vsub.s32 %v133, %v135
    %v137 = vrot.slane %v26, %v136
    %v139 = vunpack.c.l.s4 1966171168
    %v140 = vunpack.c.0.s8 %v139
    %v141 = vlaneseq
    %v142 = vshrl.u32 %v141, 7
    %v143 = vsub.s32 %v140, %v142
    %v144 = vrot.slane %v130, %v143
    %v145 = vcombine.high %v137, %v137
    %v146 = vcombine.high %v144, %v144
    %v148 = vunpack.c.l.s4 1966171168
    %v149 = vunpack.c.0.s8 %v148
    %v150 = vlaneseq
    %v151 = vshrl.u32 %v150, 7
    %v152 = vsub.s32 %v149, %v151
    %v153 = vrot.slane %v137, %v152
    %v155 = vunpack.c.l.s4 1966171168
    %v156 = vunpack.c.0.s8 %v155
    %v157 = vlaneseq
    %v158 = vshrl.u32 %v157, 7
    %v159 = vsub.s32 %v156, %v158
    %v160 = vrot.slane %v144, %v159
    %v162 = vunpack.c.l.s4 1966171168
    %v163 = vunpack.c.0.s8 %v162
    %v164 = vlaneseq
    %v165 = vshrl.u32 %v164, 7
    %v166 = vsub.s32 %v163, %v165
    %v167 = vrot.slane %v145, %v166
    %v169 = vunpack.c.l.s4 1966171168
    %v170 = vunpack.c.0.s8 %v169
    %v171 = vlaneseq
    %v172 = vshrl.u32 %v171, 7
    %v173 = vsub.s32 %v170, %v172
    %v174 = vrot.slane %v146, %v173
    %v175 = vcombine.high %v153, %v153
    %v176 = vcombine.high %v160, %v160
    %v177 = vcombine.high %v167, %v167
    %v178 = vcombine.high %v174, %v174
    %v179 = vcombine.high %v27, %v27
    %v181 = vunpack.c.l.s4 1966171168
    %v182 = vunpack.c.0.s8 %v181
    %v183 = vlaneseq
    %v184 = vshrl.u32 %v183, 7
    %v185 = vsub.s32 %v182, %v184
    %v186 = vrot.slane %v27, %v185
    %v188 = vunpack.c.l.s4 1966171168
    %v189 = vunpack.c.0.s8 %v188
    %v190 = vlaneseq
    %v191 = vshrl.u32 %v190, 7
    %v192 = vsub.s32 %v189, %v191
    %v193 = vrot.slane %v179, %v192
    %v194 = vcombine.high %v186, %v186
    %v195 = vcombine.high %v193, %v193
    %v197 = vunpack.c.l.s4 1966171168
    %v198 = vunpack.c.0.s8 %v197
    %v199 = vlaneseq
    %v200 = vshrl.u32 %v199, 7
    %v201 = vsub.s32 %v198, %v200
    %v202 = vrot.slane %v186, %v201
    %v204 = vunpack.c.l.s4 1966171168
    %v205 = vunpack.c.0.s8 %v204
    %v206 = vlaneseq
    %v207 = vshrl.u32 %v206, 7
    %v208 = vsub.s32 %v205, %v207
    %v209 = vrot.slane %v193, %v208
    %v211 = vunpack.c.l.s4 1966171168
    %v212 = vunpack.c.0.s8 %v211
    %v213 = vlaneseq
    %v214 = vshrl.u32 %v213, 7
    %v215 = vsub.s32 %v212, %v214
    %v216 = vrot.slane %v194, %v215
    %v218 = vunpack.c.l.s4 1966171168
    %v219 = vunpack.c.0.s8 %v218
    %v220 = vlaneseq
    %v221 = vshrl.u32 %v220, 7
    %v222 = vsub.s32 %v219, %v221
    %v223 = vrot.slane %v195, %v222
    %v224 = vcombine.high %v202, %v202
    %v225 = vcombine.high %v209, %v209
    %v226 = vcombine.high %v216, %v216
    %v227 = vcombine.high %v223, %v223
    %v228 = vlaneseq
    %v229 = vshrl.u32 %v228, 7
    %v230 = vsub.s32 0, %v229
    %v231 = vrot.slane %v55, %v230
    %v232 = vlaneseq
    %v233 = vshrl.u32 %v232, 7
    %v234 = vsub.s32 0, %v233
    %v235 = vrot.slane %v69, %v234
    %v236 = vlaneseq
    %v237 = vshrl.u32 %v236, 7
    %v238 = vsub.s32 0, %v237
    %v239 = vrot.slane %v77, %v238
    %v240 = vlaneseq
    %v241 = vshrl.u32 %v240, 7
    %v242 = vsub.s32 0, %v241
    %v243 = vrot.slane %v79, %v242
    %v244 = vlaneseq
    %v245 = vshrl.u32 %v244, 7
    %v246 = vsub.s32 0, %v245
    %v247 = vrot.slane %v62, %v246
    %v248 = vlaneseq
    %v249 = vshrl.u32 %v248, 7
    %v250 = vsub.s32 0, %v249
    %v251 = vrot.slane %v76, %v250
    %v252 = vlaneseq
    %v253 = vshrl.u32 %v252, 7
    %v254 = vsub.s32 0, %v253
    %v255 = vrot.slane %v78, %v254
    %v256 = vlaneseq
    %v257 = vshrl.u32 %v256, 7
    %v258 = vsub.s32 0, %v257
    %v259 = vrot.slane %v80, %v258
    %v260 = vlaneseq
    %v261 = vshrl.u32 %v260, 7
    %v262 = vsub.s32 0, %v261
    %v263 = vrot.slane %v104, %v262
    %v264 = vlaneseq
    %v265 = vshrl.u32 %v264, 7
    %v266 = vsub.s32 0, %v265
    %v267 = vrot.slane %v118, %v266
    %v268 = vlaneseq
    %v269 = vshrl.u32 %v268, 7
    %v270 = vsub.s32 0, %v269
    %v271 = vrot.slane %v126, %v270
    %v272 = vlaneseq
    %v273 = vshrl.u32 %v272, 7
    %v274 = vsub.s32 0, %v273
    %v275 = vrot.slane %v128, %v274
    %v276 = vlaneseq
    %v277 = vshrl.u32 %v276, 7
    %v278 = vsub.s32 0, %v277
    %v279 = vrot.slane %v111, %v278
    %v280 = vlaneseq
    %v281 = vshrl.u32 %v280, 7
    %v282 = vsub.s32 0, %v281
    %v283 = vrot.slane %v125, %v282
    %v284 = vlaneseq
    %v285 = vshrl.u32 %v284, 7
    %v286 = vsub.s32 0, %v285
    %v287 = vrot.slane %v127, %v286
    %v288 = vlaneseq
    %v289 = vshrl.u32 %v288, 7
    %v290 = vsub.s32 0, %v289
    %v291 = vrot.slane %v129, %v290
    %v292 = vlaneseq
    %v293 = vshrl.u32 %v292, 7
    %v294 = vsub.s32 0, %v293
    %v295 = vrot.slane %v153, %v294
    %v296 = vlaneseq
    %v297 = vshrl.u32 %v296, 7
    %v298 = vsub.s32 0, %v297
    %v299 = vrot.slane %v167, %v298
    %v300 = vlaneseq
    %v301 = vshrl.u32 %v300, 7
    %v302 = vsub.s32 0, %v301
    %v303 = vrot.slane %v175, %v302
    %v304 = vlaneseq
    %v305 = vshrl.u32 %v304, 7
    %v306 = vsub.s32 0, %v305
    %v307 = vrot.slane %v177, %v306
    %v308 = vlaneseq
    %v309 = vshrl.u32 %v308, 7
    %v310 = vsub.s32 0, %v309
    %v311 = vrot.slane %v160, %v310
    %v312 = vlaneseq
    %v313 = vshrl.u32 %v312, 7
    %v314 = vsub.s32 0, %v313
    %v315 = vrot.slane %v174, %v314
    %v316 = vlaneseq
    %v317 = vshrl.u32 %v316, 7
    %v318 = vsub.s32 0, %v317
    %v319 = vrot.slane %v176, %v318
    %v320 = vlaneseq
    %v321 = vshrl.u32 %v320, 7
    %v322 = vsub.s32 0, %v321
    %v323 = vrot.slane %v178, %v322
    %v324 = vlaneseq
    %v325 = vshrl.u32 %v324, 7
    %v326 = vsub.s32 0, %v325
    %v327 = vrot.slane %v202, %v326
    %v328 = vlaneseq
    %v329 = vshrl.u32 %v328, 7
    %v330 = vsub.s32 0, %v329
    %v331 = vrot.slane %v216, %v330
    %v332 = vlaneseq
    %v333 = vshrl.u32 %v332, 7
    %v334 = vsub.s32 0, %v333
    %v335 = vrot.slane %v224, %v334
    %v336 = vlaneseq
    %v337 = vshrl.u32 %v336, 7
    %v338 = vsub.s32 0, %v337
    %v339 = vrot.slane %v226, %v338
    %v340 = vlaneseq
    %v341 = vshrl.u32 %v340, 7
    %v342 = vsub.s32 0, %v341
    %v343 = vrot.slane %v209, %v342
    %v344 = vlaneseq
    %v345 = vshrl.u32 %v344, 7
    %v346 = vsub.s32 0, %v345
    %v347 = vrot.slane %v223, %v346
    %v348 = vlaneseq
    %v349 = vshrl.u32 %v348, 7
    %v350 = vsub.s32 0, %v349
    %v351 = vrot.slane %v225, %v350
    %v352 = vlaneseq
    %v353 = vshrl.u32 %v352, 7
    %v354 = vsub.s32 0, %v353
    %v355 = vrot.slane %v227, %v354
    %v388 = vsub.f32 %v231, %v24
    %v389 = vsub.f32 %v231, %v25
    %v390 = vsub.f32 %v235, %v24
    %v391 = vsub.f32 %v235, %v25
    %v392 = vsub.f32 %v239, %v24
    %v393 = vsub.f32 %v239, %v25
    %v394 = vsub.f32 %v243, %v24
    %v395 = vsub.f32 %v243, %v25
    %v396 = vsub.f32 %v247, %v24
    %v397 = vsub.f32 %v247, %v25
    %v398 = vsub.f32 %v251, %v24
    %v399 = vsub.f32 %v251, %v25
    %v400 = vsub.f32 %v255, %v24
    %v401 = vsub.f32 %v255, %v25
    %v402 = vsub.f32 %v259, %v24
    %v403 = vsub.f32 %v259, %v25
    %v404 = vsub.f32 %v263, %v24
    %v405 = vsub.f32 %v263, %v25
    %v406 = vsub.f32 %v267, %v24
    %v407 = vsub.f32 %v267, %v25
    %v408 = vsub.f32 %v271, %v24
    %v409 = vsub.f32 %v271, %v25
    %v410 = vsub.f32 %v275, %v24
    %v411 = vsub.f32 %v275, %v25
    %v412 = vsub.f32 %v279, %v24
    %v413 = vsub.f32 %v279, %v25
    %v414 = vsub.f32 %v283, %v24
    %v415 = vsub.f32 %v283, %v25
    %v416 = vsub.f32 %v287, %v24
    %v417 = vsub.f32 %v287, %v25
    %v418 = vsub.f32 %v291, %v24
    %v419 = vsub.f32 %v291, %v25
    %v420 = vsub.f32 %v295, %v26
    %v421 = vsub.f32 %v295, %v27
    %v422 = vsub.f32 %v299, %v26
    %v423 = vsub.f32 %v299, %v27
    %v424 = vsub.f32 %v303, %v26
    %v425 = vsub.f32 %v303, %v27
    %v426 = vsub.f32 %v307, %v26
    %v427 = vsub.f32 %v307, %v27
    %v428 = vsub.f32 %v311, %v26
    %v429 = vsub.f32 %v311, %v27
    %v430 = vsub.f32 %v315, %v26
    %v431 = vsub.f32 %v315, %v27
    %v432 = vsub.f32 %v319, %v26
    %v433 = vsub.f32 %v319, %v27
    %v434 = vsub.f32 %v323, %v26
    %v435 = vsub.f32 %v323, %v27
    %v436 = vsub.f32 %v327, %v26
    %v437 = vsub.f32 %v327, %v27
    %v438 = vsub.f32 %v331, %v26
    %v439 = vsub.f32 %v331, %v27
    %v440 = vsub.f32 %v335, %v26
    %v441 = vsub.f32 %v335, %v27
    %v442 = vsub.f32 %v339, %v26
    %v443 = vsub.f32 %v339, %v27
    %v444 = vsub.f32 %v343, %v26
    %v445 = vsub.f32 %v343, %v27
    %v446 = vsub.f32 %v347, %v26
    %v447 = vsub.f32 %v347, %v27
    %v448 = vsub.f32 %v351, %v26
    %v449 = vsub.f32 %v351, %v27
    %v450 = vsub.f32 %v355, %v26
    %v451 = vsub.f32 %v355, %v27
    %v452 = vmul.f32 %v388, %v388
    %v453 = vmul.f32 %v389, %v389
    %v454 = vmul.f32 %v390, %v390
    %v455 = vmul.f32 %v391, %v391
    %v456 = vmul.f32 %v392, %v392
    %v457 = vmul.f32 %v393, %v393
    %v458 = vmul.f32 %v394, %v394
    %v459 = vmul.f32 %v395, %v395
    %v460 = vmul.f32 %v396, %v396
    %v461 = vmul.f32 %v397, %v397
    %v462 = vmul.f32 %v398, %v398
    %v463 = vmul.f32 %v399, %v399
    %v464 = vmul.f32 %v400, %v400
    %v465 = vmul.f32 %v401, %v401
    %v466 = vmul.f32 %v402, %v402
    %v467 = vmul.f32 %v403, %v403
    %v468 = vmul.f32 %v404, %v404
    %v469 = vmul.f32 %v405, %v405
    %v470 = vmul.f32 %v406, %v406
    %v471 = vmul.f32 %v407, %v407
    %v472 = vmul.f32 %v408, %v408
    %v473 = vmul.f32 %v409, %v409
    %v474 = vmul.f32 %v410, %v410
    %v475 = vmul.f32 %v411, %v411
    %v476 = vmul.f32 %v412, %v412
    %v477 = vmul.f32 %v413, %v413
    %v478 = vmul.f32 %v414, %v414
    %v479 = vmul.f32 %v415, %v415
    %v480 = vmul.f32 %v416, %v416
    %v481 = vmul.f32 %v417, %v417
    %v482 = vmul.f32 %v418, %v418
    %v483 = vmul.f32 %v419, %v419
    %v484 = vmul.f32 %v420, %v420
    %v485 = vmul.f32 %v421, %v421
    %v486 = vmul.f32 %v422, %v422
    %v487 = vmul.f32 %v423, %v423
    %v488 = vmul.f32 %v424, %v424
    %v489 = vmul.f32 %v425, %v425
    %v490 = vmul.f32 %v426, %v426
    %v491 = vmul.f32 %v427, %v427
    %v492 = vmul.f32 %v428, %v428
    %v493 = vmul.f32 %v429, %v429
    %v494 = vmul.f32 %v430, %v430
    %v495 = vmul.f32 %v431, %v431
    %v496 = vmul.f32 %v432, %v432
    %v497 = vmul.f32 %v433, %v433
    %v498 = vmul.f32 %v434, %v434
    %v499 = vmul.f32 %v435, %v435
    %v500 = vmul.f32 %v436, %v436
    %v501 = vmul.f32 %v437, %v437
    %v502 = vmul.f32 %v438, %v438
    %v503 = vmul.f32 %v439, %v439
    %v504 = vmul.f32 %v440, %v440
    %v505 = vmul.f32 %v441, %v441
    %v506 = vmul.f32 %v442, %v442
    %v507 = vmul.f32 %v443, %v443
    %v508 = vmul.f32 %v444, %v444
    %v509 = vmul.f32 %v445, %v445
    %v510 = vmul.f32 %v446, %v446
    %v511 = vmul.f32 %v447, %v447
    %v512 = vmul.f32 %v448, %v448
    %v513 = vmul.f32 %v449, %v449
    %v514 = vmul.f32 %v450, %v450
    %v515 = vmul.f32 %v451, %v451
    %v516 = vld [vmem:[%s3] sm:$0xff]
    %v517 = vld [vmem:[%s3 + $0x8] sm:$0xff]
    %v518 = vld [vmem:[%s3 + $0x10] sm:$0xff]
    %v519 = vld [vmem:[%s3 + $0x18] sm:$0xff]
    %v520 = vld [vmem:[%s4] sm:$0xff]
    %v521 = vld [vmem:[%s4 + $0x8] sm:$0xff]
    %v522 = vld [vmem:[%s4 + $0x10] sm:$0xff]
    %v523 = vld [vmem:[%s4 + $0x18] sm:$0xff]
    %v524 = vld [vmem:[%s5] sm:$0x1]
    %v525 = vld [vmem:[%s5 + $0x1] sm:$0x1]
    %v526 = vld [vmem:[%s5 + $0x2] sm:$0x1]
    %v527 = vld [vmem:[%s5 + $0x3] sm:$0x1]
    %v528 = vlaneseq
    %v529 = vshrl.u32 %v528, 7
    %v530 = vsub.s32 0, %v529
    %v531 = vrot.slane %v524, %v530
    %vm532 = vcmask 261120
    %v534 = vsel %vm532, %v452, 0
    %v537 = vsel %vm532, %v453, 0
    %v540 = vsel %vm532, %v454, 0
    %v543 = vsel %vm532, %v455, 0
    %v546 = vsel %vm532, %v456, 0
    %v549 = vsel %vm532, %v457, 0
    %v552 = vsel %vm532, %v458, 0
    %v555 = vsel %vm532, %v459, 0
    %v558 = vsel %vm532, %v460, 0
    %v561 = vsel %vm532, %v461, 0
    %v564 = vsel %vm532, %v462, 0
    %v567 = vsel %vm532, %v463, 0
    %v570 = vsel %vm532, %v464, 0
    %v573 = vsel %vm532, %v465, 0
    %v576 = vsel %vm532, %v466, 0
    %v579 = vsel %vm532, %v467, 0
    %v582 = vsel %vm532, %v468, 0
    %v585 = vsel %vm532, %v469, 0
    %v588 = vsel %vm532, %v470, 0
    %v591 = vsel %vm532, %v471, 0
    %v594 = vsel %vm532, %v472, 0
    %v597 = vsel %vm532, %v473, 0
    %v600 = vsel %vm532, %v474, 0
    %v603 = vsel %vm532, %v475, 0
    %v606 = vsel %vm532, %v476, 0
    %v609 = vsel %vm532, %v477, 0
    %v612 = vsel %vm532, %v478, 0
    %v615 = vsel %vm532, %v479, 0
    %v618 = vsel %vm532, %v480, 0
    %v621 = vsel %vm532, %v481, 0
    %v624 = vsel %vm532, %v482, 0
    %v627 = vsel %vm532, %v483, 0
    %v630 = vsel %vm532, %v484, 0
    %v633 = vsel %vm532, %v485, 0
    %v636 = vsel %vm532, %v486, 0
    %v639 = vsel %vm532, %v487, 0
    %v642 = vsel %vm532, %v488, 0
    %v645 = vsel %vm532, %v489, 0
    %v648 = vsel %vm532, %v490, 0
    %v651 = vsel %vm532, %v491, 0
    %v654 = vsel %vm532, %v492, 0
    %v657 = vsel %vm532, %v493, 0
    %v660 = vsel %vm532, %v494, 0
    %v663 = vsel %vm532, %v495, 0
    %v666 = vsel %vm532, %v496, 0
    %v669 = vsel %vm532, %v497, 0
    %v672 = vsel %vm532, %v498, 0
    %v675 = vsel %vm532, %v499, 0
    %v678 = vsel %vm532, %v500, 0
    %v681 = vsel %vm532, %v501, 0
    %v684 = vsel %vm532, %v502, 0
    %v687 = vsel %vm532, %v503, 0
    %v690 = vsel %vm532, %v504, 0
    %v693 = vsel %vm532, %v505, 0
    %v696 = vsel %vm532, %v506, 0
    %v699 = vsel %vm532, %v507, 0
    %v702 = vsel %vm532, %v508, 0
    %v705 = vsel %vm532, %v509, 0
    %v708 = vsel %vm532, %v510, 0
    %v711 = vsel %vm532, %v511, 0
    %v714 = vsel %vm532, %v512, 0
    %v717 = vsel %vm532, %v513, 0
    %v720 = vsel %vm532, %v514, 0
    %v723 = vsel %vm532, %v515, 0
    %725 = vmatprep.subr.mxu0 0.0
    %726 = vmatpush1.msra.mxu0 %v516
    %727 = vmatprep.subr.mxu0 0.0
    %728 = vmatpush1.msra.mxu0 %v517
    %729 = vmatprep.subr.mxu0 0.0
    %730 = vmatpush1.msra.mxu0 %v518
    %731 = vmatprep.subr.mxu0 0.0
    %732 = vmatpush1.msra.mxu0 %v519
    %733 = vmatprep.subr.mxu0 0.0
    %734 = vmatpush1.msra.mxu0 0.0
    %735 = vmatprep.subr.mxu0 0.0
    %736 = vmatpush1.msra.mxu0 0.0
    %737 = vmatprep.subr.mxu0 0.0
    %738 = vmatpush1.msra.mxu0 0.0
    %739 = vmatprep.subr.mxu0 0.0
    %740 = vmatpush1.msra.mxu0 0.0
    %741 = vmatprep.subr.mxu0 0.0
    %742 = vmatpush1.msra.mxu0 0.0
    %743 = vmatprep.subr.mxu0 0.0
    %744 = vmatpush1.msra.mxu0 0.0
    %745 = vmatprep.subr.mxu0 0.0
    %746 = vmatpush1.msra.mxu0 0.0
    %747 = vmatprep.subr.mxu0 0.0
    %748 = vmatpush1.msra.mxu0 0.0
    %749 = vmatprep.subr.mxu0 0.0
    %750 = vmatpush1.msra.mxu0 0.0
    %751 = vmatprep.subr.mxu0 0.0
    %752 = vmatpush1.msra.mxu0 0.0
    %753 = vmatprep.subr.mxu0 0.0
    %754 = vmatpush1.msra.mxu0 0.0
    %755 = vmatprep.subr.mxu0 0.0
    %756 = vmatpush1.msra.mxu0 0.0
    %757 = vmatprep.subr.mxu0 0.0
    %758 = vmatpush1.msra.mxu0 0.0
    %759 = vmatprep.subr.mxu0 0.0
    %760 = vmatpush1.msra.mxu0 0.0
    %761 = vmatprep.subr.mxu0 0.0
    %762 = vmatpush1.msra.mxu0 0.0
    %763 = vmatprep.subr.mxu0 0.0
    %764 = vmatpush1.msra.mxu0 0.0
    %765 = vmatprep.subr.mxu0 0.0
    %766 = vmatpush1.msra.mxu0 0.0
    %767 = vmatprep.subr.mxu0 0.0
    %768 = vmatpush1.msra.mxu0 0.0
    %769 = vmatprep.subr.mxu0 0.0
    %770 = vmatpush1.msra.mxu0 0.0
    %771 = vmatprep.subr.mxu0 0.0
    %772 = vmatpush1.msra.mxu0 0.0
    %773 = vmatprep.subr.mxu0 0.0
    %774 = vmatpush1.msra.mxu0 0.0
    %775 = vmatprep.subr.mxu0 0.0
    %776 = vmatpush1.msra.mxu0 0.0
    %777 = vmatprep.subr.mxu0 0.0
    %778 = vmatpush1.msra.mxu0 0.0
    %779 = vmatprep.subr.mxu0 0.0
    %780 = vmatpush1.msra.mxu0 0.0
    %781 = vmatprep.subr.mxu0 0.0
    %782 = vmatpush1.msra.mxu0 0.0
    %783 = vmatprep.subr.mxu0 0.0
    %784 = vmatpush1.msra.mxu0 0.0
    %785 = vmatprep.subr.mxu0 0.0
    %786 = vmatpush1.msra.mxu0 0.0
    %787 = vmatprep.subr.mxu0 0.0
    %788 = vmatpush1.msra.mxu0 0.0
    %789 = vmatprep.mubr.f32.mxu0 0.0
    %790 = vmatmul.mubr.f32.gmra.mrb[0].mxu0 %v534
    %v791 = vpop.f32.mrb[0].mxu0
    %v792 = vadd.f32 %v531, %v791
    %v793 = vpop.f32.mrb[0].mxu0
    %794 = vmatprep.mubr.f32.mxu0 0.0
    %795 = vmatmul.mubr.f32.gmra.mrb[0].mxu0 %v537
    %v796 = vpop.f32.mrb[0].mxu0
    %v797 = vadd.f32 %v531, %v796
    %v798 = vpop.f32.mrb[0].mxu0
    %799 = vmatprep.mubr.f32.mxu0 0.0
    %800 = vmatmul.mubr.f32.gmra.mrb[0].mxu0 %v540
    %v801 = vpop.f32.mrb[0].mxu0
    %v802 = vadd.f32 %v531, %v801
    %v803 = vpop.f32.mrb[0].mxu0
    %804 = vmatprep.mubr.f32.mxu0 0.0
    %805 = vmatmul.mubr.f32.gmra.mrb[0].mxu0 %v543
    %v806 = vpop.f32.mrb[0].mxu0
    %v807 = vadd.f32 %v531, %v806
    %v808 = vpop.f32.mrb[0].mxu0
    %809 = vmatprep.mubr.f32.mxu0 0.0
    %810 = vmatmul.mubr.f32.gmra.mrb[0].mxu0 %v546
    %v811 = vpop.f32.mrb[0].mxu0
    %v812 = vadd.f32 %v531, %v811
    %v813 = vpop.f32.mrb[0].mxu0
    %814 = vmatprep.mubr.f32.mxu0 0.0
    %815 = vmatmul.mubr.f32.gmra.mrb[0].mxu0 %v549
    %v816 = vpop.f32.mrb[0].mxu0
    %v817 = vadd.f32 %v531, %v816
    %v818 = vpop.f32.mrb[0].mxu0
    %819 = vmatprep.mubr.f32.mxu0 0.0
    %820 = vmatmul.mubr.f32.gmra.mrb[0].mxu0 %v552
    %v821 = vpop.f32.mrb[0].mxu0
    %v822 = vadd.f32 %v531, %v821
    %v823 = vpop.f32.mrb[0].mxu0
    %824 = vmatprep.mubr.f32.mxu0 0.0
    %825 = vmatmul.mubr.f32.gmra.mrb[0].mxu0 %v555
    %v826 = vpop.f32.mrb[0].mxu0
    %v827 = vadd.f32 %v531, %v826
    %v828 = vpop.f32.mrb[0].mxu0
    %829 = vmatprep.mubr.f32.mxu0 0.0
    %830 = vmatmul.mubr.f32.gmra.mrb[0].mxu0 %v558
    %v831 = vpop.f32.mrb[0].mxu0
    %v832 = vadd.f32 %v531, %v831
    %v833 = vpop.f32.mrb[0].mxu0
    %834 = vmatprep.mubr.f32.mxu0 0.0
    %835 = vmatmul.mubr.f32.gmra.mrb[0].mxu0 %v561
    %v836 = vpop.f32.mrb[0].mxu0
    %v837 = vadd.f32 %v531, %v836
    %v838 = vpop.f32.mrb[0].mxu0
    %839 = vmatprep.mubr.f32.mxu0 0.0
    %840 = vmatmul.mubr.f32.gmra.mrb[0].mxu0 %v564
    %v841 = vpop.f32.mrb[0].mxu0
    %v842 = vadd.f32 %v531, %v841
    %v843 = vpop.f32.mrb[0].mxu0
    %844 = vmatprep.mubr.f32.mxu0 0.0
    %845 = vmatmul.mubr.f32.gmra.mrb[0].mxu0 %v567
    %v846 = vpop.f32.mrb[0].mxu0
    %v847 = vadd.f32 %v531, %v846
    %v848 = vpop.f32.mrb[0].mxu0
    %849 = vmatprep.mubr.f32.mxu0 0.0
    %850 = vmatmul.mubr.f32.gmra.mrb[0].mxu0 %v570
    %v851 = vpop.f32.mrb[0].mxu0
    %v852 = vadd.f32 %v531, %v851
    %v853 = vpop.f32.mrb[0].mxu0
    %854 = vmatprep.mubr.f32.mxu0 0.0
    %855 = vmatmul.mubr.f32.gmra.mrb[0].mxu0 %v573
    %v856 = vpop.f32.mrb[0].mxu0
    %v857 = vadd.f32 %v531, %v856
    %v858 = vpop.f32.mrb[0].mxu0
    %859 = vmatprep.mubr.f32.mxu0 0.0
    %860 = vmatmul.mubr.f32.gmra.mrb[0].mxu0 %v576
    %v861 = vpop.f32.mrb[0].mxu0
    %v862 = vadd.f32 %v531, %v861
    %v863 = vpop.f32.mrb[0].mxu0
    %864 = vmatprep.mubr.f32.mxu0 0.0
    %865 = vmatmul.mubr.f32.gmra.mrb[0].mxu0 %v579
    %v866 = vpop.f32.mrb[0].mxu0
    %v867 = vadd.f32 %v531, %v866
    %v868 = vpop.f32.mrb[0].mxu0
    %869 = vmatprep.mubr.f32.mxu0 0.0
    %870 = vmatmul.mubr.f32.gmra.mrb[0].mxu0 %v582
    %v871 = vpop.f32.mrb[0].mxu0
    %v872 = vadd.f32 %v531, %v871
    %v873 = vpop.f32.mrb[0].mxu0
    %874 = vmatprep.mubr.f32.mxu0 0.0
    %875 = vmatmul.mubr.f32.gmra.mrb[0].mxu0 %v585
    %v876 = vpop.f32.mrb[0].mxu0
    %v877 = vadd.f32 %v531, %v876
    %v878 = vpop.f32.mrb[0].mxu0
    %879 = vmatprep.mubr.f32.mxu0 0.0
    %880 = vmatmul.mubr.f32.gmra.mrb[0].mxu0 %v588
    %v881 = vpop.f32.mrb[0].mxu0
    %v882 = vadd.f32 %v531, %v881
    %v883 = vpop.f32.mrb[0].mxu0
    %884 = vmatprep.mubr.f32.mxu0 0.0
    %885 = vmatmul.mubr.f32.gmra.mrb[0].mxu0 %v591
    %v886 = vpop.f32.mrb[0].mxu0
    %v887 = vadd.f32 %v531, %v886
    %v888 = vpop.f32.mrb[0].mxu0
    %889 = vmatprep.mubr.f32.mxu0 0.0
    %890 = vmatmul.mubr.f32.gmra.mrb[0].mxu0 %v594
    %v891 = vpop.f32.mrb[0].mxu0
    %v892 = vadd.f32 %v531, %v891
    %v893 = vpop.f32.mrb[0].mxu0
    %894 = vmatprep.mubr.f32.mxu0 0.0
    %895 = vmatmul.mubr.f32.gmra.mrb[0].mxu0 %v597
    %v896 = vpop.f32.mrb[0].mxu0
    %v897 = vadd.f32 %v531, %v896
    %v898 = vpop.f32.mrb[0].mxu0
    %899 = vmatprep.mubr.f32.mxu0 0.0
    %900 = vmatmul.mubr.f32.gmra.mrb[0].mxu0 %v600
    %v901 = vpop.f32.mrb[0].mxu0
    %v902 = vadd.f32 %v531, %v901
    %v903 = vpop.f32.mrb[0].mxu0
    %904 = vmatprep.mubr.f32.mxu0 0.0
    %905 = vmatmul.mubr.f32.gmra.mrb[0].mxu0 %v603
    %v906 = vpop.f32.mrb[0].mxu0
    %v907 = vadd.f32 %v531, %v906
    %v908 = vpop.f32.mrb[0].mxu0
    %909 = vmatprep.mubr.f32.mxu0 0.0
    %910 = vmatmul.mubr.f32.gmra.mrb[0].mxu0 %v606
    %v911 = vpop.f32.mrb[0].mxu0
    %v912 = vadd.f32 %v531, %v911
    %v913 = vpop.f32.mrb[0].mxu0
    %914 = vmatprep.mubr.f32.mxu0 0.0
    %915 = vmatmul.mubr.f32.gmra.mrb[0].mxu0 %v609
    %v916 = vpop.f32.mrb[0].mxu0
    %v917 = vadd.f32 %v531, %v916
    %v918 = vpop.f32.mrb[0].mxu0
    %919 = vmatprep.mubr.f32.mxu0 0.0
    %920 = vmatmul.mubr.f32.gmra.mrb[0].mxu0 %v612
    %v921 = vpop.f32.mrb[0].mxu0
    %v922 = vadd.f32 %v531, %v921
    %v923 = vpop.f32.mrb[0].mxu0
    %924 = vmatprep.mubr.f32.mxu0 0.0
    %925 = vmatmul.mubr.f32.gmra.mrb[0].mxu0 %v615
    %v926 = vpop.f32.mrb[0].mxu0
    %v927 = vadd.f32 %v531, %v926
    %v928 = vpop.f32.mrb[0].mxu0
    %929 = vmatprep.mubr.f32.mxu0 0.0
    %930 = vmatmul.mubr.f32.gmra.mrb[0].mxu0 %v618
    %v931 = vpop.f32.mrb[0].mxu0
    %v932 = vadd.f32 %v531, %v931
    %v933 = vpop.f32.mrb[0].mxu0
    %934 = vmatprep.mubr.f32.mxu0 0.0
    %935 = vmatmul.mubr.f32.gmra.mrb[0].mxu0 %v621
    %v936 = vpop.f32.mrb[0].mxu0
    %v937 = vadd.f32 %v531, %v936
    %v938 = vpop.f32.mrb[0].mxu0
    %939 = vmatprep.mubr.f32.mxu0 0.0
    %940 = vmatmul.mubr.f32.gmra.mrb[0].mxu0 %v624
    %v941 = vpop.f32.mrb[0].mxu0
    %v942 = vadd.f32 %v531, %v941
    %v943 = vpop.f32.mrb[0].mxu0
    %944 = vmatprep.mubr.f32.mxu0 0.0
    %945 = vmatmul.mubr.f32.gmra.mrb[0].mxu0 %v627
    %v946 = vpop.f32.mrb[0].mxu0
    %v947 = vadd.f32 %v531, %v946
    %v948 = vpop.f32.mrb[0].mxu0
    %949 = vmatprep.mubr.f32.mxu0 0.0
    %950 = vmatmul.mubr.f32.gmra.mrb[0].mxu0 %v630
    %v951 = vpop.f32.mrb[0].mxu0
    %v952 = vadd.f32 %v531, %v951
    %v953 = vpop.f32.mrb[0].mxu0
    %954 = vmatprep.mubr.f32.mxu0 0.0
    %955 = vmatmul.mubr.f32.gmra.mrb[0].mxu0 %v633
    %v956 = vpop.f32.mrb[0].mxu0
    %v957 = vadd.f32 %v531, %v956
    %v958 = vpop.f32.mrb[0].mxu0
    %959 = vmatprep.mubr.f32.mxu0 0.0
    %960 = vmatmul.mubr.f32.gmra.mrb[0].mxu0 %v636
    %v961 = vpop.f32.mrb[0].mxu0
    %v962 = vadd.f32 %v531, %v961
    %v963 = vpop.f32.mrb[0].mxu0
    %964 = vmatprep.mubr.f32.mxu0 0.0
    %965 = vmatmul.mubr.f32.gmra.mrb[0].mxu0 %v639
    %v966 = vpop.f32.mrb[0].mxu0
    %v967 = vadd.f32 %v531, %v966
    %v968 = vpop.f32.mrb[0].mxu0
    %969 = vmatprep.mubr.f32.mxu0 0.0
    %970 = vmatmul.mubr.f32.gmra.mrb[0].mxu0 %v642
    %v971 = vpop.f32.mrb[0].mxu0
    %v972 = vadd.f32 %v531, %v971
    %v973 = vpop.f32.mrb[0].mxu0
    %974 = vmatprep.mubr.f32.mxu0 0.0
    %975 = vmatmul.mubr.f32.gmra.mrb[0].mxu0 %v645
    %v976 = vpop.f32.mrb[0].mxu0
    %v977 = vadd.f32 %v531, %v976
    %v978 = vpop.f32.mrb[0].mxu0
    %979 = vmatprep.mubr.f32.mxu0 0.0
    %980 = vmatmul.mubr.f32.gmra.mrb[0].mxu0 %v648
    %v981 = vpop.f32.mrb[0].mxu0
    %v982 = vadd.f32 %v531, %v981
    %v983 = vpop.f32.mrb[0].mxu0
    %984 = vmatprep.mubr.f32.mxu0 0.0
    %985 = vmatmul.mubr.f32.gmra.mrb[0].mxu0 %v651
    %v986 = vpop.f32.mrb[0].mxu0
    %v987 = vadd.f32 %v531, %v986
    %v988 = vpop.f32.mrb[0].mxu0
    %989 = vmatprep.mubr.f32.mxu0 0.0
    %990 = vmatmul.mubr.f32.gmra.mrb[0].mxu0 %v654
    %v991 = vpop.f32.mrb[0].mxu0
    %v992 = vadd.f32 %v531, %v991
    %v993 = vpop.f32.mrb[0].mxu0
    %994 = vmatprep.mubr.f32.mxu0 0.0
    %995 = vmatmul.mubr.f32.gmra.mrb[0].mxu0 %v657
    %v996 = vpop.f32.mrb[0].mxu0
    %v997 = vadd.f32 %v531, %v996
    %v998 = vpop.f32.mrb[0].mxu0
    %999 = vmatprep.mubr.f32.mxu0 0.0
    %1000 = vmatmul.mubr.f32.gmra.mrb[0].mxu0 %v660
    %v1001 = vpop.f32.mrb[0].mxu0
    %v1002 = vadd.f32 %v531, %v1001
    %v1003 = vpop.f32.mrb[0].mxu0
    %1004 = vmatprep.mubr.f32.mxu0 0.0
    %1005 = vmatmul.mubr.f32.gmra.mrb[0].mxu0 %v663
    %v1006 = vpop.f32.mrb[0].mxu0
    %v1007 = vadd.f32 %v531, %v1006
    %v1008 = vpop.f32.mrb[0].mxu0
    %1009 = vmatprep.mubr.f32.mxu0 0.0
    %1010 = vmatmul.mubr.f32.gmra.mrb[0].mxu0 %v666
    %v1011 = vpop.f32.mrb[0].mxu0
    %v1012 = vadd.f32 %v531, %v1011
    %v1013 = vpop.f32.mrb[0].mxu0
    %1014 = vmatprep.mubr.f32.mxu0 0.0
    %1015 = vmatmul.mubr.f32.gmra.mrb[0].mxu0 %v669
    %v1016 = vpop.f32.mrb[0].mxu0
    %v1017 = vadd.f32 %v531, %v1016
    %v1018 = vpop.f32.mrb[0].mxu0
    %1019 = vmatprep.mubr.f32.mxu0 0.0
    %1020 = vmatmul.mubr.f32.gmra.mrb[0].mxu0 %v672
    %v1021 = vpop.f32.mrb[0].mxu0
    %v1022 = vadd.f32 %v531, %v1021
    %v1023 = vpop.f32.mrb[0].mxu0
    %1024 = vmatprep.mubr.f32.mxu0 0.0
    %1025 = vmatmul.mubr.f32.gmra.mrb[0].mxu0 %v675
    %v1026 = vpop.f32.mrb[0].mxu0
    %v1027 = vadd.f32 %v531, %v1026
    %v1028 = vpop.f32.mrb[0].mxu0
    %1029 = vmatprep.mubr.f32.mxu0 0.0
    %1030 = vmatmul.mubr.f32.gmra.mrb[0].mxu0 %v678
    %v1031 = vpop.f32.mrb[0].mxu0
    %v1032 = vadd.f32 %v531, %v1031
    %v1033 = vpop.f32.mrb[0].mxu0
    %1034 = vmatprep.mubr.f32.mxu0 0.0
    %1035 = vmatmul.mubr.f32.gmra.mrb[0].mxu0 %v681
    %v1036 = vpop.f32.mrb[0].mxu0
    %v1037 = vadd.f32 %v531, %v1036
    %v1038 = vpop.f32.mrb[0].mxu0
    %1039 = vmatprep.mubr.f32.mxu0 0.0
    %1040 = vmatmul.mubr.f32.gmra.mrb[0].mxu0 %v684
    %v1041 = vpop.f32.mrb[0].mxu0
    %v1042 = vadd.f32 %v531, %v1041
    %v1043 = vpop.f32.mrb[0].mxu0
    %1044 = vmatprep.mubr.f32.mxu0 0.0
    %1045 = vmatmul.mubr.f32.gmra.mrb[0].mxu0 %v687
    %v1046 = vpop.f32.mrb[0].mxu0
    %v1047 = vadd.f32 %v531, %v1046
    %v1048 = vpop.f32.mrb[0].mxu0
    %1049 = vmatprep.mubr.f32.mxu0 0.0
    %1050 = vmatmul.mubr.f32.gmra.mrb[0].mxu0 %v690
    %v1051 = vpop.f32.mrb[0].mxu0
    %v1052 = vadd.f32 %v531, %v1051
    %v1053 = vpop.f32.mrb[0].mxu0
    %1054 = vmatprep.mubr.f32.mxu0 0.0
    %1055 = vmatmul.mubr.f32.gmra.mrb[0].mxu0 %v693
    %v1056 = vpop.f32.mrb[0].mxu0
    %v1057 = vadd.f32 %v531, %v1056
    %v1058 = vpop.f32.mrb[0].mxu0
    %1059 = vmatprep.mubr.f32.mxu0 0.0
    %1060 = vmatmul.mubr.f32.gmra.mrb[0].mxu0 %v696
    %v1061 = vpop.f32.mrb[0].mxu0
    %v1062 = vadd.f32 %v531, %v1061
    %v1063 = vpop.f32.mrb[0].mxu0
    %1064 = vmatprep.mubr.f32.mxu0 0.0
    %1065 = vmatmul.mubr.f32.gmra.mrb[0].mxu0 %v699
    %v1066 = vpop.f32.mrb[0].mxu0
    %v1067 = vadd.f32 %v531, %v1066
    %v1068 = vpop.f32.mrb[0].mxu0
    %1069 = vmatprep.mubr.f32.mxu0 0.0
    %1070 = vmatmul.mubr.f32.gmra.mrb[0].mxu0 %v702
    %v1071 = vpop.f32.mrb[0].mxu0
    %v1072 = vadd.f32 %v531, %v1071
    %v1073 = vpop.f32.mrb[0].mxu0
    %1074 = vmatprep.mubr.f32.mxu0 0.0
    %1075 = vmatmul.mubr.f32.gmra.mrb[0].mxu0 %v705
    %v1076 = vpop.f32.mrb[0].mxu0
    %v1077 = vadd.f32 %v531, %v1076
    %v1078 = vpop.f32.mrb[0].mxu0
    %1079 = vmatprep.mubr.f32.mxu0 0.0
    %1080 = vmatmul.mubr.f32.gmra.mrb[0].mxu0 %v708
    %v1081 = vpop.f32.mrb[0].mxu0
    %v1082 = vadd.f32 %v531, %v1081
    %v1083 = vpop.f32.mrb[0].mxu0
    %1084 = vmatprep.mubr.f32.mxu0 0.0
    %1085 = vmatmul.mubr.f32.gmra.mrb[0].mxu0 %v711
    %v1086 = vpop.f32.mrb[0].mxu0
    %v1087 = vadd.f32 %v531, %v1086
    %v1088 = vpop.f32.mrb[0].mxu0
    %1089 = vmatprep.mubr.f32.mxu0 0.0
    %1090 = vmatmul.mubr.f32.gmra.mrb[0].mxu0 %v714
    %v1091 = vpop.f32.mrb[0].mxu0
    %v1092 = vadd.f32 %v531, %v1091
    %v1093 = vpop.f32.mrb[0].mxu0
    %1094 = vmatprep.mubr.f32.mxu0 0.0
    %1095 = vmatmul.mubr.f32.gmra.mrb[0].mxu0 %v717
    %v1096 = vpop.f32.mrb[0].mxu0
    %v1097 = vadd.f32 %v531, %v1096
    %v1098 = vpop.f32.mrb[0].mxu0
    %1099 = vmatprep.mubr.f32.mxu0 0.0
    %1100 = vmatmul.mubr.f32.gmra.mrb[0].mxu0 %v720
    %v1101 = vpop.f32.mrb[0].mxu0
    %v1102 = vadd.f32 %v531, %v1101
    %v1103 = vpop.f32.mrb[0].mxu0
    %1104 = vmatprep.mubr.f32.mxu0 0.0
    %1105 = vmatmul.mubr.f32.gmra.mrb[0].mxu0 %v723
    %v1106 = vpop.f32.mrb[0].mxu0
    %v1107 = vadd.f32 %v531, %v1106
    %v1108 = vpop.f32.mrb[0].mxu0
    %1109 = vdwg.mxu0
    %vm1110 = vcmp.gt.f32.partialorder %v792, 0.0
    %vm1111 = vcmp.gt.f32.partialorder %v797, 0.0
    %vm1112 = vcmp.gt.f32.partialorder %v802, 0.0
    %vm1113 = vcmp.gt.f32.partialorder %v807, 0.0
    %vm1114 = vcmp.gt.f32.partialorder %v812, 0.0
    %vm1115 = vcmp.gt.f32.partialorder %v817, 0.0
    %vm1116 = vcmp.gt.f32.partialorder %v822, 0.0
    %vm1117 = vcmp.gt.f32.partialorder %v827, 0.0
    %vm1118 = vcmp.gt.f32.partialorder %v832, 0.0
    %vm1119 = vcmp.gt.f32.partialorder %v837, 0.0
    %vm1120 = vcmp.gt.f32.partialorder %v842, 0.0
    %vm1121 = vcmp.gt.f32.partialorder %v847, 0.0
    %vm1122 = vcmp.gt.f32.partialorder %v852, 0.0
    %vm1123 = vcmp.gt.f32.partialorder %v857, 0.0
    %vm1124 = vcmp.gt.f32.partialorder %v862, 0.0
    %vm1125 = vcmp.gt.f32.partialorder %v867, 0.0
    %vm1126 = vcmp.gt.f32.partialorder %v872, 0.0
    %vm1127 = vcmp.gt.f32.partialorder %v877, 0.0
    %vm1128 = vcmp.gt.f32.partialorder %v882, 0.0
    %vm1129 = vcmp.gt.f32.partialorder %v887, 0.0
    %vm1130 = vcmp.gt.f32.partialorder %v892, 0.0
    %vm1131 = vcmp.gt.f32.partialorder %v897, 0.0
    %vm1132 = vcmp.gt.f32.partialorder %v902, 0.0
    %vm1133 = vcmp.gt.f32.partialorder %v907, 0.0
    %vm1134 = vcmp.gt.f32.partialorder %v912, 0.0
    %vm1135 = vcmp.gt.f32.partialorder %v917, 0.0
    %vm1136 = vcmp.gt.f32.partialorder %v922, 0.0
    %vm1137 = vcmp.gt.f32.partialorder %v927, 0.0
    %vm1138 = vcmp.gt.f32.partialorder %v932, 0.0
    %vm1139 = vcmp.gt.f32.partialorder %v937, 0.0
    %vm1140 = vcmp.gt.f32.partialorder %v942, 0.0
    %vm1141 = vcmp.gt.f32.partialorder %v947, 0.0
    %vm1142 = vcmp.gt.f32.partialorder %v952, 0.0
    %vm1143 = vcmp.gt.f32.partialorder %v957, 0.0
    %vm1144 = vcmp.gt.f32.partialorder %v962, 0.0
    %vm1145 = vcmp.gt.f32.partialorder %v967, 0.0
    %vm1146 = vcmp.gt.f32.partialorder %v972, 0.0
    %vm1147 = vcmp.gt.f32.partialorder %v977, 0.0
    %vm1148 = vcmp.gt.f32.partialorder %v982, 0.0
    %vm1149 = vcmp.gt.f32.partialorder %v987, 0.0
    %vm1150 = vcmp.gt.f32.partialorder %v992, 0.0
    %vm1151 = vcmp.gt.f32.partialorder %v997, 0.0
    %vm1152 = vcmp.gt.f32.partialorder %v1002, 0.0
    %vm1153 = vcmp.gt.f32.partialorder %v1007, 0.0
    %vm1154 = vcmp.gt.f32.partialorder %v1012, 0.0
    %vm1155 = vcmp.gt.f32.partialorder %v1017, 0.0
    %vm1156 = vcmp.gt.f32.partialorder %v1022, 0.0
    %vm1157 = vcmp.gt.f32.partialorder %v1027, 0.0
    %vm1158 = vcmp.gt.f32.partialorder %v1032, 0.0
    %vm1159 = vcmp.gt.f32.partialorder %v1037, 0.0
    %vm1160 = vcmp.gt.f32.partialorder %v1042, 0.0
    %vm1161 = vcmp.gt.f32.partialorder %v1047, 0.0
    %vm1162 = vcmp.gt.f32.partialorder %v1052, 0.0
    %vm1163 = vcmp.gt.f32.partialorder %v1057, 0.0
    %vm1164 = vcmp.gt.f32.partialorder %v1062, 0.0
    %vm1165 = vcmp.gt.f32.partialorder %v1067, 0.0
    %vm1166 = vcmp.gt.f32.partialorder %v1072, 0.0
    %vm1167 = vcmp.gt.f32.partialorder %v1077, 0.0
    %vm1168 = vcmp.gt.f32.partialorder %v1082, 0.0
    %vm1169 = vcmp.gt.f32.partialorder %v1087, 0.0
    %vm1170 = vcmp.gt.f32.partialorder %v1092, 0.0
    %vm1171 = vcmp.gt.f32.partialorder %v1097, 0.0
    %vm1172 = vcmp.gt.f32.partialorder %v1102, 0.0
    %vm1173 = vcmp.gt.f32.partialorder %v1107, 0.0
    %v1174 = vmul.f32 %v792, 0.01
    %v1175 = vmul.f32 %v797, 0.01
    %v1176 = vmul.f32 %v802, 0.01
    %v1177 = vmul.f32 %v807, 0.01
    %v1178 = vmul.f32 %v812, 0.01
    %v1179 = vmul.f32 %v817, 0.01
    %v1180 = vmul.f32 %v822, 0.01
    %v1181 = vmul.f32 %v827, 0.01
    %v1182 = vmul.f32 %v832, 0.01
    %v1183 = vmul.f32 %v837, 0.01
    %v1184 = vmul.f32 %v842, 0.01
    %v1185 = vmul.f32 %v847, 0.01
    %v1186 = vmul.f32 %v852, 0.01
    %v1187 = vmul.f32 %v857, 0.01
    %v1188 = vmul.f32 %v862, 0.01
    %v1189 = vmul.f32 %v867, 0.01
    %v1190 = vmul.f32 %v872, 0.01
    %v1191 = vmul.f32 %v877, 0.01
    %v1192 = vmul.f32 %v882, 0.01
    %v1193 = vmul.f32 %v887, 0.01
    %v1194 = vmul.f32 %v892, 0.01
    %v1195 = vmul.f32 %v897, 0.01
    %v1196 = vmul.f32 %v902, 0.01
    %v1197 = vmul.f32 %v907, 0.01
    %v1198 = vmul.f32 %v912, 0.01
    %v1199 = vmul.f32 %v917, 0.01
    %v1200 = vmul.f32 %v922, 0.01
    %v1201 = vmul.f32 %v927, 0.01
    %v1202 = vmul.f32 %v932, 0.01
    %v1203 = vmul.f32 %v937, 0.01
    %v1204 = vmul.f32 %v942, 0.01
    %v1205 = vmul.f32 %v947, 0.01
    %v1206 = vmul.f32 %v952, 0.01
    %v1207 = vmul.f32 %v957, 0.01
    %v1208 = vmul.f32 %v962, 0.01
    %v1209 = vmul.f32 %v967, 0.01
    %v1210 = vmul.f32 %v972, 0.01
    %v1211 = vmul.f32 %v977, 0.01
    %v1212 = vmul.f32 %v982, 0.01
    %v1213 = vmul.f32 %v987, 0.01
    %v1214 = vmul.f32 %v992, 0.01
    %v1215 = vmul.f32 %v997, 0.01
    %v1216 = vmul.f32 %v1002, 0.01
    %v1217 = vmul.f32 %v1007, 0.01
    %v1218 = vmul.f32 %v1012, 0.01
    %v1219 = vmul.f32 %v1017, 0.01
    %v1220 = vmul.f32 %v1022, 0.01
    %v1221 = vmul.f32 %v1027, 0.01
    %v1222 = vmul.f32 %v1032, 0.01
    %v1223 = vmul.f32 %v1037, 0.01
    %v1224 = vmul.f32 %v1042, 0.01
    %v1225 = vmul.f32 %v1047, 0.01
    %v1226 = vmul.f32 %v1052, 0.01
    %v1227 = vmul.f32 %v1057, 0.01
    %v1228 = vmul.f32 %v1062, 0.01
    %v1229 = vmul.f32 %v1067, 0.01
    %v1230 = vmul.f32 %v1072, 0.01
    %v1231 = vmul.f32 %v1077, 0.01
    %v1232 = vmul.f32 %v1082, 0.01
    %v1233 = vmul.f32 %v1087, 0.01
    %v1234 = vmul.f32 %v1092, 0.01
    %v1235 = vmul.f32 %v1097, 0.01
    %v1236 = vmul.f32 %v1102, 0.01
    %v1237 = vmul.f32 %v1107, 0.01
    %v1238 = vsel %vm1110, %v792, %v1174
    %v1239 = vsel %vm1111, %v797, %v1175
    %v1240 = vsel %vm1112, %v802, %v1176
    %v1241 = vsel %vm1113, %v807, %v1177
    %v1242 = vsel %vm1114, %v812, %v1178
    %v1243 = vsel %vm1115, %v817, %v1179
    %v1244 = vsel %vm1116, %v822, %v1180
    %v1245 = vsel %vm1117, %v827, %v1181
    %v1246 = vsel %vm1118, %v832, %v1182
    %v1247 = vsel %vm1119, %v837, %v1183
    %v1248 = vsel %vm1120, %v842, %v1184
    %v1249 = vsel %vm1121, %v847, %v1185
    %v1250 = vsel %vm1122, %v852, %v1186
    %v1251 = vsel %vm1123, %v857, %v1187
    %v1252 = vsel %vm1124, %v862, %v1188
    %v1253 = vsel %vm1125, %v867, %v1189
    %v1254 = vsel %vm1126, %v872, %v1190
    %v1255 = vsel %vm1127, %v877, %v1191
    %v1256 = vsel %vm1128, %v882, %v1192
    %v1257 = vsel %vm1129, %v887, %v1193
    %v1258 = vsel %vm1130, %v892, %v1194
    %v1259 = vsel %vm1131, %v897, %v1195
    %v1260 = vsel %vm1132, %v902, %v1196
    %v1261 = vsel %vm1133, %v907, %v1197
    %v1262 = vsel %vm1134, %v912, %v1198
    %v1263 = vsel %vm1135, %v917, %v1199
    %v1264 = vsel %vm1136, %v922, %v1200
    %v1265 = vsel %vm1137, %v927, %v1201
    %v1266 = vsel %vm1138, %v932, %v1202
    %v1267 = vsel %vm1139, %v937, %v1203
    %v1268 = vsel %vm1140, %v942, %v1204
    %v1269 = vsel %vm1141, %v947, %v1205
    %v1270 = vsel %vm1142, %v952, %v1206
    %v1271 = vsel %vm1143, %v957, %v1207
    %v1272 = vsel %vm1144, %v962, %v1208
    %v1273 = vsel %vm1145, %v967, %v1209
    %v1274 = vsel %vm1146, %v972, %v1210
    %v1275 = vsel %vm1147, %v977, %v1211
    %v1276 = vsel %vm1148, %v982, %v1212
    %v1277 = vsel %vm1149, %v987, %v1213
    %v1278 = vsel %vm1150, %v992, %v1214
    %v1279 = vsel %vm1151, %v997, %v1215
    %v1280 = vsel %vm1152, %v1002, %v1216
    %v1281 = vsel %vm1153, %v1007, %v1217
    %v1282 = vsel %vm1154, %v1012, %v1218
    %v1283 = vsel %vm1155, %v1017, %v1219
    %v1284 = vsel %vm1156, %v1022, %v1220
    %v1285 = vsel %vm1157, %v1027, %v1221
    %v1286 = vsel %vm1158, %v1032, %v1222
    %v1287 = vsel %vm1159, %v1037, %v1223
    %v1288 = vsel %vm1160, %v1042, %v1224
    %v1289 = vsel %vm1161, %v1047, %v1225
    %v1290 = vsel %vm1162, %v1052, %v1226
    %v1291 = vsel %vm1163, %v1057, %v1227
    %v1292 = vsel %vm1164, %v1062, %v1228
    %v1293 = vsel %vm1165, %v1067, %v1229
    %v1294 = vsel %vm1166, %v1072, %v1230
    %v1295 = vsel %vm1167, %v1077, %v1231
    %v1296 = vsel %vm1168, %v1082, %v1232
    %v1297 = vsel %vm1169, %v1087, %v1233
    %v1298 = vsel %vm1170, %v1092, %v1234
    %v1299 = vsel %vm1171, %v1097, %v1235
    %v1300 = vsel %vm1172, %v1102, %v1236
    %v1301 = vsel %vm1173, %v1107, %v1237
    %v1302 = vlaneseq
    %v1303 = vshrl.u32 %v1302, 7
    %v1304 = vsub.s32 0, %v1303
    %v1305 = vrot.slane %v525, %v1304
    %v1307 = vsel %vm532, %v1238, 0
    %v1310 = vsel %vm532, %v1239, 0
    %v1313 = vsel %vm532, %v1240, 0
    %v1316 = vsel %vm532, %v1241, 0
    %v1319 = vsel %vm532, %v1242, 0
    %v1322 = vsel %vm532, %v1243, 0
    %v1325 = vsel %vm532, %v1244, 0
    %v1328 = vsel %vm532, %v1245, 0
    %v1331 = vsel %vm532, %v1246, 0
    %v1334 = vsel %vm532, %v1247, 0
    %v1337 = vsel %vm532, %v1248, 0
    %v1340 = vsel %vm532, %v1249, 0
    %v1343 = vsel %vm532, %v1250, 0
    %v1346 = vsel %vm532, %v1251, 0
    %v1349 = vsel %vm532, %v1252, 0
    %v1352 = vsel %vm532, %v1253, 0
    %v1355 = vsel %vm532, %v1254, 0
    %v1358 = vsel %vm532, %v1255, 0
    %v1361 = vsel %vm532, %v1256, 0
    %v1364 = vsel %vm532, %v1257, 0
    %v1367 = vsel %vm532, %v1258, 0
    %v1370 = vsel %vm532, %v1259, 0
    %v1373 = vsel %vm532, %v1260, 0
    %v1376 = vsel %vm532, %v1261, 0
    %v1379 = vsel %vm532, %v1262, 0
    %v1382 = vsel %vm532, %v1263, 0
    %v1385 = vsel %vm532, %v1264, 0
    %v1388 = vsel %vm532, %v1265, 0
    %v1391 = vsel %vm532, %v1266, 0
    %v1394 = vsel %vm532, %v1267, 0
    %v1397 = vsel %vm532, %v1268, 0
    %v1400 = vsel %vm532, %v1269, 0
    %v1403 = vsel %vm532, %v1270, 0
    %v1406 = vsel %vm532, %v1271, 0
    %v1409 = vsel %vm532, %v1272, 0
    %v1412 = vsel %vm532, %v1273, 0
    %v1415 = vsel %vm532, %v1274, 0
    %v1418 = vsel %vm532, %v1275, 0
    %v1421 = vsel %vm532, %v1276, 0
    %v1424 = vsel %vm532, %v1277, 0
    %v1427 = vsel %vm532, %v1278, 0
    %v1430 = vsel %vm532, %v1279, 0
    %v1433 = vsel %vm532, %v1280, 0
    %v1436 = vsel %vm532, %v1281, 0
    %v1439 = vsel %vm532, %v1282, 0
    %v1442 = vsel %vm532, %v1283, 0
    %v1445 = vsel %vm532, %v1284, 0
    %v1448 = vsel %vm532, %v1285, 0
    %v1451 = vsel %vm532, %v1286, 0
    %v1454 = vsel %vm532, %v1287, 0
    %v1457 = vsel %vm532, %v1288, 0
    %v1460 = vsel %vm532, %v1289, 0
    %v1463 = vsel %vm532, %v1290, 0
    %v1466 = vsel %vm532, %v1291, 0
    %v1469 = vsel %vm532, %v1292, 0
    %v1472 = vsel %vm532, %v1293, 0
    %v1475 = vsel %vm532, %v1294, 0
    %v1478 = vsel %vm532, %v1295, 0
    %v1481 = vsel %vm532, %v1296, 0
    %v1484 = vsel %vm532, %v1297, 0
    %v1487 = vsel %vm532, %v1298, 0
    %v1490 = vsel %vm532, %v1299, 0
    %v1493 = vsel %vm532, %v1300, 0
    %v1496 = vsel %vm532, %v1301, 0
    %1498 = vmatprep.subr.mxu0 0.0
    %1499 = vmatpush1.msra.mxu0 %v520
    %1500 = vmatprep.subr.mxu0 0.0
    %1501 = vmatpush1.msra.mxu0 %v521
    %1502 = vmatprep.subr.mxu0 0.0
    %1503 = vmatpush1.msra.mxu0 %v522
    %1504 = vmatprep.subr.mxu0 0.0
    %1505 = vmatpush1.msra.mxu0 %v523
    %1506 = vmatprep.subr.mxu0 0.0
    %1507 = vmatpush1.msra.mxu0 0.0
    %1508 = vmatprep.subr.mxu0 0.0
    %1509 = vmatpush1.msra.mxu0 0.0
    %1510 = vmatprep.subr.mxu0 0.0
    %1511 = vmatpush1.msra.mxu0 0.0
    %1512 = vmatprep.subr.mxu0 0.0
    %1513 = vmatpush1.msra.mxu0 0.0
    %1514 = vmatprep.subr.mxu0 0.0
    %1515 = vmatpush1.msra.mxu0 0.0
    %1516 = vmatprep.subr.mxu0 0.0
    %1517 = vmatpush1.msra.mxu0 0.0
    %1518 = vmatprep.subr.mxu0 0.0
    %1519 = vmatpush1.msra.mxu0 0.0
    %1520 = vmatprep.subr.mxu0 0.0
    %1521 = vmatpush1.msra.mxu0 0.0
    %1522 = vmatprep.subr.mxu0 0.0
    %1523 = vmatpush1.msra.mxu0 0.0
    %1524 = vmatprep.subr.mxu0 0.0
    %1525 = vmatpush1.msra.mxu0 0.0
    %1526 = vmatprep.subr.mxu0 0.0
    %1527 = vmatpush1.msra.mxu0 0.0
    %1528 = vmatprep.subr.mxu0 0.0
    %1529 = vmatpush1.msra.mxu0 0.0
    %1530 = vmatprep.subr.mxu0 0.0
    %1531 = vmatpush1.msra.mxu0 0.0
    %1532 = vmatprep.subr.mxu0 0.0
    %1533 = vmatpush1.msra.mxu0 0.0
    %1534 = vmatprep.subr.mxu0 0.0
    %1535 = vmatpush1.msra.mxu0 0.0
    %1536 = vmatprep.subr.mxu0 0.0
    %1537 = vmatpush1.msra.mxu0 0.0
    %1538 = vmatprep.subr.mxu0 0.0
    %1539 = vmatpush1.msra.mxu0 0.0
    %1540 = vmatprep.subr.mxu0 0.0
    %1541 = vmatpush1.msra.mxu0 0.0
    %1542 = vmatprep.subr.mxu0 0.0
    %1543 = vmatpush1.msra.mxu0 0.0
    %1544 = vmatprep.subr.mxu0 0.0
    %1545 = vmatpush1.msra.mxu0 0.0
    %1546 = vmatprep.subr.mxu0 0.0
    %1547 = vmatpush1.msra.mxu0 0.0
    %1548 = vmatprep.subr.mxu0 0.0
    %1549 = vmatpush1.msra.mxu0 0.0
    %1550 = vmatprep.subr.mxu0 0.0
    %1551 = vmatpush1.msra.mxu0 0.0
    %1552 = vmatprep.subr.mxu0 0.0
    %1553 = vmatpush1.msra.mxu0 0.0
    %1554 = vmatprep.subr.mxu0 0.0
    %1555 = vmatpush1.msra.mxu0 0.0
    %1556 = vmatprep.subr.mxu0 0.0
    %1557 = vmatpush1.msra.mxu0 0.0
    %1558 = vmatprep.subr.mxu0 0.0
    %1559 = vmatpush1.msra.mxu0 0.0
    %1560 = vmatprep.subr.mxu0 0.0
    %1561 = vmatpush1.msra.mxu0 0.0
    %1562 = vmatprep.mubr.f32.mxu0 0.0
    %1563 = vmatmul.mubr.f32.gmra.mrb[0].mxu0 %v1307
    %v1564 = vpop.f32.mrb[0].mxu0
    %v1565 = vadd.f32 %v1305, %v1564
    %v1566 = vpop.f32.mrb[0].mxu0
    %1567 = vmatprep.mubr.f32.mxu0 0.0
    %1568 = vmatmul.mubr.f32.gmra.mrb[0].mxu0 %v1310
    %v1569 = vpop.f32.mrb[0].mxu0
    %v1570 = vadd.f32 %v1305, %v1569
    %v1571 = vpop.f32.mrb[0].mxu0
    %1572 = vmatprep.mubr.f32.mxu0 0.0
    %1573 = vmatmul.mubr.f32.gmra.mrb[0].mxu0 %v1313
    %v1574 = vpop.f32.mrb[0].mxu0
    %v1575 = vadd.f32 %v1305, %v1574
    %v1576 = vpop.f32.mrb[0].mxu0
    %1577 = vmatprep.mubr.f32.mxu0 0.0
    %1578 = vmatmul.mubr.f32.gmra.mrb[0].mxu0 %v1316
    %v1579 = vpop.f32.mrb[0].mxu0
    %v1580 = vadd.f32 %v1305, %v1579
    %v1581 = vpop.f32.mrb[0].mxu0
    %1582 = vmatprep.mubr.f32.mxu0 0.0
    %1583 = vmatmul.mubr.f32.gmra.mrb[0].mxu0 %v1319
    %v1584 = vpop.f32.mrb[0].mxu0
    %v1585 = vadd.f32 %v1305, %v1584
    %v1586 = vpop.f32.mrb[0].mxu0
    %1587 = vmatprep.mubr.f32.mxu0 0.0
    %1588 = vmatmul.mubr.f32.gmra.mrb[0].mxu0 %v1322
    %v1589 = vpop.f32.mrb[0].mxu0
    %v1590 = vadd.f32 %v1305, %v1589
    %v1591 = vpop.f32.mrb[0].mxu0
    %1592 = vmatprep.mubr.f32.mxu0 0.0
    %1593 = vmatmul.mubr.f32.gmra.mrb[0].mxu0 %v1325
    %v1594 = vpop.f32.mrb[0].mxu0
    %v1595 = vadd.f32 %v1305, %v1594
    %v1596 = vpop.f32.mrb[0].mxu0
    %1597 = vmatprep.mubr.f32.mxu0 0.0
    %1598 = vmatmul.mubr.f32.gmra.mrb[0].mxu0 %v1328
    %v1599 = vpop.f32.mrb[0].mxu0
    %v1600 = vadd.f32 %v1305, %v1599
    %v1601 = vpop.f32.mrb[0].mxu0
    %1602 = vmatprep.mubr.f32.mxu0 0.0
    %1603 = vmatmul.mubr.f32.gmra.mrb[0].mxu0 %v1331
    %v1604 = vpop.f32.mrb[0].mxu0
    %v1605 = vadd.f32 %v1305, %v1604
    %v1606 = vpop.f32.mrb[0].mxu0
    %1607 = vmatprep.mubr.f32.mxu0 0.0
    %1608 = vmatmul.mubr.f32.gmra.mrb[0].mxu0 %v1334
    %v1609 = vpop.f32.mrb[0].mxu0
    %v1610 = vadd.f32 %v1305, %v1609
    %v1611 = vpop.f32.mrb[0].mxu0
    %1612 = vmatprep.mubr.f32.mxu0 0.0
    %1613 = vmatmul.mubr.f32.gmra.mrb[0].mxu0 %v1337
    %v1614 = vpop.f32.mrb[0].mxu0
    %v1615 = vadd.f32 %v1305, %v1614
    %v1616 = vpop.f32.mrb[0].mxu0
    %1617 = vmatprep.mubr.f32.mxu0 0.0
    %1618 = vmatmul.mubr.f32.gmra.mrb[0].mxu0 %v1340
    %v1619 = vpop.f32.mrb[0].mxu0
    %v1620 = vadd.f32 %v1305, %v1619
    %v1621 = vpop.f32.mrb[0].mxu0
    %1622 = vmatprep.mubr.f32.mxu0 0.0
    %1623 = vmatmul.mubr.f32.gmra.mrb[0].mxu0 %v1343
    %v1624 = vpop.f32.mrb[0].mxu0
    %v1625 = vadd.f32 %v1305, %v1624
    %v1626 = vpop.f32.mrb[0].mxu0
    %1627 = vmatprep.mubr.f32.mxu0 0.0
    %1628 = vmatmul.mubr.f32.gmra.mrb[0].mxu0 %v1346
    %v1629 = vpop.f32.mrb[0].mxu0
    %v1630 = vadd.f32 %v1305, %v1629
    %v1631 = vpop.f32.mrb[0].mxu0
    %1632 = vmatprep.mubr.f32.mxu0 0.0
    %1633 = vmatmul.mubr.f32.gmra.mrb[0].mxu0 %v1349
    %v1634 = vpop.f32.mrb[0].mxu0
    %v1635 = vadd.f32 %v1305, %v1634
    %v1636 = vpop.f32.mrb[0].mxu0
    %1637 = vmatprep.mubr.f32.mxu0 0.0
    %1638 = vmatmul.mubr.f32.gmra.mrb[0].mxu0 %v1352
    %v1639 = vpop.f32.mrb[0].mxu0
    %v1640 = vadd.f32 %v1305, %v1639
    %v1641 = vpop.f32.mrb[0].mxu0
    %1642 = vmatprep.mubr.f32.mxu0 0.0
    %1643 = vmatmul.mubr.f32.gmra.mrb[0].mxu0 %v1355
    %v1644 = vpop.f32.mrb[0].mxu0
    %v1645 = vadd.f32 %v1305, %v1644
    %v1646 = vpop.f32.mrb[0].mxu0
    %1647 = vmatprep.mubr.f32.mxu0 0.0
    %1648 = vmatmul.mubr.f32.gmra.mrb[0].mxu0 %v1358
    %v1649 = vpop.f32.mrb[0].mxu0
    %v1650 = vadd.f32 %v1305, %v1649
    %v1651 = vpop.f32.mrb[0].mxu0
    %1652 = vmatprep.mubr.f32.mxu0 0.0
    %1653 = vmatmul.mubr.f32.gmra.mrb[0].mxu0 %v1361
    %v1654 = vpop.f32.mrb[0].mxu0
    %v1655 = vadd.f32 %v1305, %v1654
    %v1656 = vpop.f32.mrb[0].mxu0
    %1657 = vmatprep.mubr.f32.mxu0 0.0
    %1658 = vmatmul.mubr.f32.gmra.mrb[0].mxu0 %v1364
    %v1659 = vpop.f32.mrb[0].mxu0
    %v1660 = vadd.f32 %v1305, %v1659
    %v1661 = vpop.f32.mrb[0].mxu0
    %1662 = vmatprep.mubr.f32.mxu0 0.0
    %1663 = vmatmul.mubr.f32.gmra.mrb[0].mxu0 %v1367
    %v1664 = vpop.f32.mrb[0].mxu0
    %v1665 = vadd.f32 %v1305, %v1664
    %v1666 = vpop.f32.mrb[0].mxu0
    %1667 = vmatprep.mubr.f32.mxu0 0.0
    %1668 = vmatmul.mubr.f32.gmra.mrb[0].mxu0 %v1370
    %v1669 = vpop.f32.mrb[0].mxu0
    %v1670 = vadd.f32 %v1305, %v1669
    %v1671 = vpop.f32.mrb[0].mxu0
    %1672 = vmatprep.mubr.f32.mxu0 0.0
    %1673 = vmatmul.mubr.f32.gmra.mrb[0].mxu0 %v1373
    %v1674 = vpop.f32.mrb[0].mxu0
    %v1675 = vadd.f32 %v1305, %v1674
    %v1676 = vpop.f32.mrb[0].mxu0
    %1677 = vmatprep.mubr.f32.mxu0 0.0
    %1678 = vmatmul.mubr.f32.gmra.mrb[0].mxu0 %v1376
    %v1679 = vpop.f32.mrb[0].mxu0
    %v1680 = vadd.f32 %v1305, %v1679
    %v1681 = vpop.f32.mrb[0].mxu0
    %1682 = vmatprep.mubr.f32.mxu0 0.0
    %1683 = vmatmul.mubr.f32.gmra.mrb[0].mxu0 %v1379
    %v1684 = vpop.f32.mrb[0].mxu0
    %v1685 = vadd.f32 %v1305, %v1684
    %v1686 = vpop.f32.mrb[0].mxu0
    %1687 = vmatprep.mubr.f32.mxu0 0.0
    %1688 = vmatmul.mubr.f32.gmra.mrb[0].mxu0 %v1382
    %v1689 = vpop.f32.mrb[0].mxu0
    %v1690 = vadd.f32 %v1305, %v1689
    %v1691 = vpop.f32.mrb[0].mxu0
    %1692 = vmatprep.mubr.f32.mxu0 0.0
    %1693 = vmatmul.mubr.f32.gmra.mrb[0].mxu0 %v1385
    %v1694 = vpop.f32.mrb[0].mxu0
    %v1695 = vadd.f32 %v1305, %v1694
    %v1696 = vpop.f32.mrb[0].mxu0
    %1697 = vmatprep.mubr.f32.mxu0 0.0
    %1698 = vmatmul.mubr.f32.gmra.mrb[0].mxu0 %v1388
    %v1699 = vpop.f32.mrb[0].mxu0
    %v1700 = vadd.f32 %v1305, %v1699
    %v1701 = vpop.f32.mrb[0].mxu0
    %1702 = vmatprep.mubr.f32.mxu0 0.0
    %1703 = vmatmul.mubr.f32.gmra.mrb[0].mxu0 %v1391
    %v1704 = vpop.f32.mrb[0].mxu0
    %v1705 = vadd.f32 %v1305, %v1704
    %v1706 = vpop.f32.mrb[0].mxu0
    %1707 = vmatprep.mubr.f32.mxu0 0.0
    %1708 = vmatmul.mubr.f32.gmra.mrb[0].mxu0 %v1394
    %v1709 = vpop.f32.mrb[0].mxu0
    %v1710 = vadd.f32 %v1305, %v1709
    %v1711 = vpop.f32.mrb[0].mxu0
    %1712 = vmatprep.mubr.f32.mxu0 0.0
    %1713 = vmatmul.mubr.f32.gmra.mrb[0].mxu0 %v1397
    %v1714 = vpop.f32.mrb[0].mxu0
    %v1715 = vadd.f32 %v1305, %v1714
    %v1716 = vpop.f32.mrb[0].mxu0
    %1717 = vmatprep.mubr.f32.mxu0 0.0
    %1718 = vmatmul.mubr.f32.gmra.mrb[0].mxu0 %v1400
    %v1719 = vpop.f32.mrb[0].mxu0
    %v1720 = vadd.f32 %v1305, %v1719
    %v1721 = vpop.f32.mrb[0].mxu0
    %1722 = vmatprep.mubr.f32.mxu0 0.0
    %1723 = vmatmul.mubr.f32.gmra.mrb[0].mxu0 %v1403
    %v1724 = vpop.f32.mrb[0].mxu0
    %v1725 = vadd.f32 %v1305, %v1724
    %v1726 = vpop.f32.mrb[0].mxu0
    %1727 = vmatprep.mubr.f32.mxu0 0.0
    %1728 = vmatmul.mubr.f32.gmra.mrb[0].mxu0 %v1406
    %v1729 = vpop.f32.mrb[0].mxu0
    %v1730 = vadd.f32 %v1305, %v1729
    %v1731 = vpop.f32.mrb[0].mxu0
    %1732 = vmatprep.mubr.f32.mxu0 0.0
    %1733 = vmatmul.mubr.f32.gmra.mrb[0].mxu0 %v1409
    %v1734 = vpop.f32.mrb[0].mxu0
    %v1735 = vadd.f32 %v1305, %v1734
    %v1736 = vpop.f32.mrb[0].mxu0
    %1737 = vmatprep.mubr.f32.mxu0 0.0
    %1738 = vmatmul.mubr.f32.gmra.mrb[0].mxu0 %v1412
    %v1739 = vpop.f32.mrb[0].mxu0
    %v1740 = vadd.f32 %v1305, %v1739
    %v1741 = vpop.f32.mrb[0].mxu0
    %1742 = vmatprep.mubr.f32.mxu0 0.0
    %1743 = vmatmul.mubr.f32.gmra.mrb[0].mxu0 %v1415
    %v1744 = vpop.f32.mrb[0].mxu0
    %v1745 = vadd.f32 %v1305, %v1744
    %v1746 = vpop.f32.mrb[0].mxu0
    %1747 = vmatprep.mubr.f32.mxu0 0.0
    %1748 = vmatmul.mubr.f32.gmra.mrb[0].mxu0 %v1418
    %v1749 = vpop.f32.mrb[0].mxu0
    %v1750 = vadd.f32 %v1305, %v1749
    %v1751 = vpop.f32.mrb[0].mxu0
    %1752 = vmatprep.mubr.f32.mxu0 0.0
    %1753 = vmatmul.mubr.f32.gmra.mrb[0].mxu0 %v1421
    %v1754 = vpop.f32.mrb[0].mxu0
    %v1755 = vadd.f32 %v1305, %v1754
    %v1756 = vpop.f32.mrb[0].mxu0
    %1757 = vmatprep.mubr.f32.mxu0 0.0
    %1758 = vmatmul.mubr.f32.gmra.mrb[0].mxu0 %v1424
    %v1759 = vpop.f32.mrb[0].mxu0
    %v1760 = vadd.f32 %v1305, %v1759
    %v1761 = vpop.f32.mrb[0].mxu0
    %1762 = vmatprep.mubr.f32.mxu0 0.0
    %1763 = vmatmul.mubr.f32.gmra.mrb[0].mxu0 %v1427
    %v1764 = vpop.f32.mrb[0].mxu0
    %v1765 = vadd.f32 %v1305, %v1764
    %v1766 = vpop.f32.mrb[0].mxu0
    %1767 = vmatprep.mubr.f32.mxu0 0.0
    %1768 = vmatmul.mubr.f32.gmra.mrb[0].mxu0 %v1430
    %v1769 = vpop.f32.mrb[0].mxu0
    %v1770 = vadd.f32 %v1305, %v1769
    %v1771 = vpop.f32.mrb[0].mxu0
    %1772 = vmatprep.mubr.f32.mxu0 0.0
    %1773 = vmatmul.mubr.f32.gmra.mrb[0].mxu0 %v1433
    %v1774 = vpop.f32.mrb[0].mxu0
    %v1775 = vadd.f32 %v1305, %v1774
    %v1776 = vpop.f32.mrb[0].mxu0
    %1777 = vmatprep.mubr.f32.mxu0 0.0
    %1778 = vmatmul.mubr.f32.gmra.mrb[0].mxu0 %v1436
    %v1779 = vpop.f32.mrb[0].mxu0
    %v1780 = vadd.f32 %v1305, %v1779
    %v1781 = vpop.f32.mrb[0].mxu0
    %1782 = vmatprep.mubr.f32.mxu0 0.0
    %1783 = vmatmul.mubr.f32.gmra.mrb[0].mxu0 %v1439
    %v1784 = vpop.f32.mrb[0].mxu0
    %v1785 = vadd.f32 %v1305, %v1784
    %v1786 = vpop.f32.mrb[0].mxu0
    %1787 = vmatprep.mubr.f32.mxu0 0.0
    %1788 = vmatmul.mubr.f32.gmra.mrb[0].mxu0 %v1442
    %v1789 = vpop.f32.mrb[0].mxu0
    %v1790 = vadd.f32 %v1305, %v1789
    %v1791 = vpop.f32.mrb[0].mxu0
    %1792 = vmatprep.mubr.f32.mxu0 0.0
    %1793 = vmatmul.mubr.f32.gmra.mrb[0].mxu0 %v1445
    %v1794 = vpop.f32.mrb[0].mxu0
    %v1795 = vadd.f32 %v1305, %v1794
    %v1796 = vpop.f32.mrb[0].mxu0
    %1797 = vmatprep.mubr.f32.mxu0 0.0
    %1798 = vmatmul.mubr.f32.gmra.mrb[0].mxu0 %v1448
    %v1799 = vpop.f32.mrb[0].mxu0
    %v1800 = vadd.f32 %v1305, %v1799
    %v1801 = vpop.f32.mrb[0].mxu0
    %1802 = vmatprep.mubr.f32.mxu0 0.0
    %1803 = vmatmul.mubr.f32.gmra.mrb[0].mxu0 %v1451
    %v1804 = vpop.f32.mrb[0].mxu0
    %v1805 = vadd.f32 %v1305, %v1804
    %v1806 = vpop.f32.mrb[0].mxu0
    %1807 = vmatprep.mubr.f32.mxu0 0.0
    %1808 = vmatmul.mubr.f32.gmra.mrb[0].mxu0 %v1454
    %v1809 = vpop.f32.mrb[0].mxu0
    %v1810 = vadd.f32 %v1305, %v1809
    %v1811 = vpop.f32.mrb[0].mxu0
    %1812 = vmatprep.mubr.f32.mxu0 0.0
    %1813 = vmatmul.mubr.f32.gmra.mrb[0].mxu0 %v1457
    %v1814 = vpop.f32.mrb[0].mxu0
    %v1815 = vadd.f32 %v1305, %v1814
    %v1816 = vpop.f32.mrb[0].mxu0
    %1817 = vmatprep.mubr.f32.mxu0 0.0
    %1818 = vmatmul.mubr.f32.gmra.mrb[0].mxu0 %v1460
    %v1819 = vpop.f32.mrb[0].mxu0
    %v1820 = vadd.f32 %v1305, %v1819
    %v1821 = vpop.f32.mrb[0].mxu0
    %1822 = vmatprep.mubr.f32.mxu0 0.0
    %1823 = vmatmul.mubr.f32.gmra.mrb[0].mxu0 %v1463
    %v1824 = vpop.f32.mrb[0].mxu0
    %v1825 = vadd.f32 %v1305, %v1824
    %v1826 = vpop.f32.mrb[0].mxu0
    %1827 = vmatprep.mubr.f32.mxu0 0.0
    %1828 = vmatmul.mubr.f32.gmra.mrb[0].mxu0 %v1466
    %v1829 = vpop.f32.mrb[0].mxu0
    %v1830 = vadd.f32 %v1305, %v1829
    %v1831 = vpop.f32.mrb[0].mxu0
    %1832 = vmatprep.mubr.f32.mxu0 0.0
    %1833 = vmatmul.mubr.f32.gmra.mrb[0].mxu0 %v1469
    %v1834 = vpop.f32.mrb[0].mxu0
    %v1835 = vadd.f32 %v1305, %v1834
    %v1836 = vpop.f32.mrb[0].mxu0
    %1837 = vmatprep.mubr.f32.mxu0 0.0
    %1838 = vmatmul.mubr.f32.gmra.mrb[0].mxu0 %v1472
    %v1839 = vpop.f32.mrb[0].mxu0
    %v1840 = vadd.f32 %v1305, %v1839
    %v1841 = vpop.f32.mrb[0].mxu0
    %1842 = vmatprep.mubr.f32.mxu0 0.0
    %1843 = vmatmul.mubr.f32.gmra.mrb[0].mxu0 %v1475
    %v1844 = vpop.f32.mrb[0].mxu0
    %v1845 = vadd.f32 %v1305, %v1844
    %v1846 = vpop.f32.mrb[0].mxu0
    %1847 = vmatprep.mubr.f32.mxu0 0.0
    %1848 = vmatmul.mubr.f32.gmra.mrb[0].mxu0 %v1478
    %v1849 = vpop.f32.mrb[0].mxu0
    %v1850 = vadd.f32 %v1305, %v1849
    %v1851 = vpop.f32.mrb[0].mxu0
    %1852 = vmatprep.mubr.f32.mxu0 0.0
    %1853 = vmatmul.mubr.f32.gmra.mrb[0].mxu0 %v1481
    %v1854 = vpop.f32.mrb[0].mxu0
    %v1855 = vadd.f32 %v1305, %v1854
    %v1856 = vpop.f32.mrb[0].mxu0
    %1857 = vmatprep.mubr.f32.mxu0 0.0
    %1858 = vmatmul.mubr.f32.gmra.mrb[0].mxu0 %v1484
    %v1859 = vpop.f32.mrb[0].mxu0
    %v1860 = vadd.f32 %v1305, %v1859
    %v1861 = vpop.f32.mrb[0].mxu0
    %1862 = vmatprep.mubr.f32.mxu0 0.0
    %1863 = vmatmul.mubr.f32.gmra.mrb[0].mxu0 %v1487
    %v1864 = vpop.f32.mrb[0].mxu0
    %v1865 = vadd.f32 %v1305, %v1864
    %v1866 = vpop.f32.mrb[0].mxu0
    %1867 = vmatprep.mubr.f32.mxu0 0.0
    %1868 = vmatmul.mubr.f32.gmra.mrb[0].mxu0 %v1490
    %v1869 = vpop.f32.mrb[0].mxu0
    %v1870 = vadd.f32 %v1305, %v1869
    %v1871 = vpop.f32.mrb[0].mxu0
    %1872 = vmatprep.mubr.f32.mxu0 0.0
    %1873 = vmatmul.mubr.f32.gmra.mrb[0].mxu0 %v1493
    %v1874 = vpop.f32.mrb[0].mxu0
    %v1875 = vadd.f32 %v1305, %v1874
    %v1876 = vpop.f32.mrb[0].mxu0
    %1877 = vmatprep.mubr.f32.mxu0 0.0
    %1878 = vmatmul.mubr.f32.gmra.mrb[0].mxu0 %v1496
    %v1879 = vpop.f32.mrb[0].mxu0
    %v1880 = vadd.f32 %v1305, %v1879
    %v1881 = vpop.f32.mrb[0].mxu0
    %1882 = vdwg.mxu0
    %vm1883 = vcmp.gt.f32.partialorder %v1565, 0.0
    %vm1884 = vcmp.gt.f32.partialorder %v1570, 0.0
    %vm1885 = vcmp.gt.f32.partialorder %v1575, 0.0
    %vm1886 = vcmp.gt.f32.partialorder %v1580, 0.0
    %vm1887 = vcmp.gt.f32.partialorder %v1585, 0.0
    %vm1888 = vcmp.gt.f32.partialorder %v1590, 0.0
    %vm1889 = vcmp.gt.f32.partialorder %v1595, 0.0
    %vm1890 = vcmp.gt.f32.partialorder %v1600, 0.0
    %vm1891 = vcmp.gt.f32.partialorder %v1605, 0.0
    %vm1892 = vcmp.gt.f32.partialorder %v1610, 0.0
    %vm1893 = vcmp.gt.f32.partialorder %v1615, 0.0
    %vm1894 = vcmp.gt.f32.partialorder %v1620, 0.0
    %vm1895 = vcmp.gt.f32.partialorder %v1625, 0.0
    %vm1896 = vcmp.gt.f32.partialorder %v1630, 0.0
    %vm1897 = vcmp.gt.f32.partialorder %v1635, 0.0
    %vm1898 = vcmp.gt.f32.partialorder %v1640, 0.0
    %vm1899 = vcmp.gt.f32.partialorder %v1645, 0.0
    %vm1900 = vcmp.gt.f32.partialorder %v1650, 0.0
    %vm1901 = vcmp.gt.f32.partialorder %v1655, 0.0
    %vm1902 = vcmp.gt.f32.partialorder %v1660, 0.0
    %vm1903 = vcmp.gt.f32.partialorder %v1665, 0.0
    %vm1904 = vcmp.gt.f32.partialorder %v1670, 0.0
    %vm1905 = vcmp.gt.f32.partialorder %v1675, 0.0
    %vm1906 = vcmp.gt.f32.partialorder %v1680, 0.0
    %vm1907 = vcmp.gt.f32.partialorder %v1685, 0.0
    %vm1908 = vcmp.gt.f32.partialorder %v1690, 0.0
    %vm1909 = vcmp.gt.f32.partialorder %v1695, 0.0
    %vm1910 = vcmp.gt.f32.partialorder %v1700, 0.0
    %vm1911 = vcmp.gt.f32.partialorder %v1705, 0.0
    %vm1912 = vcmp.gt.f32.partialorder %v1710, 0.0
    %vm1913 = vcmp.gt.f32.partialorder %v1715, 0.0
    %vm1914 = vcmp.gt.f32.partialorder %v1720, 0.0
    %vm1915 = vcmp.gt.f32.partialorder %v1725, 0.0
    %vm1916 = vcmp.gt.f32.partialorder %v1730, 0.0
    %vm1917 = vcmp.gt.f32.partialorder %v1735, 0.0
    %vm1918 = vcmp.gt.f32.partialorder %v1740, 0.0
    %vm1919 = vcmp.gt.f32.partialorder %v1745, 0.0
    %vm1920 = vcmp.gt.f32.partialorder %v1750, 0.0
    %vm1921 = vcmp.gt.f32.partialorder %v1755, 0.0
    %vm1922 = vcmp.gt.f32.partialorder %v1760, 0.0
    %vm1923 = vcmp.gt.f32.partialorder %v1765, 0.0
    %vm1924 = vcmp.gt.f32.partialorder %v1770, 0.0
    %vm1925 = vcmp.gt.f32.partialorder %v1775, 0.0
    %vm1926 = vcmp.gt.f32.partialorder %v1780, 0.0
    %vm1927 = vcmp.gt.f32.partialorder %v1785, 0.0
    %vm1928 = vcmp.gt.f32.partialorder %v1790, 0.0
    %vm1929 = vcmp.gt.f32.partialorder %v1795, 0.0
    %vm1930 = vcmp.gt.f32.partialorder %v1800, 0.0
    %vm1931 = vcmp.gt.f32.partialorder %v1805, 0.0
    %vm1932 = vcmp.gt.f32.partialorder %v1810, 0.0
    %vm1933 = vcmp.gt.f32.partialorder %v1815, 0.0
    %vm1934 = vcmp.gt.f32.partialorder %v1820, 0.0
    %vm1935 = vcmp.gt.f32.partialorder %v1825, 0.0
    %vm1936 = vcmp.gt.f32.partialorder %v1830, 0.0
    %vm1937 = vcmp.gt.f32.partialorder %v1835, 0.0
    %vm1938 = vcmp.gt.f32.partialorder %v1840, 0.0
    %vm1939 = vcmp.gt.f32.partialorder %v1845, 0.0
    %vm1940 = vcmp.gt.f32.partialorder %v1850, 0.0
    %vm1941 = vcmp.gt.f32.partialorder %v1855, 0.0
    %vm1942 = vcmp.gt.f32.partialorder %v1860, 0.0
    %vm1943 = vcmp.gt.f32.partialorder %v1865, 0.0
    %vm1944 = vcmp.gt.f32.partialorder %v1870, 0.0
    %vm1945 = vcmp.gt.f32.partialorder %v1875, 0.0
    %vm1946 = vcmp.gt.f32.partialorder %v1880, 0.0
    %v1947 = vmul.f32 %v1565, 0.01
    %v1948 = vmul.f32 %v1570, 0.01
    %v1949 = vmul.f32 %v1575, 0.01
    %v1950 = vmul.f32 %v1580, 0.01
    %v1951 = vmul.f32 %v1585, 0.01
    %v1952 = vmul.f32 %v1590, 0.01
    %v1953 = vmul.f32 %v1595, 0.01
    %v1954 = vmul.f32 %v1600, 0.01
    %v1955 = vmul.f32 %v1605, 0.01
    %v1956 = vmul.f32 %v1610, 0.01
    %v1957 = vmul.f32 %v1615, 0.01
    %v1958 = vmul.f32 %v1620, 0.01
    %v1959 = vmul.f32 %v1625, 0.01
    %v1960 = vmul.f32 %v1630, 0.01
    %v1961 = vmul.f32 %v1635, 0.01
    %v1962 = vmul.f32 %v1640, 0.01
    %v1963 = vmul.f32 %v1645, 0.01
    %v1964 = vmul.f32 %v1650, 0.01
    %v1965 = vmul.f32 %v1655, 0.01
    %v1966 = vmul.f32 %v1660, 0.01
    %v1967 = vmul.f32 %v1665, 0.01
    %v1968 = vmul.f32 %v1670, 0.01
    %v1969 = vmul.f32 %v1675, 0.01
    %v1970 = vmul.f32 %v1680, 0.01
    %v1971 = vmul.f32 %v1685, 0.01
    %v1972 = vmul.f32 %v1690, 0.01
    %v1973 = vmul.f32 %v1695, 0.01
    %v1974 = vmul.f32 %v1700, 0.01
    %v1975 = vmul.f32 %v1705, 0.01
    %v1976 = vmul.f32 %v1710, 0.01
    %v1977 = vmul.f32 %v1715, 0.01
    %v1978 = vmul.f32 %v1720, 0.01
    %v1979 = vmul.f32 %v1725, 0.01
    %v1980 = vmul.f32 %v1730, 0.01
    %v1981 = vmul.f32 %v1735, 0.01
    %v1982 = vmul.f32 %v1740, 0.01
    %v1983 = vmul.f32 %v1745, 0.01
    %v1984 = vmul.f32 %v1750, 0.01
    %v1985 = vmul.f32 %v1755, 0.01
    %v1986 = vmul.f32 %v1760, 0.01
    %v1987 = vmul.f32 %v1765, 0.01
    %v1988 = vmul.f32 %v1770, 0.01
    %v1989 = vmul.f32 %v1775, 0.01
    %v1990 = vmul.f32 %v1780, 0.01
    %v1991 = vmul.f32 %v1785, 0.01
    %v1992 = vmul.f32 %v1790, 0.01
    %v1993 = vmul.f32 %v1795, 0.01
    %v1994 = vmul.f32 %v1800, 0.01
    %v1995 = vmul.f32 %v1805, 0.01
    %v1996 = vmul.f32 %v1810, 0.01
    %v1997 = vmul.f32 %v1815, 0.01
    %v1998 = vmul.f32 %v1820, 0.01
    %v1999 = vmul.f32 %v1825, 0.01
    %v2000 = vmul.f32 %v1830, 0.01
    %v2001 = vmul.f32 %v1835, 0.01
    %v2002 = vmul.f32 %v1840, 0.01
    %v2003 = vmul.f32 %v1845, 0.01
    %v2004 = vmul.f32 %v1850, 0.01
    %v2005 = vmul.f32 %v1855, 0.01
    %v2006 = vmul.f32 %v1860, 0.01
    %v2007 = vmul.f32 %v1865, 0.01
    %v2008 = vmul.f32 %v1870, 0.01
    %v2009 = vmul.f32 %v1875, 0.01
    %v2010 = vmul.f32 %v1880, 0.01
    %v2011 = vsel %vm1883, %v1565, %v1947
    %v2012 = vsel %vm1884, %v1570, %v1948
    %v2013 = vsel %vm1885, %v1575, %v1949
    %v2014 = vsel %vm1886, %v1580, %v1950
    %v2015 = vsel %vm1887, %v1585, %v1951
    %v2016 = vsel %vm1888, %v1590, %v1952
    %v2017 = vsel %vm1889, %v1595, %v1953
    %v2018 = vsel %vm1890, %v1600, %v1954
    %v2019 = vsel %vm1891, %v1605, %v1955
    %v2020 = vsel %vm1892, %v1610, %v1956
    %v2021 = vsel %vm1893, %v1615, %v1957
    %v2022 = vsel %vm1894, %v1620, %v1958
    %v2023 = vsel %vm1895, %v1625, %v1959
    %v2024 = vsel %vm1896, %v1630, %v1960
    %v2025 = vsel %vm1897, %v1635, %v1961
    %v2026 = vsel %vm1898, %v1640, %v1962
    %v2027 = vsel %vm1899, %v1645, %v1963
    %v2028 = vsel %vm1900, %v1650, %v1964
    %v2029 = vsel %vm1901, %v1655, %v1965
    %v2030 = vsel %vm1902, %v1660, %v1966
    %v2031 = vsel %vm1903, %v1665, %v1967
    %v2032 = vsel %vm1904, %v1670, %v1968
    %v2033 = vsel %vm1905, %v1675, %v1969
    %v2034 = vsel %vm1906, %v1680, %v1970
    %v2035 = vsel %vm1907, %v1685, %v1971
    %v2036 = vsel %vm1908, %v1690, %v1972
    %v2037 = vsel %vm1909, %v1695, %v1973
    %v2038 = vsel %vm1910, %v1700, %v1974
    %v2039 = vsel %vm1911, %v1705, %v1975
    %v2040 = vsel %vm1912, %v1710, %v1976
    %v2041 = vsel %vm1913, %v1715, %v1977
    %v2042 = vsel %vm1914, %v1720, %v1978
    %v2043 = vsel %vm1915, %v1725, %v1979
    %v2044 = vsel %vm1916, %v1730, %v1980
    %v2045 = vsel %vm1917, %v1735, %v1981
    %v2046 = vsel %vm1918, %v1740, %v1982
    %v2047 = vsel %vm1919, %v1745, %v1983
    %v2048 = vsel %vm1920, %v1750, %v1984
    %v2049 = vsel %vm1921, %v1755, %v1985
    %v2050 = vsel %vm1922, %v1760, %v1986
    %v2051 = vsel %vm1923, %v1765, %v1987
    %v2052 = vsel %vm1924, %v1770, %v1988
    %v2053 = vsel %vm1925, %v1775, %v1989
    %v2054 = vsel %vm1926, %v1780, %v1990
    %v2055 = vsel %vm1927, %v1785, %v1991
    %v2056 = vsel %vm1928, %v1790, %v1992
    %v2057 = vsel %vm1929, %v1795, %v1993
    %v2058 = vsel %vm1930, %v1800, %v1994
    %v2059 = vsel %vm1931, %v1805, %v1995
    %v2060 = vsel %vm1932, %v1810, %v1996
    %v2061 = vsel %vm1933, %v1815, %v1997
    %v2062 = vsel %vm1934, %v1820, %v1998
    %v2063 = vsel %vm1935, %v1825, %v1999
    %v2064 = vsel %vm1936, %v1830, %v2000
    %v2065 = vsel %vm1937, %v1835, %v2001
    %v2066 = vsel %vm1938, %v1840, %v2002
    %v2067 = vsel %vm1939, %v1845, %v2003
    %v2068 = vsel %vm1940, %v1850, %v2004
    %v2069 = vsel %vm1941, %v1855, %v2005
    %v2070 = vsel %vm1942, %v1860, %v2006
    %v2071 = vsel %vm1943, %v1865, %v2007
    %v2072 = vsel %vm1944, %v1870, %v2008
    %v2073 = vsel %vm1945, %v1875, %v2009
    %v2074 = vsel %vm1946, %v1880, %v2010
    %v2075 = vlaneseq
    %v2076 = vshrl.u32 %v2075, 7
    %v2077 = vsub.s32 0, %v2076
    %v2078 = vrot.slane %v526, %v2077
    %v2079 = vmul.f32 %v2011, %v2078
    %v2080 = vmul.f32 %v2012, %v2078
    %v2081 = vmul.f32 %v2013, %v2078
    %v2082 = vmul.f32 %v2014, %v2078
    %v2083 = vmul.f32 %v2015, %v2078
    %v2084 = vmul.f32 %v2016, %v2078
    %v2085 = vmul.f32 %v2017, %v2078
    %v2086 = vmul.f32 %v2018, %v2078
    %v2087 = vmul.f32 %v2019, %v2078
    %v2088 = vmul.f32 %v2020, %v2078
    %v2089 = vmul.f32 %v2021, %v2078
    %v2090 = vmul.f32 %v2022, %v2078
    %v2091 = vmul.f32 %v2023, %v2078
    %v2092 = vmul.f32 %v2024, %v2078
    %v2093 = vmul.f32 %v2025, %v2078
    %v2094 = vmul.f32 %v2026, %v2078
    %v2095 = vmul.f32 %v2027, %v2078
    %v2096 = vmul.f32 %v2028, %v2078
    %v2097 = vmul.f32 %v2029, %v2078
    %v2098 = vmul.f32 %v2030, %v2078
    %v2099 = vmul.f32 %v2031, %v2078
    %v2100 = vmul.f32 %v2032, %v2078
    %v2101 = vmul.f32 %v2033, %v2078
    %v2102 = vmul.f32 %v2034, %v2078
    %v2103 = vmul.f32 %v2035, %v2078
    %v2104 = vmul.f32 %v2036, %v2078
    %v2105 = vmul.f32 %v2037, %v2078
    %v2106 = vmul.f32 %v2038, %v2078
    %v2107 = vmul.f32 %v2039, %v2078
    %v2108 = vmul.f32 %v2040, %v2078
    %v2109 = vmul.f32 %v2041, %v2078
    %v2110 = vmul.f32 %v2042, %v2078
    %v2111 = vmul.f32 %v2043, %v2078
    %v2112 = vmul.f32 %v2044, %v2078
    %v2113 = vmul.f32 %v2045, %v2078
    %v2114 = vmul.f32 %v2046, %v2078
    %v2115 = vmul.f32 %v2047, %v2078
    %v2116 = vmul.f32 %v2048, %v2078
    %v2117 = vmul.f32 %v2049, %v2078
    %v2118 = vmul.f32 %v2050, %v2078
    %v2119 = vmul.f32 %v2051, %v2078
    %v2120 = vmul.f32 %v2052, %v2078
    %v2121 = vmul.f32 %v2053, %v2078
    %v2122 = vmul.f32 %v2054, %v2078
    %v2123 = vmul.f32 %v2055, %v2078
    %v2124 = vmul.f32 %v2056, %v2078
    %v2125 = vmul.f32 %v2057, %v2078
    %v2126 = vmul.f32 %v2058, %v2078
    %v2127 = vmul.f32 %v2059, %v2078
    %v2128 = vmul.f32 %v2060, %v2078
    %v2129 = vmul.f32 %v2061, %v2078
    %v2130 = vmul.f32 %v2062, %v2078
    %v2131 = vmul.f32 %v2063, %v2078
    %v2132 = vmul.f32 %v2064, %v2078
    %v2133 = vmul.f32 %v2065, %v2078
    %v2134 = vmul.f32 %v2066, %v2078
    %v2135 = vmul.f32 %v2067, %v2078
    %v2136 = vmul.f32 %v2068, %v2078
    %v2137 = vmul.f32 %v2069, %v2078
    %v2138 = vmul.f32 %v2070, %v2078
    %v2139 = vmul.f32 %v2071, %v2078
    %v2140 = vmul.f32 %v2072, %v2078
    %v2141 = vmul.f32 %v2073, %v2078
    %v2142 = vmul.f32 %v2074, %v2078
    %vm2143 = vcmask 130048
    %v2144 = vsel %vm2143, %v2079, 0.0
    %2145 = vadd.xlane.f32.xlu0 %v2144
    %v2146 = vpop.xlane.xlu0 %2145
    %v2147 = vsel %vm2143, %v2080, 0.0
    %2148 = vadd.xlane.f32.xlu0 %v2147
    %v2149 = vpop.xlane.xlu0 %2148
    %v2150 = vsel %vm2143, %v2081, 0.0
    %2151 = vadd.xlane.f32.xlu0 %v2150
    %v2152 = vpop.xlane.xlu0 %2151
    %v2153 = vsel %vm2143, %v2082, 0.0
    %2154 = vadd.xlane.f32.xlu0 %v2153
    %v2155 = vpop.xlane.xlu0 %2154
    %v2156 = vsel %vm2143, %v2083, 0.0
    %2157 = vadd.xlane.f32.xlu0 %v2156
    %v2158 = vpop.xlane.xlu0 %2157
    %v2159 = vsel %vm2143, %v2084, 0.0
    %2160 = vadd.xlane.f32.xlu0 %v2159
    %v2161 = vpop.xlane.xlu0 %2160
    %v2162 = vsel %vm2143, %v2085, 0.0
    %2163 = vadd.xlane.f32.xlu0 %v2162
    %v2164 = vpop.xlane.xlu0 %2163
    %v2165 = vsel %vm2143, %v2086, 0.0
    %2166 = vadd.xlane.f32.xlu0 %v2165
    %v2167 = vpop.xlane.xlu0 %2166
    %v2168 = vsel %vm2143, %v2087, 0.0
    %2169 = vadd.xlane.f32.xlu0 %v2168
    %v2170 = vpop.xlane.xlu0 %2169
    %v2171 = vsel %vm2143, %v2088, 0.0
    %2172 = vadd.xlane.f32.xlu0 %v2171
    %v2173 = vpop.xlane.xlu0 %2172
    %v2174 = vsel %vm2143, %v2089, 0.0
    %2175 = vadd.xlane.f32.xlu0 %v2174
    %v2176 = vpop.xlane.xlu0 %2175
    %v2177 = vsel %vm2143, %v2090, 0.0
    %2178 = vadd.xlane.f32.xlu0 %v2177
    %v2179 = vpop.xlane.xlu0 %2178
    %v2180 = vsel %vm2143, %v2091, 0.0
    %2181 = vadd.xlane.f32.xlu0 %v2180
    %v2182 = vpop.xlane.xlu0 %2181
    %v2183 = vsel %vm2143, %v2092, 0.0
    %2184 = vadd.xlane.f32.xlu0 %v2183
    %v2185 = vpop.xlane.xlu0 %2184
    %v2186 = vsel %vm2143, %v2093, 0.0
    %2187 = vadd.xlane.f32.xlu0 %v2186
    %v2188 = vpop.xlane.xlu0 %2187
    %v2189 = vsel %vm2143, %v2094, 0.0
    %2190 = vadd.xlane.f32.xlu0 %v2189
    %v2191 = vpop.xlane.xlu0 %2190
    %v2192 = vsel %vm2143, %v2095, 0.0
    %2193 = vadd.xlane.f32.xlu0 %v2192
    %v2194 = vpop.xlane.xlu0 %2193
    %v2195 = vsel %vm2143, %v2096, 0.0
    %2196 = vadd.xlane.f32.xlu0 %v2195
    %v2197 = vpop.xlane.xlu0 %2196
    %v2198 = vsel %vm2143, %v2097, 0.0
    %2199 = vadd.xlane.f32.xlu0 %v2198
    %v2200 = vpop.xlane.xlu0 %2199
    %v2201 = vsel %vm2143, %v2098, 0.0
    %2202 = vadd.xlane.f32.xlu0 %v2201
    %v2203 = vpop.xlane.xlu0 %2202
    %v2204 = vsel %vm2143, %v2099, 0.0
    %2205 = vadd.xlane.f32.xlu0 %v2204
    %v2206 = vpop.xlane.xlu0 %2205
    %v2207 = vsel %vm2143, %v2100, 0.0
    %2208 = vadd.xlane.f32.xlu0 %v2207
    %v2209 = vpop.xlane.xlu0 %2208
    %v2210 = vsel %vm2143, %v2101, 0.0
    %2211 = vadd.xlane.f32.xlu0 %v2210
    %v2212 = vpop.xlane.xlu0 %2211
    %v2213 = vsel %vm2143, %v2102, 0.0
    %2214 = vadd.xlane.f32.xlu0 %v2213
    %v2215 = vpop.xlane.xlu0 %2214
    %v2216 = vsel %vm2143, %v2103, 0.0
    %2217 = vadd.xlane.f32.xlu0 %v2216
    %v2218 = vpop.xlane.xlu0 %2217
    %v2219 = vsel %vm2143, %v2104, 0.0
    %2220 = vadd.xlane.f32.xlu0 %v2219
    %v2221 = vpop.xlane.xlu0 %2220
    %v2222 = vsel %vm2143, %v2105, 0.0
    %2223 = vadd.xlane.f32.xlu0 %v2222
    %v2224 = vpop.xlane.xlu0 %2223
    %v2225 = vsel %vm2143, %v2106, 0.0
    %2226 = vadd.xlane.f32.xlu0 %v2225
    %v2227 = vpop.xlane.xlu0 %2226
    %v2228 = vsel %vm2143, %v2107, 0.0
    %2229 = vadd.xlane.f32.xlu0 %v2228
    %v2230 = vpop.xlane.xlu0 %2229
    %v2231 = vsel %vm2143, %v2108, 0.0
    %2232 = vadd.xlane.f32.xlu0 %v2231
    %v2233 = vpop.xlane.xlu0 %2232
    %v2234 = vsel %vm2143, %v2109, 0.0
    %2235 = vadd.xlane.f32.xlu0 %v2234
    %v2236 = vpop.xlane.xlu0 %2235
    %v2237 = vsel %vm2143, %v2110, 0.0
    %2238 = vadd.xlane.f32.xlu0 %v2237
    %v2239 = vpop.xlane.xlu0 %2238
    %v2240 = vsel %vm2143, %v2111, 0.0
    %2241 = vadd.xlane.f32.xlu0 %v2240
    %v2242 = vpop.xlane.xlu0 %2241
    %v2243 = vsel %vm2143, %v2112, 0.0
    %2244 = vadd.xlane.f32.xlu0 %v2243
    %v2245 = vpop.xlane.xlu0 %2244
    %v2246 = vsel %vm2143, %v2113, 0.0
    %2247 = vadd.xlane.f32.xlu0 %v2246
    %v2248 = vpop.xlane.xlu0 %2247
    %v2249 = vsel %vm2143, %v2114, 0.0
    %2250 = vadd.xlane.f32.xlu0 %v2249
    %v2251 = vpop.xlane.xlu0 %2250
    %v2252 = vsel %vm2143, %v2115, 0.0
    %2253 = vadd.xlane.f32.xlu0 %v2252
    %v2254 = vpop.xlane.xlu0 %2253
    %v2255 = vsel %vm2143, %v2116, 0.0
    %2256 = vadd.xlane.f32.xlu0 %v2255
    %v2257 = vpop.xlane.xlu0 %2256
    %v2258 = vsel %vm2143, %v2117, 0.0
    %2259 = vadd.xlane.f32.xlu0 %v2258
    %v2260 = vpop.xlane.xlu0 %2259
    %v2261 = vsel %vm2143, %v2118, 0.0
    %2262 = vadd.xlane.f32.xlu0 %v2261
    %v2263 = vpop.xlane.xlu0 %2262
    %v2264 = vsel %vm2143, %v2119, 0.0
    %2265 = vadd.xlane.f32.xlu0 %v2264
    %v2266 = vpop.xlane.xlu0 %2265
    %v2267 = vsel %vm2143, %v2120, 0.0
    %2268 = vadd.xlane.f32.xlu0 %v2267
    %v2269 = vpop.xlane.xlu0 %2268
    %v2270 = vsel %vm2143, %v2121, 0.0
    %2271 = vadd.xlane.f32.xlu0 %v2270
    %v2272 = vpop.xlane.xlu0 %2271
    %v2273 = vsel %vm2143, %v2122, 0.0
    %2274 = vadd.xlane.f32.xlu0 %v2273
    %v2275 = vpop.xlane.xlu0 %2274
    %v2276 = vsel %vm2143, %v2123, 0.0
    %2277 = vadd.xlane.f32.xlu0 %v2276
    %v2278 = vpop.xlane.xlu0 %2277
    %v2279 = vsel %vm2143, %v2124, 0.0
    %2280 = vadd.xlane.f32.xlu0 %v2279
    %v2281 = vpop.xlane.xlu0 %2280
    %v2282 = vsel %vm2143, %v2125, 0.0
    %2283 = vadd.xlane.f32.xlu0 %v2282
    %v2284 = vpop.xlane.xlu0 %2283
    %v2285 = vsel %vm2143, %v2126, 0.0
    %2286 = vadd.xlane.f32.xlu0 %v2285
    %v2287 = vpop.xlane.xlu0 %2286
    %v2288 = vsel %vm2143, %v2127, 0.0
    %2289 = vadd.xlane.f32.xlu0 %v2288
    %v2290 = vpop.xlane.xlu0 %2289
    %v2291 = vsel %vm2143, %v2128, 0.0
    %2292 = vadd.xlane.f32.xlu0 %v2291
    %v2293 = vpop.xlane.xlu0 %2292
    %v2294 = vsel %vm2143, %v2129, 0.0
    %2295 = vadd.xlane.f32.xlu0 %v2294
    %v2296 = vpop.xlane.xlu0 %2295
    %v2297 = vsel %vm2143, %v2130, 0.0
    %2298 = vadd.xlane.f32.xlu0 %v2297
    %v2299 = vpop.xlane.xlu0 %2298
    %v2300 = vsel %vm2143, %v2131, 0.0
    %2301 = vadd.xlane.f32.xlu0 %v2300
    %v2302 = vpop.xlane.xlu0 %2301
    %v2303 = vsel %vm2143, %v2132, 0.0
    %2304 = vadd.xlane.f32.xlu0 %v2303
    %v2305 = vpop.xlane.xlu0 %2304
    %v2306 = vsel %vm2143, %v2133, 0.0
    %2307 = vadd.xlane.f32.xlu0 %v2306
    %v2308 = vpop.xlane.xlu0 %2307
    %v2309 = vsel %vm2143, %v2134, 0.0
    %2310 = vadd.xlane.f32.xlu0 %v2309
    %v2311 = vpop.xlane.xlu0 %2310
    %v2312 = vsel %vm2143, %v2135, 0.0
    %2313 = vadd.xlane.f32.xlu0 %v2312
    %v2314 = vpop.xlane.xlu0 %2313
    %v2315 = vsel %vm2143, %v2136, 0.0
    %2316 = vadd.xlane.f32.xlu0 %v2315
    %v2317 = vpop.xlane.xlu0 %2316
    %v2318 = vsel %vm2143, %v2137, 0.0
    %2319 = vadd.xlane.f32.xlu0 %v2318
    %v2320 = vpop.xlane.xlu0 %2319
    %v2321 = vsel %vm2143, %v2138, 0.0
    %2322 = vadd.xlane.f32.xlu0 %v2321
    %v2323 = vpop.xlane.xlu0 %2322
    %v2324 = vsel %vm2143, %v2139, 0.0
    %2325 = vadd.xlane.f32.xlu0 %v2324
    %v2326 = vpop.xlane.xlu0 %2325
    %v2327 = vsel %vm2143, %v2140, 0.0
    %2328 = vadd.xlane.f32.xlu0 %v2327
    %v2329 = vpop.xlane.xlu0 %2328
    %v2330 = vsel %vm2143, %v2141, 0.0
    %2331 = vadd.xlane.f32.xlu0 %v2330
    %v2332 = vpop.xlane.xlu0 %2331
    %v2333 = vsel %vm2143, %v2142, 0.0
    %2334 = vadd.xlane.f32.xlu0 %v2333
    %v2335 = vpop.xlane.xlu0 %2334
    %s2337 = vtos %v527
    %v2338 = vstv %s2337
    %v2340 = vadd.f32 %v2146, %v2338
    %v2341 = vadd.f32 %v2149, %v2338
    %v2342 = vadd.f32 %v2152, %v2338
    %v2343 = vadd.f32 %v2155, %v2338
    %v2344 = vadd.f32 %v2158, %v2338
    %v2345 = vadd.f32 %v2161, %v2338
    %v2346 = vadd.f32 %v2164, %v2338
    %v2347 = vadd.f32 %v2167, %v2338
    %v2348 = vadd.f32 %v2170, %v2338
    %v2349 = vadd.f32 %v2173, %v2338
    %v2350 = vadd.f32 %v2176, %v2338
    %v2351 = vadd.f32 %v2179, %v2338
    %v2352 = vadd.f32 %v2182, %v2338
    %v2353 = vadd.f32 %v2185, %v2338
    %v2354 = vadd.f32 %v2188, %v2338
    %v2355 = vadd.f32 %v2191, %v2338
    %v2356 = vadd.f32 %v2194, %v2338
    %v2357 = vadd.f32 %v2197, %v2338
    %v2358 = vadd.f32 %v2200, %v2338
    %v2359 = vadd.f32 %v2203, %v2338
    %v2360 = vadd.f32 %v2206, %v2338
    %v2361 = vadd.f32 %v2209, %v2338
    %v2362 = vadd.f32 %v2212, %v2338
    %v2363 = vadd.f32 %v2215, %v2338
    %v2364 = vadd.f32 %v2218, %v2338
    %v2365 = vadd.f32 %v2221, %v2338
    %v2366 = vadd.f32 %v2224, %v2338
    %v2367 = vadd.f32 %v2227, %v2338
    %v2368 = vadd.f32 %v2230, %v2338
    %v2369 = vadd.f32 %v2233, %v2338
    %v2370 = vadd.f32 %v2236, %v2338
    %v2371 = vadd.f32 %v2239, %v2338
    %v2372 = vadd.f32 %v2242, %v2338
    %v2373 = vadd.f32 %v2245, %v2338
    %v2374 = vadd.f32 %v2248, %v2338
    %v2375 = vadd.f32 %v2251, %v2338
    %v2376 = vadd.f32 %v2254, %v2338
    %v2377 = vadd.f32 %v2257, %v2338
    %v2378 = vadd.f32 %v2260, %v2338
    %v2379 = vadd.f32 %v2263, %v2338
    %v2380 = vadd.f32 %v2266, %v2338
    %v2381 = vadd.f32 %v2269, %v2338
    %v2382 = vadd.f32 %v2272, %v2338
    %v2383 = vadd.f32 %v2275, %v2338
    %v2384 = vadd.f32 %v2278, %v2338
    %v2385 = vadd.f32 %v2281, %v2338
    %v2386 = vadd.f32 %v2284, %v2338
    %v2387 = vadd.f32 %v2287, %v2338
    %v2388 = vadd.f32 %v2290, %v2338
    %v2389 = vadd.f32 %v2293, %v2338
    %v2390 = vadd.f32 %v2296, %v2338
    %v2391 = vadd.f32 %v2299, %v2338
    %v2392 = vadd.f32 %v2302, %v2338
    %v2393 = vadd.f32 %v2305, %v2338
    %v2394 = vadd.f32 %v2308, %v2338
    %v2395 = vadd.f32 %v2311, %v2338
    %v2396 = vadd.f32 %v2314, %v2338
    %v2397 = vadd.f32 %v2317, %v2338
    %v2398 = vadd.f32 %v2320, %v2338
    %v2399 = vadd.f32 %v2323, %v2338
    %v2400 = vadd.f32 %v2326, %v2338
    %v2401 = vadd.f32 %v2329, %v2338
    %v2402 = vadd.f32 %v2332, %v2338
    %v2403 = vadd.f32 %v2335, %v2338
    %v2404 = vxor.u32 %v2340, 2147483648
    %v2405 = vxor.u32 %v2341, 2147483648
    %v2406 = vxor.u32 %v2342, 2147483648
    %v2407 = vxor.u32 %v2343, 2147483648
    %v2408 = vxor.u32 %v2344, 2147483648
    %v2409 = vxor.u32 %v2345, 2147483648
    %v2410 = vxor.u32 %v2346, 2147483648
    %v2411 = vxor.u32 %v2347, 2147483648
    %v2412 = vxor.u32 %v2348, 2147483648
    %v2413 = vxor.u32 %v2349, 2147483648
    %v2414 = vxor.u32 %v2350, 2147483648
    %v2415 = vxor.u32 %v2351, 2147483648
    %v2416 = vxor.u32 %v2352, 2147483648
    %v2417 = vxor.u32 %v2353, 2147483648
    %v2418 = vxor.u32 %v2354, 2147483648
    %v2419 = vxor.u32 %v2355, 2147483648
    %v2420 = vxor.u32 %v2356, 2147483648
    %v2421 = vxor.u32 %v2357, 2147483648
    %v2422 = vxor.u32 %v2358, 2147483648
    %v2423 = vxor.u32 %v2359, 2147483648
    %v2424 = vxor.u32 %v2360, 2147483648
    %v2425 = vxor.u32 %v2361, 2147483648
    %v2426 = vxor.u32 %v2362, 2147483648
    %v2427 = vxor.u32 %v2363, 2147483648
    %v2428 = vxor.u32 %v2364, 2147483648
    %v2429 = vxor.u32 %v2365, 2147483648
    %v2430 = vxor.u32 %v2366, 2147483648
    %v2431 = vxor.u32 %v2367, 2147483648
    %v2432 = vxor.u32 %v2368, 2147483648
    %v2433 = vxor.u32 %v2369, 2147483648
    %v2434 = vxor.u32 %v2370, 2147483648
    %v2435 = vxor.u32 %v2371, 2147483648
    %v2436 = vxor.u32 %v2372, 2147483648
    %v2437 = vxor.u32 %v2373, 2147483648
    %v2438 = vxor.u32 %v2374, 2147483648
    %v2439 = vxor.u32 %v2375, 2147483648
    %v2440 = vxor.u32 %v2376, 2147483648
    %v2441 = vxor.u32 %v2377, 2147483648
    %v2442 = vxor.u32 %v2378, 2147483648
    %v2443 = vxor.u32 %v2379, 2147483648
    %v2444 = vxor.u32 %v2380, 2147483648
    %v2445 = vxor.u32 %v2381, 2147483648
    %v2446 = vxor.u32 %v2382, 2147483648
    %v2447 = vxor.u32 %v2383, 2147483648
    %v2448 = vxor.u32 %v2384, 2147483648
    %v2449 = vxor.u32 %v2385, 2147483648
    %v2450 = vxor.u32 %v2386, 2147483648
    %v2451 = vxor.u32 %v2387, 2147483648
    %v2452 = vxor.u32 %v2388, 2147483648
    %v2453 = vxor.u32 %v2389, 2147483648
    %v2454 = vxor.u32 %v2390, 2147483648
    %v2455 = vxor.u32 %v2391, 2147483648
    %v2456 = vxor.u32 %v2392, 2147483648
    %v2457 = vxor.u32 %v2393, 2147483648
    %v2458 = vxor.u32 %v2394, 2147483648
    %v2459 = vxor.u32 %v2395, 2147483648
    %v2460 = vxor.u32 %v2396, 2147483648
    %v2461 = vxor.u32 %v2397, 2147483648
    %v2462 = vxor.u32 %v2398, 2147483648
    %v2463 = vxor.u32 %v2399, 2147483648
    %v2464 = vxor.u32 %v2400, 2147483648
    %v2465 = vxor.u32 %v2401, 2147483648
    %v2466 = vxor.u32 %v2402, 2147483648
    %v2467 = vxor.u32 %v2403, 2147483648
    %v2468 = vmul.f32 %v2404, 1.442695
    %v2469 = vpow.pop %v2468
    %v2470 = vmul.f32 %v2405, 1.442695
    %v2471 = vpow.pop %v2470
    %v2472 = vmul.f32 %v2406, 1.442695
    %v2473 = vpow.pop %v2472
    %v2474 = vmul.f32 %v2407, 1.442695
    %v2475 = vpow.pop %v2474
    %v2476 = vmul.f32 %v2408, 1.442695
    %v2477 = vpow.pop %v2476
    %v2478 = vmul.f32 %v2409, 1.442695
    %v2479 = vpow.pop %v2478
    %v2480 = vmul.f32 %v2410, 1.442695
    %v2481 = vpow.pop %v2480
    %v2482 = vmul.f32 %v2411, 1.442695
    %v2483 = vpow.pop %v2482
    %v2484 = vmul.f32 %v2412, 1.442695
    %v2485 = vpow.pop %v2484
    %v2486 = vmul.f32 %v2413, 1.442695
    %v2487 = vpow.pop %v2486
    %v2488 = vmul.f32 %v2414, 1.442695
    %v2489 = vpow.pop %v2488
    %v2490 = vmul.f32 %v2415, 1.442695
    %v2491 = vpow.pop %v2490
    %v2492 = vmul.f32 %v2416, 1.442695
    %v2493 = vpow.pop %v2492
    %v2494 = vmul.f32 %v2417, 1.442695
    %v2495 = vpow.pop %v2494
    %v2496 = vmul.f32 %v2418, 1.442695
    %v2497 = vpow.pop %v2496
    %v2498 = vmul.f32 %v2419, 1.442695
    %v2499 = vpow.pop %v2498
    %v2500 = vmul.f32 %v2420, 1.442695
    %v2501 = vpow.pop %v2500
    %v2502 = vmul.f32 %v2421, 1.442695
    %v2503 = vpow.pop %v2502
    %v2504 = vmul.f32 %v2422, 1.442695
    %v2505 = vpow.pop %v2504
    %v2506 = vmul.f32 %v2423, 1.442695
    %v2507 = vpow.pop %v2506
    %v2508 = vmul.f32 %v2424, 1.442695
    %v2509 = vpow.pop %v2508
    %v2510 = vmul.f32 %v2425, 1.442695
    %v2511 = vpow.pop %v2510
    %v2512 = vmul.f32 %v2426, 1.442695
    %v2513 = vpow.pop %v2512
    %v2514 = vmul.f32 %v2427, 1.442695
    %v2515 = vpow.pop %v2514
    %v2516 = vmul.f32 %v2428, 1.442695
    %v2517 = vpow.pop %v2516
    %v2518 = vmul.f32 %v2429, 1.442695
    %v2519 = vpow.pop %v2518
    %v2520 = vmul.f32 %v2430, 1.442695
    %v2521 = vpow.pop %v2520
    %v2522 = vmul.f32 %v2431, 1.442695
    %v2523 = vpow.pop %v2522
    %v2524 = vmul.f32 %v2432, 1.442695
    %v2525 = vpow.pop %v2524
    %v2526 = vmul.f32 %v2433, 1.442695
    %v2527 = vpow.pop %v2526
    %v2528 = vmul.f32 %v2434, 1.442695
    %v2529 = vpow.pop %v2528
    %v2530 = vmul.f32 %v2435, 1.442695
    %v2531 = vpow.pop %v2530
    %v2532 = vmul.f32 %v2436, 1.442695
    %v2533 = vpow.pop %v2532
    %v2534 = vmul.f32 %v2437, 1.442695
    %v2535 = vpow.pop %v2534
    %v2536 = vmul.f32 %v2438, 1.442695
    %v2537 = vpow.pop %v2536
    %v2538 = vmul.f32 %v2439, 1.442695
    %v2539 = vpow.pop %v2538
    %v2540 = vmul.f32 %v2440, 1.442695
    %v2541 = vpow.pop %v2540
    %v2542 = vmul.f32 %v2441, 1.442695
    %v2543 = vpow.pop %v2542
    %v2544 = vmul.f32 %v2442, 1.442695
    %v2545 = vpow.pop %v2544
    %v2546 = vmul.f32 %v2443, 1.442695
    %v2547 = vpow.pop %v2546
    %v2548 = vmul.f32 %v2444, 1.442695
    %v2549 = vpow.pop %v2548
    %v2550 = vmul.f32 %v2445, 1.442695
    %v2551 = vpow.pop %v2550
    %v2552 = vmul.f32 %v2446, 1.442695
    %v2553 = vpow.pop %v2552
    %v2554 = vmul.f32 %v2447, 1.442695
    %v2555 = vpow.pop %v2554
    %v2556 = vmul.f32 %v2448, 1.442695
    %v2557 = vpow.pop %v2556
    %v2558 = vmul.f32 %v2449, 1.442695
    %v2559 = vpow.pop %v2558
    %v2560 = vmul.f32 %v2450, 1.442695
    %v2561 = vpow.pop %v2560
    %v2562 = vmul.f32 %v2451, 1.442695
    %v2563 = vpow.pop %v2562
    %v2564 = vmul.f32 %v2452, 1.442695
    %v2565 = vpow.pop %v2564
    %v2566 = vmul.f32 %v2453, 1.442695
    %v2567 = vpow.pop %v2566
    %v2568 = vmul.f32 %v2454, 1.442695
    %v2569 = vpow.pop %v2568
    %v2570 = vmul.f32 %v2455, 1.442695
    %v2571 = vpow.pop %v2570
    %v2572 = vmul.f32 %v2456, 1.442695
    %v2573 = vpow.pop %v2572
    %v2574 = vmul.f32 %v2457, 1.442695
    %v2575 = vpow.pop %v2574
    %v2576 = vmul.f32 %v2458, 1.442695
    %v2577 = vpow.pop %v2576
    %v2578 = vmul.f32 %v2459, 1.442695
    %v2579 = vpow.pop %v2578
    %v2580 = vmul.f32 %v2460, 1.442695
    %v2581 = vpow.pop %v2580
    %v2582 = vmul.f32 %v2461, 1.442695
    %v2583 = vpow.pop %v2582
    %v2584 = vmul.f32 %v2462, 1.442695
    %v2585 = vpow.pop %v2584
    %v2586 = vmul.f32 %v2463, 1.442695
    %v2587 = vpow.pop %v2586
    %v2588 = vmul.f32 %v2464, 1.442695
    %v2589 = vpow.pop %v2588
    %v2590 = vmul.f32 %v2465, 1.442695
    %v2591 = vpow.pop %v2590
    %v2592 = vmul.f32 %v2466, 1.442695
    %v2593 = vpow.pop %v2592
    %v2594 = vmul.f32 %v2467, 1.442695
    %v2595 = vpow.pop %v2594
    %v2596 = vadd.f32 %v2469, 1.0
    %v2597 = vadd.f32 %v2471, 1.0
    %v2598 = vadd.f32 %v2473, 1.0
    %v2599 = vadd.f32 %v2475, 1.0
    %v2600 = vadd.f32 %v2477, 1.0
    %v2601 = vadd.f32 %v2479, 1.0
    %v2602 = vadd.f32 %v2481, 1.0
    %v2603 = vadd.f32 %v2483, 1.0
    %v2604 = vadd.f32 %v2485, 1.0
    %v2605 = vadd.f32 %v2487, 1.0
    %v2606 = vadd.f32 %v2489, 1.0
    %v2607 = vadd.f32 %v2491, 1.0
    %v2608 = vadd.f32 %v2493, 1.0
    %v2609 = vadd.f32 %v2495, 1.0
    %v2610 = vadd.f32 %v2497, 1.0
    %v2611 = vadd.f32 %v2499, 1.0
    %v2612 = vadd.f32 %v2501, 1.0
    %v2613 = vadd.f32 %v2503, 1.0
    %v2614 = vadd.f32 %v2505, 1.0
    %v2615 = vadd.f32 %v2507, 1.0
    %v2616 = vadd.f32 %v2509, 1.0
    %v2617 = vadd.f32 %v2511, 1.0
    %v2618 = vadd.f32 %v2513, 1.0
    %v2619 = vadd.f32 %v2515, 1.0
    %v2620 = vadd.f32 %v2517, 1.0
    %v2621 = vadd.f32 %v2519, 1.0
    %v2622 = vadd.f32 %v2521, 1.0
    %v2623 = vadd.f32 %v2523, 1.0
    %v2624 = vadd.f32 %v2525, 1.0
    %v2625 = vadd.f32 %v2527, 1.0
    %v2626 = vadd.f32 %v2529, 1.0
    %v2627 = vadd.f32 %v2531, 1.0
    %v2628 = vadd.f32 %v2533, 1.0
    %v2629 = vadd.f32 %v2535, 1.0
    %v2630 = vadd.f32 %v2537, 1.0
    %v2631 = vadd.f32 %v2539, 1.0
    %v2632 = vadd.f32 %v2541, 1.0
    %v2633 = vadd.f32 %v2543, 1.0
    %v2634 = vadd.f32 %v2545, 1.0
    %v2635 = vadd.f32 %v2547, 1.0
    %v2636 = vadd.f32 %v2549, 1.0
    %v2637 = vadd.f32 %v2551, 1.0
    %v2638 = vadd.f32 %v2553, 1.0
    %v2639 = vadd.f32 %v2555, 1.0
    %v2640 = vadd.f32 %v2557, 1.0
    %v2641 = vadd.f32 %v2559, 1.0
    %v2642 = vadd.f32 %v2561, 1.0
    %v2643 = vadd.f32 %v2563, 1.0
    %v2644 = vadd.f32 %v2565, 1.0
    %v2645 = vadd.f32 %v2567, 1.0
    %v2646 = vadd.f32 %v2569, 1.0
    %v2647 = vadd.f32 %v2571, 1.0
    %v2648 = vadd.f32 %v2573, 1.0
    %v2649 = vadd.f32 %v2575, 1.0
    %v2650 = vadd.f32 %v2577, 1.0
    %v2651 = vadd.f32 %v2579, 1.0
    %v2652 = vadd.f32 %v2581, 1.0
    %v2653 = vadd.f32 %v2583, 1.0
    %v2654 = vadd.f32 %v2585, 1.0
    %v2655 = vadd.f32 %v2587, 1.0
    %v2656 = vadd.f32 %v2589, 1.0
    %v2657 = vadd.f32 %v2591, 1.0
    %v2658 = vadd.f32 %v2593, 1.0
    %v2659 = vadd.f32 %v2595, 1.0
    %v2660 = vrcp.pop %v2596
    %v2661 = vmul.f32 1.0, %v2660
    %v2662 = vrcp.pop %v2597
    %v2663 = vmul.f32 1.0, %v2662
    %v2664 = vrcp.pop %v2598
    %v2665 = vmul.f32 1.0, %v2664
    %v2666 = vrcp.pop %v2599
    %v2667 = vmul.f32 1.0, %v2666
    %v2668 = vrcp.pop %v2600
    %v2669 = vmul.f32 1.0, %v2668
    %v2670 = vrcp.pop %v2601
    %v2671 = vmul.f32 1.0, %v2670
    %v2672 = vrcp.pop %v2602
    %v2673 = vmul.f32 1.0, %v2672
    %v2674 = vrcp.pop %v2603
    %v2675 = vmul.f32 1.0, %v2674
    %v2676 = vrcp.pop %v2604
    %v2677 = vmul.f32 1.0, %v2676
    %v2678 = vrcp.pop %v2605
    %v2679 = vmul.f32 1.0, %v2678
    %v2680 = vrcp.pop %v2606
    %v2681 = vmul.f32 1.0, %v2680
    %v2682 = vrcp.pop %v2607
    %v2683 = vmul.f32 1.0, %v2682
    %v2684 = vrcp.pop %v2608
    %v2685 = vmul.f32 1.0, %v2684
    %v2686 = vrcp.pop %v2609
    %v2687 = vmul.f32 1.0, %v2686
    %v2688 = vrcp.pop %v2610
    %v2689 = vmul.f32 1.0, %v2688
    %v2690 = vrcp.pop %v2611
    %v2691 = vmul.f32 1.0, %v2690
    %v2692 = vrcp.pop %v2612
    %v2693 = vmul.f32 1.0, %v2692
    %v2694 = vrcp.pop %v2613
    %v2695 = vmul.f32 1.0, %v2694
    %v2696 = vrcp.pop %v2614
    %v2697 = vmul.f32 1.0, %v2696
    %v2698 = vrcp.pop %v2615
    %v2699 = vmul.f32 1.0, %v2698
    %v2700 = vrcp.pop %v2616
    %v2701 = vmul.f32 1.0, %v2700
    %v2702 = vrcp.pop %v2617
    %v2703 = vmul.f32 1.0, %v2702
    %v2704 = vrcp.pop %v2618
    %v2705 = vmul.f32 1.0, %v2704
    %v2706 = vrcp.pop %v2619
    %v2707 = vmul.f32 1.0, %v2706
    %v2708 = vrcp.pop %v2620
    %v2709 = vmul.f32 1.0, %v2708
    %v2710 = vrcp.pop %v2621
    %v2711 = vmul.f32 1.0, %v2710
    %v2712 = vrcp.pop %v2622
    %v2713 = vmul.f32 1.0, %v2712
    %v2714 = vrcp.pop %v2623
    %v2715 = vmul.f32 1.0, %v2714
    %v2716 = vrcp.pop %v2624
    %v2717 = vmul.f32 1.0, %v2716
    %v2718 = vrcp.pop %v2625
    %v2719 = vmul.f32 1.0, %v2718
    %v2720 = vrcp.pop %v2626
    %v2721 = vmul.f32 1.0, %v2720
    %v2722 = vrcp.pop %v2627
    %v2723 = vmul.f32 1.0, %v2722
    %v2724 = vrcp.pop %v2628
    %v2725 = vmul.f32 1.0, %v2724
    %v2726 = vrcp.pop %v2629
    %v2727 = vmul.f32 1.0, %v2726
    %v2728 = vrcp.pop %v2630
    %v2729 = vmul.f32 1.0, %v2728
    %v2730 = vrcp.pop %v2631
    %v2731 = vmul.f32 1.0, %v2730
    %v2732 = vrcp.pop %v2632
    %v2733 = vmul.f32 1.0, %v2732
    %v2734 = vrcp.pop %v2633
    %v2735 = vmul.f32 1.0, %v2734
    %v2736 = vrcp.pop %v2634
    %v2737 = vmul.f32 1.0, %v2736
    %v2738 = vrcp.pop %v2635
    %v2739 = vmul.f32 1.0, %v2738
    %v2740 = vrcp.pop %v2636
    %v2741 = vmul.f32 1.0, %v2740
    %v2742 = vrcp.pop %v2637
    %v2743 = vmul.f32 1.0, %v2742
    %v2744 = vrcp.pop %v2638
    %v2745 = vmul.f32 1.0, %v2744
    %v2746 = vrcp.pop %v2639
    %v2747 = vmul.f32 1.0, %v2746
    %v2748 = vrcp.pop %v2640
    %v2749 = vmul.f32 1.0, %v2748
    %v2750 = vrcp.pop %v2641
    %v2751 = vmul.f32 1.0, %v2750
    %v2752 = vrcp.pop %v2642
    %v2753 = vmul.f32 1.0, %v2752
    %v2754 = vrcp.pop %v2643
    %v2755 = vmul.f32 1.0, %v2754
    %v2756 = vrcp.pop %v2644
    %v2757 = vmul.f32 1.0, %v2756
    %v2758 = vrcp.pop %v2645
    %v2759 = vmul.f32 1.0, %v2758
    %v2760 = vrcp.pop %v2646
    %v2761 = vmul.f32 1.0, %v2760
    %v2762 = vrcp.pop %v2647
    %v2763 = vmul.f32 1.0, %v2762
    %v2764 = vrcp.pop %v2648
    %v2765 = vmul.f32 1.0, %v2764
    %v2766 = vrcp.pop %v2649
    %v2767 = vmul.f32 1.0, %v2766
    %v2768 = vrcp.pop %v2650
    %v2769 = vmul.f32 1.0, %v2768
    %v2770 = vrcp.pop %v2651
    %v2771 = vmul.f32 1.0, %v2770
    %v2772 = vrcp.pop %v2652
    %v2773 = vmul.f32 1.0, %v2772
    %v2774 = vrcp.pop %v2653
    %v2775 = vmul.f32 1.0, %v2774
    %v2776 = vrcp.pop %v2654
    %v2777 = vmul.f32 1.0, %v2776
    %v2778 = vrcp.pop %v2655
    %v2779 = vmul.f32 1.0, %v2778
    %v2780 = vrcp.pop %v2656
    %v2781 = vmul.f32 1.0, %v2780
    %v2782 = vrcp.pop %v2657
    %v2783 = vmul.f32 1.0, %v2782
    %v2784 = vrcp.pop %v2658
    %v2785 = vmul.f32 1.0, %v2784
    %v2786 = vrcp.pop %v2659
    %v2787 = vmul.f32 1.0, %v2786
    %v2788 = vld [vmem:[%s1] sm:$0xff]
    %v2789 = vld [vmem:[%s1 + $0x8] sm:$0xff]
    %v2790 = vld [vmem:[%s1 + $0x10] sm:$0xff]
    %v2791 = vld [vmem:[%s1 + $0x18] sm:$0xff]
    %v2792 = vld [vmem:[%s2] sm:$0xff]
    %v2793 = vld [vmem:[%s2 + $0x8] sm:$0xff]
    %v2794 = vld [vmem:[%s2 + $0x10] sm:$0xff]
    %v2795 = vld [vmem:[%s2 + $0x18] sm:$0xff]
    %v2796 = vsub.f32 1.0, %v2792
    %v2797 = vsub.f32 1.0, %v2793
    %v2798 = vsub.f32 1.0, %v2794
    %v2799 = vsub.f32 1.0, %v2795
    %v2800 = vmul.f32 %v2788, %v2796
    %v2801 = vmul.f32 %v2789, %v2797
    %v2802 = vmul.f32 %v2790, %v2798
    %v2803 = vmul.f32 %v2791, %v2799
    %v2804 = vsel %vm2143, %v2800, 0.0
    %2805 = vadd.xlane.f32.xlu0 %v2804
    %v2806 = vpop.xlane.xlu0 %2805
    %v2807 = vsel %vm2143, %v2801, 0.0
    %2808 = vadd.xlane.f32.xlu0 %v2807
    %v2809 = vpop.xlane.xlu0 %2808
    %v2810 = vsel %vm2143, %v2802, 0.0
    %2811 = vadd.xlane.f32.xlu0 %v2810
    %v2812 = vpop.xlane.xlu0 %2811
    %v2813 = vsel %vm2143, %v2803, 0.0
    %2814 = vadd.xlane.f32.xlu0 %v2813
    %v2815 = vpop.xlane.xlu0 %2814
    %v2820 = vlaneseq
    %v2821 = vshrl.u32 %v2820, 7
    %v2822 = vsub.s32 0, %v2821
    %v2823 = vrot.slane %v2800, %v2822
    %2825 = vbcast.lane.b32.xlu0 %v2823, 256
    %v2826 = vpop.permute.xlu0 %2825
    %s2828 = sor.u32 256, 8
    %2829 = vbcast.lane.b32.xlu0 %v2823, %s2828
    %v2830 = vpop.permute.xlu0 %2829
    %v2831 = vlaneseq
    %v2832 = vshrl.u32 %v2831, 7
    %v2833 = vsub.s32 1, %v2832
    %v2834 = vrot.slane %v2800, %v2833
    %2836 = vbcast.lane.b32.xlu0 %v2834, 256
    %v2837 = vpop.permute.xlu0 %2836
    %s2839 = sor.u32 256, 8
    %2840 = vbcast.lane.b32.xlu0 %v2834, %s2839
    %v2841 = vpop.permute.xlu0 %2840
    %v2842 = vlaneseq
    %v2843 = vshrl.u32 %v2842, 7
    %v2844 = vsub.s32 2, %v2843
    %v2845 = vrot.slane %v2800, %v2844
    %2847 = vbcast.lane.b32.xlu0 %v2845, 256
    %v2848 = vpop.permute.xlu0 %2847
    %s2850 = sor.u32 256, 8
    %2851 = vbcast.lane.b32.xlu0 %v2845, %s2850
    %v2852 = vpop.permute.xlu0 %2851
    %v2853 = vlaneseq
    %v2854 = vshrl.u32 %v2853, 7
    %v2855 = vsub.s32 3, %v2854
    %v2856 = vrot.slane %v2800, %v2855
    %2858 = vbcast.lane.b32.xlu0 %v2856, 256
    %v2859 = vpop.permute.xlu0 %2858
    %s2861 = sor.u32 256, 8
    %2862 = vbcast.lane.b32.xlu0 %v2856, %s2861
    %v2863 = vpop.permute.xlu0 %2862
    %v2864 = vlaneseq
    %v2865 = vshrl.u32 %v2864, 7
    %v2866 = vsub.s32 4, %v2865
    %v2867 = vrot.slane %v2800, %v2866
    %2869 = vbcast.lane.b32.xlu0 %v2867, 256
    %v2870 = vpop.permute.xlu0 %2869
    %s2872 = sor.u32 256, 8
    %2873 = vbcast.lane.b32.xlu0 %v2867, %s2872
    %v2874 = vpop.permute.xlu0 %2873
    %v2875 = vlaneseq
    %v2876 = vshrl.u32 %v2875, 7
    %v2877 = vsub.s32 5, %v2876
    %v2878 = vrot.slane %v2800, %v2877
    %2880 = vbcast.lane.b32.xlu0 %v2878, 256
    %v2881 = vpop.permute.xlu0 %2880
    %s2883 = sor.u32 256, 8
    %2884 = vbcast.lane.b32.xlu0 %v2878, %s2883
    %v2885 = vpop.permute.xlu0 %2884
    %v2886 = vlaneseq
    %v2887 = vshrl.u32 %v2886, 7
    %v2888 = vsub.s32 6, %v2887
    %v2889 = vrot.slane %v2800, %v2888
    %2891 = vbcast.lane.b32.xlu0 %v2889, 256
    %v2892 = vpop.permute.xlu0 %2891
    %s2894 = sor.u32 256, 8
    %2895 = vbcast.lane.b32.xlu0 %v2889, %s2894
    %v2896 = vpop.permute.xlu0 %2895
    %v2897 = vlaneseq
    %v2898 = vshrl.u32 %v2897, 7
    %v2899 = vsub.s32 7, %v2898
    %v2900 = vrot.slane %v2800, %v2899
    %2902 = vbcast.lane.b32.xlu0 %v2900, 256
    %v2903 = vpop.permute.xlu0 %2902
    %s2905 = sor.u32 256, 8
    %2906 = vbcast.lane.b32.xlu0 %v2900, %s2905
    %v2907 = vpop.permute.xlu0 %2906
    %v2908 = vlaneseq
    %v2909 = vshrl.u32 %v2908, 7
    %v2910 = vsub.s32 0, %v2909
    %v2911 = vrot.slane %v2801, %v2910
    %2913 = vbcast.lane.b32.xlu0 %v2911, 256
    %v2914 = vpop.permute.xlu0 %2913
    %s2916 = sor.u32 256, 8
    %2917 = vbcast.lane.b32.xlu0 %v2911, %s2916
    %v2918 = vpop.permute.xlu0 %2917
    %v2919 = vlaneseq
    %v2920 = vshrl.u32 %v2919, 7
    %v2921 = vsub.s32 1, %v2920
    %v2922 = vrot.slane %v2801, %v2921
    %2924 = vbcast.lane.b32.xlu0 %v2922, 256
    %v2925 = vpop.permute.xlu0 %2924
    %s2927 = sor.u32 256, 8
    %2928 = vbcast.lane.b32.xlu0 %v2922, %s2927
    %v2929 = vpop.permute.xlu0 %2928
    %v2930 = vlaneseq
    %v2931 = vshrl.u32 %v2930, 7
    %v2932 = vsub.s32 2, %v2931
    %v2933 = vrot.slane %v2801, %v2932
    %2935 = vbcast.lane.b32.xlu0 %v2933, 256
    %v2936 = vpop.permute.xlu0 %2935
    %s2938 = sor.u32 256, 8
    %2939 = vbcast.lane.b32.xlu0 %v2933, %s2938
    %v2940 = vpop.permute.xlu0 %2939
    %v2941 = vlaneseq
    %v2942 = vshrl.u32 %v2941, 7
    %v2943 = vsub.s32 3, %v2942
    %v2944 = vrot.slane %v2801, %v2943
    %2946 = vbcast.lane.b32.xlu0 %v2944, 256
    %v2947 = vpop.permute.xlu0 %2946
    %s2949 = sor.u32 256, 8
    %2950 = vbcast.lane.b32.xlu0 %v2944, %s2949
    %v2951 = vpop.permute.xlu0 %2950
    %v2952 = vlaneseq
    %v2953 = vshrl.u32 %v2952, 7
    %v2954 = vsub.s32 4, %v2953
    %v2955 = vrot.slane %v2801, %v2954
    %2957 = vbcast.lane.b32.xlu0 %v2955, 256
    %v2958 = vpop.permute.xlu0 %2957
    %s2960 = sor.u32 256, 8
    %2961 = vbcast.lane.b32.xlu0 %v2955, %s2960
    %v2962 = vpop.permute.xlu0 %2961
    %v2963 = vlaneseq
    %v2964 = vshrl.u32 %v2963, 7
    %v2965 = vsub.s32 5, %v2964
    %v2966 = vrot.slane %v2801, %v2965
    %2968 = vbcast.lane.b32.xlu0 %v2966, 256
    %v2969 = vpop.permute.xlu0 %2968
    %s2971 = sor.u32 256, 8
    %2972 = vbcast.lane.b32.xlu0 %v2966, %s2971
    %v2973 = vpop.permute.xlu0 %2972
    %v2974 = vlaneseq
    %v2975 = vshrl.u32 %v2974, 7
    %v2976 = vsub.s32 6, %v2975
    %v2977 = vrot.slane %v2801, %v2976
    %2979 = vbcast.lane.b32.xlu0 %v2977, 256
    %v2980 = vpop.permute.xlu0 %2979
    %s2982 = sor.u32 256, 8
    %2983 = vbcast.lane.b32.xlu0 %v2977, %s2982
    %v2984 = vpop.permute.xlu0 %2983
    %v2985 = vlaneseq
    %v2986 = vshrl.u32 %v2985, 7
    %v2987 = vsub.s32 7, %v2986
    %v2988 = vrot.slane %v2801, %v2987
    %2990 = vbcast.lane.b32.xlu0 %v2988, 256
    %v2991 = vpop.permute.xlu0 %2990
    %s2993 = sor.u32 256, 8
    %2994 = vbcast.lane.b32.xlu0 %v2988, %s2993
    %v2995 = vpop.permute.xlu0 %2994
    %v2996 = vlaneseq
    %v2997 = vshrl.u32 %v2996, 7
    %v2998 = vsub.s32 0, %v2997
    %v2999 = vrot.slane %v2802, %v2998
    %3001 = vbcast.lane.b32.xlu0 %v2999, 256
    %v3002 = vpop.permute.xlu0 %3001
    %s3004 = sor.u32 256, 8
    %3005 = vbcast.lane.b32.xlu0 %v2999, %s3004
    %v3006 = vpop.permute.xlu0 %3005
    %v3007 = vlaneseq
    %v3008 = vshrl.u32 %v3007, 7
    %v3009 = vsub.s32 1, %v3008
    %v3010 = vrot.slane %v2802, %v3009
    %3012 = vbcast.lane.b32.xlu0 %v3010, 256
    %v3013 = vpop.permute.xlu0 %3012
    %s3015 = sor.u32 256, 8
    %3016 = vbcast.lane.b32.xlu0 %v3010, %s3015
    %v3017 = vpop.permute.xlu0 %3016
    %v3018 = vlaneseq
    %v3019 = vshrl.u32 %v3018, 7
    %v3020 = vsub.s32 2, %v3019
    %v3021 = vrot.slane %v2802, %v3020
    %3023 = vbcast.lane.b32.xlu0 %v3021, 256
    %v3024 = vpop.permute.xlu0 %3023
    %s3026 = sor.u32 256, 8
    %3027 = vbcast.lane.b32.xlu0 %v3021, %s3026
    %v3028 = vpop.permute.xlu0 %3027
    %v3029 = vlaneseq
    %v3030 = vshrl.u32 %v3029, 7
    %v3031 = vsub.s32 3, %v3030
    %v3032 = vrot.slane %v2802, %v3031
    %3034 = vbcast.lane.b32.xlu0 %v3032, 256
    %v3035 = vpop.permute.xlu0 %3034
    %s3037 = sor.u32 256, 8
    %3038 = vbcast.lane.b32.xlu0 %v3032, %s3037
    %v3039 = vpop.permute.xlu0 %3038
    %v3040 = vlaneseq
    %v3041 = vshrl.u32 %v3040, 7
    %v3042 = vsub.s32 4, %v3041
    %v3043 = vrot.slane %v2802, %v3042
    %3045 = vbcast.lane.b32.xlu0 %v3043, 256
    %v3046 = vpop.permute.xlu0 %3045
    %s3048 = sor.u32 256, 8
    %3049 = vbcast.lane.b32.xlu0 %v3043, %s3048
    %v3050 = vpop.permute.xlu0 %3049
    %v3051 = vlaneseq
    %v3052 = vshrl.u32 %v3051, 7
    %v3053 = vsub.s32 5, %v3052
    %v3054 = vrot.slane %v2802, %v3053
    %3056 = vbcast.lane.b32.xlu0 %v3054, 256
    %v3057 = vpop.permute.xlu0 %3056
    %s3059 = sor.u32 256, 8
    %3060 = vbcast.lane.b32.xlu0 %v3054, %s3059
    %v3061 = vpop.permute.xlu0 %3060
    %v3062 = vlaneseq
    %v3063 = vshrl.u32 %v3062, 7
    %v3064 = vsub.s32 6, %v3063
    %v3065 = vrot.slane %v2802, %v3064
    %3067 = vbcast.lane.b32.xlu0 %v3065, 256
    %v3068 = vpop.permute.xlu0 %3067
    %s3070 = sor.u32 256, 8
    %3071 = vbcast.lane.b32.xlu0 %v3065, %s3070
    %v3072 = vpop.permute.xlu0 %3071
    %v3073 = vlaneseq
    %v3074 = vshrl.u32 %v3073, 7
    %v3075 = vsub.s32 7, %v3074
    %v3076 = vrot.slane %v2802, %v3075
    %3078 = vbcast.lane.b32.xlu0 %v3076, 256
    %v3079 = vpop.permute.xlu0 %3078
    %s3081 = sor.u32 256, 8
    %3082 = vbcast.lane.b32.xlu0 %v3076, %s3081
    %v3083 = vpop.permute.xlu0 %3082
    %v3084 = vlaneseq
    %v3085 = vshrl.u32 %v3084, 7
    %v3086 = vsub.s32 0, %v3085
    %v3087 = vrot.slane %v2803, %v3086
    %3089 = vbcast.lane.b32.xlu0 %v3087, 256
    %v3090 = vpop.permute.xlu0 %3089
    %s3092 = sor.u32 256, 8
    %3093 = vbcast.lane.b32.xlu0 %v3087, %s3092
    %v3094 = vpop.permute.xlu0 %3093
    %v3095 = vlaneseq
    %v3096 = vshrl.u32 %v3095, 7
    %v3097 = vsub.s32 1, %v3096
    %v3098 = vrot.slane %v2803, %v3097
    %3100 = vbcast.lane.b32.xlu0 %v3098, 256
    %v3101 = vpop.permute.xlu0 %3100
    %s3103 = sor.u32 256, 8
    %3104 = vbcast.lane.b32.xlu0 %v3098, %s3103
    %v3105 = vpop.permute.xlu0 %3104
    %v3106 = vlaneseq
    %v3107 = vshrl.u32 %v3106, 7
    %v3108 = vsub.s32 2, %v3107
    %v3109 = vrot.slane %v2803, %v3108
    %3111 = vbcast.lane.b32.xlu0 %v3109, 256
    %v3112 = vpop.permute.xlu0 %3111
    %s3114 = sor.u32 256, 8
    %3115 = vbcast.lane.b32.xlu0 %v3109, %s3114
    %v3116 = vpop.permute.xlu0 %3115
    %v3117 = vlaneseq
    %v3118 = vshrl.u32 %v3117, 7
    %v3119 = vsub.s32 3, %v3118
    %v3120 = vrot.slane %v2803, %v3119
    %3122 = vbcast.lane.b32.xlu0 %v3120, 256
    %v3123 = vpop.permute.xlu0 %3122
    %s3125 = sor.u32 256, 8
    %3126 = vbcast.lane.b32.xlu0 %v3120, %s3125
    %v3127 = vpop.permute.xlu0 %3126
    %v3128 = vlaneseq
    %v3129 = vshrl.u32 %v3128, 7
    %v3130 = vsub.s32 4, %v3129
    %v3131 = vrot.slane %v2803, %v3130
    %3133 = vbcast.lane.b32.xlu0 %v3131, 256
    %v3134 = vpop.permute.xlu0 %3133
    %s3136 = sor.u32 256, 8
    %3137 = vbcast.lane.b32.xlu0 %v3131, %s3136
    %v3138 = vpop.permute.xlu0 %3137
    %v3139 = vlaneseq
    %v3140 = vshrl.u32 %v3139, 7
    %v3141 = vsub.s32 5, %v3140
    %v3142 = vrot.slane %v2803, %v3141
    %3144 = vbcast.lane.b32.xlu0 %v3142, 256
    %v3145 = vpop.permute.xlu0 %3144
    %s3147 = sor.u32 256, 8
    %3148 = vbcast.lane.b32.xlu0 %v3142, %s3147
    %v3149 = vpop.permute.xlu0 %3148
    %v3150 = vlaneseq
    %v3151 = vshrl.u32 %v3150, 7
    %v3152 = vsub.s32 6, %v3151
    %v3153 = vrot.slane %v2803, %v3152
    %3155 = vbcast.lane.b32.xlu0 %v3153, 256
    %v3156 = vpop.permute.xlu0 %3155
    %s3158 = sor.u32 256, 8
    %3159 = vbcast.lane.b32.xlu0 %v3153, %s3158
    %v3160 = vpop.permute.xlu0 %3159
    %v3161 = vlaneseq
    %v3162 = vshrl.u32 %v3161, 7
    %v3163 = vsub.s32 7, %v3162
    %v3164 = vrot.slane %v2803, %v3163
    %3166 = vbcast.lane.b32.xlu0 %v3164, 256
    %v3167 = vpop.permute.xlu0 %3166
    %s3169 = sor.u32 256, 8
    %3170 = vbcast.lane.b32.xlu0 %v3164, %s3169
    %v3171 = vpop.permute.xlu0 %3170
    %v3236 = vmul.f32 %v2661, %v2826
    %v3237 = vmul.f32 %v2663, %v2830
    %v3238 = vmul.f32 %v2665, %v2837
    %v3239 = vmul.f32 %v2667, %v2841
    %v3240 = vmul.f32 %v2669, %v2848
    %v3241 = vmul.f32 %v2671, %v2852
    %v3242 = vmul.f32 %v2673, %v2859
    %v3243 = vmul.f32 %v2675, %v2863
    %v3244 = vmul.f32 %v2677, %v2870
    %v3245 = vmul.f32 %v2679, %v2874
    %v3246 = vmul.f32 %v2681, %v2881
    %v3247 = vmul.f32 %v2683, %v2885
    %v3248 = vmul.f32 %v2685, %v2892
    %v3249 = vmul.f32 %v2687, %v2896
    %v3250 = vmul.f32 %v2689, %v2903
    %v3251 = vmul.f32 %v2691, %v2907
    %v3252 = vmul.f32 %v2693, %v2914
    %v3253 = vmul.f32 %v2695, %v2918
    %v3254 = vmul.f32 %v2697, %v2925
    %v3255 = vmul.f32 %v2699, %v2929
    %v3256 = vmul.f32 %v2701, %v2936
    %v3257 = vmul.f32 %v2703, %v2940
    %v3258 = vmul.f32 %v2705, %v2947
    %v3259 = vmul.f32 %v2707, %v2951
    %v3260 = vmul.f32 %v2709, %v2958
    %v3261 = vmul.f32 %v2711, %v2962
    %v3262 = vmul.f32 %v2713, %v2969
    %v3263 = vmul.f32 %v2715, %v2973
    %v3264 = vmul.f32 %v2717, %v2980
    %v3265 = vmul.f32 %v2719, %v2984
    %v3266 = vmul.f32 %v2721, %v2991
    %v3267 = vmul.f32 %v2723, %v2995
    %v3268 = vmul.f32 %v2725, %v3002
    %v3269 = vmul.f32 %v2727, %v3006
    %v3270 = vmul.f32 %v2729, %v3013
    %v3271 = vmul.f32 %v2731, %v3017
    %v3272 = vmul.f32 %v2733, %v3024
    %v3273 = vmul.f32 %v2735, %v3028
    %v3274 = vmul.f32 %v2737, %v3035
    %v3275 = vmul.f32 %v2739, %v3039
    %v3276 = vmul.f32 %v2741, %v3046
    %v3277 = vmul.f32 %v2743, %v3050
    %v3278 = vmul.f32 %v2745, %v3057
    %v3279 = vmul.f32 %v2747, %v3061
    %v3280 = vmul.f32 %v2749, %v3068
    %v3281 = vmul.f32 %v2751, %v3072
    %v3282 = vmul.f32 %v2753, %v3079
    %v3283 = vmul.f32 %v2755, %v3083
    %v3284 = vmul.f32 %v2757, %v3090
    %v3285 = vmul.f32 %v2759, %v3094
    %v3286 = vmul.f32 %v2761, %v3101
    %v3287 = vmul.f32 %v2763, %v3105
    %v3288 = vmul.f32 %v2765, %v3112
    %v3289 = vmul.f32 %v2767, %v3116
    %v3290 = vmul.f32 %v2769, %v3123
    %v3291 = vmul.f32 %v2771, %v3127
    %v3292 = vmul.f32 %v2773, %v3134
    %v3293 = vmul.f32 %v2775, %v3138
    %v3294 = vmul.f32 %v2777, %v3145
    %v3295 = vmul.f32 %v2779, %v3149
    %v3296 = vmul.f32 %v2781, %v3156
    %v3297 = vmul.f32 %v2783, %v3160
    %v3298 = vmul.f32 %v2785, %v3167
    %v3299 = vmul.f32 %v2787, %v3171
    %v3300 = vand.u32 2147483647, %v3236
    %v3301 = vand.u32 2147483647, %v3237
    %v3302 = vand.u32 2147483647, %v3238
    %v3303 = vand.u32 2147483647, %v3239
    %v3304 = vand.u32 2147483647, %v3240
    %v3305 = vand.u32 2147483647, %v3241
    %v3306 = vand.u32 2147483647, %v3242
    %v3307 = vand.u32 2147483647, %v3243
    %v3308 = vand.u32 2147483647, %v3244
    %v3309 = vand.u32 2147483647, %v3245
    %v3310 = vand.u32 2147483647, %v3246
    %v3311 = vand.u32 2147483647, %v3247
    %v3312 = vand.u32 2147483647, %v3248
    %v3313 = vand.u32 2147483647, %v3249
    %v3314 = vand.u32 2147483647, %v3250
    %v3315 = vand.u32 2147483647, %v3251
    %v3316 = vand.u32 2147483647, %v3252
    %v3317 = vand.u32 2147483647, %v3253
    %v3318 = vand.u32 2147483647, %v3254
    %v3319 = vand.u32 2147483647, %v3255
    %v3320 = vand.u32 2147483647, %v3256
    %v3321 = vand.u32 2147483647, %v3257
    %v3322 = vand.u32 2147483647, %v3258
    %v3323 = vand.u32 2147483647, %v3259
    %v3324 = vand.u32 2147483647, %v3260
    %v3325 = vand.u32 2147483647, %v3261
    %v3326 = vand.u32 2147483647, %v3262
    %v3327 = vand.u32 2147483647, %v3263
    %v3328 = vand.u32 2147483647, %v3264
    %v3329 = vand.u32 2147483647, %v3265
    %v3330 = vand.u32 2147483647, %v3266
    %v3331 = vand.u32 2147483647, %v3267
    %v3332 = vand.u32 2147483647, %v3268
    %v3333 = vand.u32 2147483647, %v3269
    %v3334 = vand.u32 2147483647, %v3270
    %v3335 = vand.u32 2147483647, %v3271
    %v3336 = vand.u32 2147483647, %v3272
    %v3337 = vand.u32 2147483647, %v3273
    %v3338 = vand.u32 2147483647, %v3274
    %v3339 = vand.u32 2147483647, %v3275
    %v3340 = vand.u32 2147483647, %v3276
    %v3341 = vand.u32 2147483647, %v3277
    %v3342 = vand.u32 2147483647, %v3278
    %v3343 = vand.u32 2147483647, %v3279
    %v3344 = vand.u32 2147483647, %v3280
    %v3345 = vand.u32 2147483647, %v3281
    %v3346 = vand.u32 2147483647, %v3282
    %v3347 = vand.u32 2147483647, %v3283
    %v3348 = vand.u32 2147483647, %v3284
    %v3349 = vand.u32 2147483647, %v3285
    %v3350 = vand.u32 2147483647, %v3286
    %v3351 = vand.u32 2147483647, %v3287
    %v3352 = vand.u32 2147483647, %v3288
    %v3353 = vand.u32 2147483647, %v3289
    %v3354 = vand.u32 2147483647, %v3290
    %v3355 = vand.u32 2147483647, %v3291
    %v3356 = vand.u32 2147483647, %v3292
    %v3357 = vand.u32 2147483647, %v3293
    %v3358 = vand.u32 2147483647, %v3294
    %v3359 = vand.u32 2147483647, %v3295
    %v3360 = vand.u32 2147483647, %v3296
    %v3361 = vand.u32 2147483647, %v3297
    %v3362 = vand.u32 2147483647, %v3298
    %v3363 = vand.u32 2147483647, %v3299
    %3428 = vset.pattern.permute.xlu0 0
    %3429 = vperm.xlu0 %3428, %v3300
    %v3430 = vpop.permute.xlu0 %3429
    %3431 = vset.pattern.permute.xlu0 0
    %3432 = vperm.xlu0 %3431, %v3301
    %v3433 = vpop.permute.xlu0 %3432
    %3434 = vset.pattern.permute.xlu0 0
    %3435 = vperm.xlu0 %3434, %v3302
    %v3436 = vpop.permute.xlu0 %3435
    %3437 = vset.pattern.permute.xlu0 0
    %3438 = vperm.xlu0 %3437, %v3303
    %v3439 = vpop.permute.xlu0 %3438
    %3440 = vset.pattern.permute.xlu0 0
    %3441 = vperm.xlu0 %3440, %v3304
    %v3442 = vpop.permute.xlu0 %3441
    %3443 = vset.pattern.permute.xlu0 0
    %3444 = vperm.xlu0 %3443, %v3305
    %v3445 = vpop.permute.xlu0 %3444
    %3446 = vset.pattern.permute.xlu0 0
    %3447 = vperm.xlu0 %3446, %v3306
    %v3448 = vpop.permute.xlu0 %3447
    %3449 = vset.pattern.permute.xlu0 0
    %3450 = vperm.xlu0 %3449, %v3307
    %v3451 = vpop.permute.xlu0 %3450
    %3452 = vset.pattern.permute.xlu0 0
    %3453 = vperm.xlu0 %3452, %v3308
    %v3454 = vpop.permute.xlu0 %3453
    %3455 = vset.pattern.permute.xlu0 0
    %3456 = vperm.xlu0 %3455, %v3309
    %v3457 = vpop.permute.xlu0 %3456
    %3458 = vset.pattern.permute.xlu0 0
    %3459 = vperm.xlu0 %3458, %v3310
    %v3460 = vpop.permute.xlu0 %3459
    %3461 = vset.pattern.permute.xlu0 0
    %3462 = vperm.xlu0 %3461, %v3311
    %v3463 = vpop.permute.xlu0 %3462
    %3464 = vset.pattern.permute.xlu0 0
    %3465 = vperm.xlu0 %3464, %v3312
    %v3466 = vpop.permute.xlu0 %3465
    %3467 = vset.pattern.permute.xlu0 0
    %3468 = vperm.xlu0 %3467, %v3313
    %v3469 = vpop.permute.xlu0 %3468
    %3470 = vset.pattern.permute.xlu0 0
    %3471 = vperm.xlu0 %3470, %v3314
    %v3472 = vpop.permute.xlu0 %3471
    %3473 = vset.pattern.permute.xlu0 0
    %3474 = vperm.xlu0 %3473, %v3315
    %v3475 = vpop.permute.xlu0 %3474
    %3476 = vset.pattern.permute.xlu0 0
    %3477 = vperm.xlu0 %3476, %v3316
    %v3478 = vpop.permute.xlu0 %3477
    %3479 = vset.pattern.permute.xlu0 0
    %3480 = vperm.xlu0 %3479, %v3317
    %v3481 = vpop.permute.xlu0 %3480
    %3482 = vset.pattern.permute.xlu0 0
    %3483 = vperm.xlu0 %3482, %v3318
    %v3484 = vpop.permute.xlu0 %3483
    %3485 = vset.pattern.permute.xlu0 0
    %3486 = vperm.xlu0 %3485, %v3319
    %v3487 = vpop.permute.xlu0 %3486
    %3488 = vset.pattern.permute.xlu0 0
    %3489 = vperm.xlu0 %3488, %v3320
    %v3490 = vpop.permute.xlu0 %3489
    %3491 = vset.pattern.permute.xlu0 0
    %3492 = vperm.xlu0 %3491, %v3321
    %v3493 = vpop.permute.xlu0 %3492
    %3494 = vset.pattern.permute.xlu0 0
    %3495 = vperm.xlu0 %3494, %v3322
    %v3496 = vpop.permute.xlu0 %3495
    %3497 = vset.pattern.permute.xlu0 0
    %3498 = vperm.xlu0 %3497, %v3323
    %v3499 = vpop.permute.xlu0 %3498
    %3500 = vset.pattern.permute.xlu0 0
    %3501 = vperm.xlu0 %3500, %v3324
    %v3502 = vpop.permute.xlu0 %3501
    %3503 = vset.pattern.permute.xlu0 0
    %3504 = vperm.xlu0 %3503, %v3325
    %v3505 = vpop.permute.xlu0 %3504
    %3506 = vset.pattern.permute.xlu0 0
    %3507 = vperm.xlu0 %3506, %v3326
    %v3508 = vpop.permute.xlu0 %3507
    %3509 = vset.pattern.permute.xlu0 0
    %3510 = vperm.xlu0 %3509, %v3327
    %v3511 = vpop.permute.xlu0 %3510
    %3512 = vset.pattern.permute.xlu0 0
    %3513 = vperm.xlu0 %3512, %v3328
    %v3514 = vpop.permute.xlu0 %3513
    %3515 = vset.pattern.permute.xlu0 0
    %3516 = vperm.xlu0 %3515, %v3329
    %v3517 = vpop.permute.xlu0 %3516
    %3518 = vset.pattern.permute.xlu0 0
    %3519 = vperm.xlu0 %3518, %v3330
    %v3520 = vpop.permute.xlu0 %3519
    %3521 = vset.pattern.permute.xlu0 0
    %3522 = vperm.xlu0 %3521, %v3331
    %v3523 = vpop.permute.xlu0 %3522
    %3524 = vset.pattern.permute.xlu0 0
    %3525 = vperm.xlu0 %3524, %v3332
    %v3526 = vpop.permute.xlu0 %3525
    %3527 = vset.pattern.permute.xlu0 0
    %3528 = vperm.xlu0 %3527, %v3333
    %v3529 = vpop.permute.xlu0 %3528
    %3530 = vset.pattern.permute.xlu0 0
    %3531 = vperm.xlu0 %3530, %v3334
    %v3532 = vpop.permute.xlu0 %3531
    %3533 = vset.pattern.permute.xlu0 0
    %3534 = vperm.xlu0 %3533, %v3335
    %v3535 = vpop.permute.xlu0 %3534
    %3536 = vset.pattern.permute.xlu0 0
    %3537 = vperm.xlu0 %3536, %v3336
    %v3538 = vpop.permute.xlu0 %3537
    %3539 = vset.pattern.permute.xlu0 0
    %3540 = vperm.xlu0 %3539, %v3337
    %v3541 = vpop.permute.xlu0 %3540
    %3542 = vset.pattern.permute.xlu0 0
    %3543 = vperm.xlu0 %3542, %v3338
    %v3544 = vpop.permute.xlu0 %3543
    %3545 = vset.pattern.permute.xlu0 0
    %3546 = vperm.xlu0 %3545, %v3339
    %v3547 = vpop.permute.xlu0 %3546
    %3548 = vset.pattern.permute.xlu0 0
    %3549 = vperm.xlu0 %3548, %v3340
    %v3550 = vpop.permute.xlu0 %3549
    %3551 = vset.pattern.permute.xlu0 0
    %3552 = vperm.xlu0 %3551, %v3341
    %v3553 = vpop.permute.xlu0 %3552
    %3554 = vset.pattern.permute.xlu0 0
    %3555 = vperm.xlu0 %3554, %v3342
    %v3556 = vpop.permute.xlu0 %3555
    %3557 = vset.pattern.permute.xlu0 0
    %3558 = vperm.xlu0 %3557, %v3343
    %v3559 = vpop.permute.xlu0 %3558
    %3560 = vset.pattern.permute.xlu0 0
    %3561 = vperm.xlu0 %3560, %v3344
    %v3562 = vpop.permute.xlu0 %3561
    %3563 = vset.pattern.permute.xlu0 0
    %3564 = vperm.xlu0 %3563, %v3345
    %v3565 = vpop.permute.xlu0 %3564
    %3566 = vset.pattern.permute.xlu0 0
    %3567 = vperm.xlu0 %3566, %v3346
    %v3568 = vpop.permute.xlu0 %3567
    %3569 = vset.pattern.permute.xlu0 0
    %3570 = vperm.xlu0 %3569, %v3347
    %v3571 = vpop.permute.xlu0 %3570
    %3572 = vset.pattern.permute.xlu0 0
    %3573 = vperm.xlu0 %3572, %v3348
    %v3574 = vpop.permute.xlu0 %3573
    %3575 = vset.pattern.permute.xlu0 0
    %3576 = vperm.xlu0 %3575, %v3349
    %v3577 = vpop.permute.xlu0 %3576
    %3578 = vset.pattern.permute.xlu0 0
    %3579 = vperm.xlu0 %3578, %v3350
    %v3580 = vpop.permute.xlu0 %3579
    %3581 = vset.pattern.permute.xlu0 0
    %3582 = vperm.xlu0 %3581, %v3351
    %v3583 = vpop.permute.xlu0 %3582
    %3584 = vset.pattern.permute.xlu0 0
    %3585 = vperm.xlu0 %3584, %v3352
    %v3586 = vpop.permute.xlu0 %3585
    %3587 = vset.pattern.permute.xlu0 0
    %3588 = vperm.xlu0 %3587, %v3353
    %v3589 = vpop.permute.xlu0 %3588
    %3590 = vset.pattern.permute.xlu0 0
    %3591 = vperm.xlu0 %3590, %v3354
    %v3592 = vpop.permute.xlu0 %3591
    %3593 = vset.pattern.permute.xlu0 0
    %3594 = vperm.xlu0 %3593, %v3355
    %v3595 = vpop.permute.xlu0 %3594
    %3596 = vset.pattern.permute.xlu0 0
    %3597 = vperm.xlu0 %3596, %v3356
    %v3598 = vpop.permute.xlu0 %3597
    %3599 = vset.pattern.permute.xlu0 0
    %3600 = vperm.xlu0 %3599, %v3357
    %v3601 = vpop.permute.xlu0 %3600
    %3602 = vset.pattern.permute.xlu0 0
    %3603 = vperm.xlu0 %3602, %v3358
    %v3604 = vpop.permute.xlu0 %3603
    %3605 = vset.pattern.permute.xlu0 0
    %3606 = vperm.xlu0 %3605, %v3359
    %v3607 = vpop.permute.xlu0 %3606
    %3608 = vset.pattern.permute.xlu0 0
    %3609 = vperm.xlu0 %3608, %v3360
    %v3610 = vpop.permute.xlu0 %3609
    %3611 = vset.pattern.permute.xlu0 0
    %3612 = vperm.xlu0 %3611, %v3361
    %v3613 = vpop.permute.xlu0 %3612
    %3614 = vset.pattern.permute.xlu0 0
    %3615 = vperm.xlu0 %3614, %v3362
    %v3616 = vpop.permute.xlu0 %3615
    %3617 = vset.pattern.permute.xlu0 0
    %3618 = vperm.xlu0 %3617, %v3363
    %v3619 = vpop.permute.xlu0 %3618
    %v3620 = vlaneseq
    %v3621 = vand.u32 %v3620, 127
    %v3622 = vlaneseq
    %v3623 = vshrl.u32 %v3622, 7
    %v3624 = vsub.s32 %v3621, %v3623
    %v3625 = vrot.slane %v3430, %v3624
    %v3626 = vadd.s32 %v3621, 4294967288
    %v3627 = vlaneseq
    %v3628 = vshrl.u32 %v3627, 7
    %v3629 = vsub.s32 %v3626, %v3628
    %v3630 = vrot.slane %v3433, %v3629
    %vm3631 = vcmask 130112
    %v3632 = vsel %vm3631, %v3630, %v3625
    %v3633 = vlaneseq
    %v3634 = vshrl.u32 %v3633, 7
    %v3635 = vsub.s32 %v3621, %v3634
    %v3636 = vrot.slane %v3436, %v3635
    %v3637 = vlaneseq
    %v3638 = vshrl.u32 %v3637, 7
    %v3639 = vsub.s32 %v3626, %v3638
    %v3640 = vrot.slane %v3439, %v3639
    %v3641 = vsel %vm3631, %v3640, %v3636
    %v3642 = vlaneseq
    %v3643 = vshrl.u32 %v3642, 7
    %v3644 = vsub.s32 %v3621, %v3643
    %v3645 = vrot.slane %v3442, %v3644
    %v3646 = vlaneseq
    %v3647 = vshrl.u32 %v3646, 7
    %v3648 = vsub.s32 %v3626, %v3647
    %v3649 = vrot.slane %v3445, %v3648
    %v3650 = vsel %vm3631, %v3649, %v3645
    %v3651 = vlaneseq
    %v3652 = vshrl.u32 %v3651, 7
    %v3653 = vsub.s32 %v3621, %v3652
    %v3654 = vrot.slane %v3448, %v3653
    %v3655 = vlaneseq
    %v3656 = vshrl.u32 %v3655, 7
    %v3657 = vsub.s32 %v3626, %v3656
    %v3658 = vrot.slane %v3451, %v3657
    %v3659 = vsel %vm3631, %v3658, %v3654
    %v3660 = vlaneseq
    %v3661 = vshrl.u32 %v3660, 7
    %v3662 = vsub.s32 %v3621, %v3661
    %v3663 = vrot.slane %v3454, %v3662
    %v3664 = vlaneseq
    %v3665 = vshrl.u32 %v3664, 7
    %v3666 = vsub.s32 %v3626, %v3665
    %v3667 = vrot.slane %v3457, %v3666
    %v3668 = vsel %vm3631, %v3667, %v3663
    %v3669 = vlaneseq
    %v3670 = vshrl.u32 %v3669, 7
    %v3671 = vsub.s32 %v3621, %v3670
    %v3672 = vrot.slane %v3460, %v3671
    %v3673 = vlaneseq
    %v3674 = vshrl.u32 %v3673, 7
    %v3675 = vsub.s32 %v3626, %v3674
    %v3676 = vrot.slane %v3463, %v3675
    %v3677 = vsel %vm3631, %v3676, %v3672
    %v3678 = vlaneseq
    %v3679 = vshrl.u32 %v3678, 7
    %v3680 = vsub.s32 %v3621, %v3679
    %v3681 = vrot.slane %v3466, %v3680
    %v3682 = vlaneseq
    %v3683 = vshrl.u32 %v3682, 7
    %v3684 = vsub.s32 %v3626, %v3683
    %v3685 = vrot.slane %v3469, %v3684
    %v3686 = vsel %vm3631, %v3685, %v3681
    %v3687 = vlaneseq
    %v3688 = vshrl.u32 %v3687, 7
    %v3689 = vsub.s32 %v3621, %v3688
    %v3690 = vrot.slane %v3472, %v3689
    %v3691 = vlaneseq
    %v3692 = vshrl.u32 %v3691, 7
    %v3693 = vsub.s32 %v3626, %v3692
    %v3694 = vrot.slane %v3475, %v3693
    %v3695 = vsel %vm3631, %v3694, %v3690
    %v3696 = vlaneseq
    %v3697 = vshrl.u32 %v3696, 7
    %v3698 = vsub.s32 %v3621, %v3697
    %v3699 = vrot.slane %v3478, %v3698
    %v3700 = vlaneseq
    %v3701 = vshrl.u32 %v3700, 7
    %v3702 = vsub.s32 %v3626, %v3701
    %v3703 = vrot.slane %v3481, %v3702
    %v3704 = vsel %vm3631, %v3703, %v3699
    %v3705 = vlaneseq
    %v3706 = vshrl.u32 %v3705, 7
    %v3707 = vsub.s32 %v3621, %v3706
    %v3708 = vrot.slane %v3484, %v3707
    %v3709 = vlaneseq
    %v3710 = vshrl.u32 %v3709, 7
    %v3711 = vsub.s32 %v3626, %v3710
    %v3712 = vrot.slane %v3487, %v3711
    %v3713 = vsel %vm3631, %v3712, %v3708
    %v3714 = vlaneseq
    %v3715 = vshrl.u32 %v3714, 7
    %v3716 = vsub.s32 %v3621, %v3715
    %v3717 = vrot.slane %v3490, %v3716
    %v3718 = vlaneseq
    %v3719 = vshrl.u32 %v3718, 7
    %v3720 = vsub.s32 %v3626, %v3719
    %v3721 = vrot.slane %v3493, %v3720
    %v3722 = vsel %vm3631, %v3721, %v3717
    %v3723 = vlaneseq
    %v3724 = vshrl.u32 %v3723, 7
    %v3725 = vsub.s32 %v3621, %v3724
    %v3726 = vrot.slane %v3496, %v3725
    %v3727 = vlaneseq
    %v3728 = vshrl.u32 %v3727, 7
    %v3729 = vsub.s32 %v3626, %v3728
    %v3730 = vrot.slane %v3499, %v3729
    %v3731 = vsel %vm3631, %v3730, %v3726
    %v3732 = vlaneseq
    %v3733 = vshrl.u32 %v3732, 7
    %v3734 = vsub.s32 %v3621, %v3733
    %v3735 = vrot.slane %v3502, %v3734
    %v3736 = vlaneseq
    %v3737 = vshrl.u32 %v3736, 7
    %v3738 = vsub.s32 %v3626, %v3737
    %v3739 = vrot.slane %v3505, %v3738
    %v3740 = vsel %vm3631, %v3739, %v3735
    %v3741 = vlaneseq
    %v3742 = vshrl.u32 %v3741, 7
    %v3743 = vsub.s32 %v3621, %v3742
    %v3744 = vrot.slane %v3508, %v3743
    %v3745 = vlaneseq
    %v3746 = vshrl.u32 %v3745, 7
    %v3747 = vsub.s32 %v3626, %v3746
    %v3748 = vrot.slane %v3511, %v3747
    %v3749 = vsel %vm3631, %v3748, %v3744
    %v3750 = vlaneseq
    %v3751 = vshrl.u32 %v3750, 7
    %v3752 = vsub.s32 %v3621, %v3751
    %v3753 = vrot.slane %v3514, %v3752
    %v3754 = vlaneseq
    %v3755 = vshrl.u32 %v3754, 7
    %v3756 = vsub.s32 %v3626, %v3755
    %v3757 = vrot.slane %v3517, %v3756
    %v3758 = vsel %vm3631, %v3757, %v3753
    %v3759 = vlaneseq
    %v3760 = vshrl.u32 %v3759, 7
    %v3761 = vsub.s32 %v3621, %v3760
    %v3762 = vrot.slane %v3520, %v3761
    %v3763 = vlaneseq
    %v3764 = vshrl.u32 %v3763, 7
    %v3765 = vsub.s32 %v3626, %v3764
    %v3766 = vrot.slane %v3523, %v3765
    %v3767 = vsel %vm3631, %v3766, %v3762
    %v3768 = vlaneseq
    %v3769 = vshrl.u32 %v3768, 7
    %v3770 = vsub.s32 %v3621, %v3769
    %v3771 = vrot.slane %v3526, %v3770
    %v3772 = vlaneseq
    %v3773 = vshrl.u32 %v3772, 7
    %v3774 = vsub.s32 %v3626, %v3773
    %v3775 = vrot.slane %v3529, %v3774
    %v3776 = vsel %vm3631, %v3775, %v3771
    %v3777 = vlaneseq
    %v3778 = vshrl.u32 %v3777, 7
    %v3779 = vsub.s32 %v3621, %v3778
    %v3780 = vrot.slane %v3532, %v3779
    %v3781 = vlaneseq
    %v3782 = vshrl.u32 %v3781, 7
    %v3783 = vsub.s32 %v3626, %v3782
    %v3784 = vrot.slane %v3535, %v3783
    %v3785 = vsel %vm3631, %v3784, %v3780
    %v3786 = vlaneseq
    %v3787 = vshrl.u32 %v3786, 7
    %v3788 = vsub.s32 %v3621, %v3787
    %v3789 = vrot.slane %v3538, %v3788
    %v3790 = vlaneseq
    %v3791 = vshrl.u32 %v3790, 7
    %v3792 = vsub.s32 %v3626, %v3791
    %v3793 = vrot.slane %v3541, %v3792
    %v3794 = vsel %vm3631, %v3793, %v3789
    %v3795 = vlaneseq
    %v3796 = vshrl.u32 %v3795, 7
    %v3797 = vsub.s32 %v3621, %v3796
    %v3798 = vrot.slane %v3544, %v3797
    %v3799 = vlaneseq
    %v3800 = vshrl.u32 %v3799, 7
    %v3801 = vsub.s32 %v3626, %v3800
    %v3802 = vrot.slane %v3547, %v3801
    %v3803 = vsel %vm3631, %v3802, %v3798
    %v3804 = vlaneseq
    %v3805 = vshrl.u32 %v3804, 7
    %v3806 = vsub.s32 %v3621, %v3805
    %v3807 = vrot.slane %v3550, %v3806
    %v3808 = vlaneseq
    %v3809 = vshrl.u32 %v3808, 7
    %v3810 = vsub.s32 %v3626, %v3809
    %v3811 = vrot.slane %v3553, %v3810
    %v3812 = vsel %vm3631, %v3811, %v3807
    %v3813 = vlaneseq
    %v3814 = vshrl.u32 %v3813, 7
    %v3815 = vsub.s32 %v3621, %v3814
    %v3816 = vrot.slane %v3556, %v3815
    %v3817 = vlaneseq
    %v3818 = vshrl.u32 %v3817, 7
    %v3819 = vsub.s32 %v3626, %v3818
    %v3820 = vrot.slane %v3559, %v3819
    %v3821 = vsel %vm3631, %v3820, %v3816
    %v3822 = vlaneseq
    %v3823 = vshrl.u32 %v3822, 7
    %v3824 = vsub.s32 %v3621, %v3823
    %v3825 = vrot.slane %v3562, %v3824
    %v3826 = vlaneseq
    %v3827 = vshrl.u32 %v3826, 7
    %v3828 = vsub.s32 %v3626, %v3827
    %v3829 = vrot.slane %v3565, %v3828
    %v3830 = vsel %vm3631, %v3829, %v3825
    %v3831 = vlaneseq
    %v3832 = vshrl.u32 %v3831, 7
    %v3833 = vsub.s32 %v3621, %v3832
    %v3834 = vrot.slane %v3568, %v3833
    %v3835 = vlaneseq
    %v3836 = vshrl.u32 %v3835, 7
    %v3837 = vsub.s32 %v3626, %v3836
    %v3838 = vrot.slane %v3571, %v3837
    %v3839 = vsel %vm3631, %v3838, %v3834
    %v3840 = vlaneseq
    %v3841 = vshrl.u32 %v3840, 7
    %v3842 = vsub.s32 %v3621, %v3841
    %v3843 = vrot.slane %v3574, %v3842
    %v3844 = vlaneseq
    %v3845 = vshrl.u32 %v3844, 7
    %v3846 = vsub.s32 %v3626, %v3845
    %v3847 = vrot.slane %v3577, %v3846
    %v3848 = vsel %vm3631, %v3847, %v3843
    %v3849 = vlaneseq
    %v3850 = vshrl.u32 %v3849, 7
    %v3851 = vsub.s32 %v3621, %v3850
    %v3852 = vrot.slane %v3580, %v3851
    %v3853 = vlaneseq
    %v3854 = vshrl.u32 %v3853, 7
    %v3855 = vsub.s32 %v3626, %v3854
    %v3856 = vrot.slane %v3583, %v3855
    %v3857 = vsel %vm3631, %v3856, %v3852
    %v3858 = vlaneseq
    %v3859 = vshrl.u32 %v3858, 7
    %v3860 = vsub.s32 %v3621, %v3859
    %v3861 = vrot.slane %v3586, %v3860
    %v3862 = vlaneseq
    %v3863 = vshrl.u32 %v3862, 7
    %v3864 = vsub.s32 %v3626, %v3863
    %v3865 = vrot.slane %v3589, %v3864
    %v3866 = vsel %vm3631, %v3865, %v3861
    %v3867 = vlaneseq
    %v3868 = vshrl.u32 %v3867, 7
    %v3869 = vsub.s32 %v3621, %v3868
    %v3870 = vrot.slane %v3592, %v3869
    %v3871 = vlaneseq
    %v3872 = vshrl.u32 %v3871, 7
    %v3873 = vsub.s32 %v3626, %v3872
    %v3874 = vrot.slane %v3595, %v3873
    %v3875 = vsel %vm3631, %v3874, %v3870
    %v3876 = vlaneseq
    %v3877 = vshrl.u32 %v3876, 7
    %v3878 = vsub.s32 %v3621, %v3877
    %v3879 = vrot.slane %v3598, %v3878
    %v3880 = vlaneseq
    %v3881 = vshrl.u32 %v3880, 7
    %v3882 = vsub.s32 %v3626, %v3881
    %v3883 = vrot.slane %v3601, %v3882
    %v3884 = vsel %vm3631, %v3883, %v3879
    %v3885 = vlaneseq
    %v3886 = vshrl.u32 %v3885, 7
    %v3887 = vsub.s32 %v3621, %v3886
    %v3888 = vrot.slane %v3604, %v3887
    %v3889 = vlaneseq
    %v3890 = vshrl.u32 %v3889, 7
    %v3891 = vsub.s32 %v3626, %v3890
    %v3892 = vrot.slane %v3607, %v3891
    %v3893 = vsel %vm3631, %v3892, %v3888
    %v3894 = vlaneseq
    %v3895 = vshrl.u32 %v3894, 7
    %v3896 = vsub.s32 %v3621, %v3895
    %v3897 = vrot.slane %v3610, %v3896
    %v3898 = vlaneseq
    %v3899 = vshrl.u32 %v3898, 7
    %v3900 = vsub.s32 %v3626, %v3899
    %v3901 = vrot.slane %v3613, %v3900
    %v3902 = vsel %vm3631, %v3901, %v3897
    %v3903 = vlaneseq
    %v3904 = vshrl.u32 %v3903, 7
    %v3905 = vsub.s32 %v3621, %v3904
    %v3906 = vrot.slane %v3616, %v3905
    %v3907 = vlaneseq
    %v3908 = vshrl.u32 %v3907, 7
    %v3909 = vsub.s32 %v3626, %v3908
    %v3910 = vrot.slane %v3619, %v3909
    %v3911 = vsel %vm3631, %v3910, %v3906
    %vm3912 = vcmask 1041409
    %v3913 = vsel %vm3912, %v3641, %v3632
    %vm3914 = vcmask 1042434
    %v3915 = vsel %vm3914, %v3650, %v3913
    %vm3916 = vcmask 1043459
    %v3917 = vsel %vm3916, %v3659, %v3915
    %vm3918 = vcmask 1044484
    %v3919 = vsel %vm3918, %v3668, %v3917
    %vm3920 = vcmask 1045509
    %v3921 = vsel %vm3920, %v3677, %v3919
    %vm3922 = vcmask 1046534
    %v3923 = vsel %vm3922, %v3686, %v3921
    %vm3924 = vcmask 1047559
    %v3925 = vsel %vm3924, %v3695, %v3923
    %v3926 = vsel %vm3912, %v3713, %v3704
    %v3927 = vsel %vm3914, %v3722, %v3926
    %v3928 = vsel %vm3916, %v3731, %v3927
    %v3929 = vsel %vm3918, %v3740, %v3928
    %v3930 = vsel %vm3920, %v3749, %v3929
    %v3931 = vsel %vm3922, %v3758, %v3930
    %v3932 = vsel %vm3924, %v3767, %v3931
    %v3933 = vsel %vm3912, %v3785, %v3776
    %v3934 = vsel %vm3914, %v3794, %v3933
    %v3935 = vsel %vm3916, %v3803, %v3934
    %v3936 = vsel %vm3918, %v3812, %v3935
    %v3937 = vsel %vm3920, %v3821, %v3936
    %v3938 = vsel %vm3922, %v3830, %v3937
    %v3939 = vsel %vm3924, %v3839, %v3938
    %v3940 = vsel %vm3912, %v3857, %v3848
    %v3941 = vsel %vm3914, %v3866, %v3940
    %v3942 = vsel %vm3916, %v3875, %v3941
    %v3943 = vsel %vm3918, %v3884, %v3942
    %v3944 = vsel %vm3920, %v3893, %v3943
    %v3945 = vsel %vm3922, %v3902, %v3944
    %v3946 = vsel %vm3924, %v3911, %v3945
    %v3951 = vsel %vm2143, %v3925, 0.0
    %3952 = vadd.xlane.f32.xlu0 %v3951
    %v3953 = vpop.xlane.xlu0 %3952
    %v3954 = vsel %vm2143, %v3932, 0.0
    %3955 = vadd.xlane.f32.xlu0 %v3954
    %v3956 = vpop.xlane.xlu0 %3955
    %v3957 = vsel %vm2143, %v3939, 0.0
    %3958 = vadd.xlane.f32.xlu0 %v3957
    %v3959 = vpop.xlane.xlu0 %3958
    %v3960 = vsel %vm2143, %v3946, 0.0
    %3961 = vadd.xlane.f32.xlu0 %v3960
    %v3962 = vpop.xlane.xlu0 %3961
    %v3963 = vmax.f32 %v3953, 1e-12
    %v3964 = vmax.f32 %v3956, 1e-12
    %v3965 = vmax.f32 %v3959, 1e-12
    %v3966 = vmax.f32 %v3962, 1e-12
    %v3971 = vlaneseq
    %v3972 = vshrl.u32 %v3971, 7
    %v3973 = vsub.s32 0, %v3972
    %v3974 = vrot.slane %v3963, %v3973
    %v3975 = vlaneseq
    %v3976 = vshrl.u32 %v3975, 7
    %v3977 = vsub.s32 1, %v3976
    %v3978 = vrot.slane %v3963, %v3977
    %v3979 = vlaneseq
    %v3980 = vshrl.u32 %v3979, 7
    %v3981 = vsub.s32 2, %v3980
    %v3982 = vrot.slane %v3963, %v3981
    %v3983 = vlaneseq
    %v3984 = vshrl.u32 %v3983, 7
    %v3985 = vsub.s32 3, %v3984
    %v3986 = vrot.slane %v3963, %v3985
    %v3987 = vlaneseq
    %v3988 = vshrl.u32 %v3987, 7
    %v3989 = vsub.s32 4, %v3988
    %v3990 = vrot.slane %v3963, %v3989
    %v3991 = vlaneseq
    %v3992 = vshrl.u32 %v3991, 7
    %v3993 = vsub.s32 5, %v3992
    %v3994 = vrot.slane %v3963, %v3993
    %v3995 = vlaneseq
    %v3996 = vshrl.u32 %v3995, 7
    %v3997 = vsub.s32 6, %v3996
    %v3998 = vrot.slane %v3963, %v3997
    %v3999 = vlaneseq
    %v4000 = vshrl.u32 %v3999, 7
    %v4001 = vsub.s32 7, %v4000
    %v4002 = vrot.slane %v3963, %v4001
    %v4003 = vlaneseq
    %v4004 = vshrl.u32 %v4003, 7
    %v4005 = vsub.s32 0, %v4004
    %v4006 = vrot.slane %v3964, %v4005
    %v4007 = vlaneseq
    %v4008 = vshrl.u32 %v4007, 7
    %v4009 = vsub.s32 1, %v4008
    %v4010 = vrot.slane %v3964, %v4009
    %v4011 = vlaneseq
    %v4012 = vshrl.u32 %v4011, 7
    %v4013 = vsub.s32 2, %v4012
    %v4014 = vrot.slane %v3964, %v4013
    %v4015 = vlaneseq
    %v4016 = vshrl.u32 %v4015, 7
    %v4017 = vsub.s32 3, %v4016
    %v4018 = vrot.slane %v3964, %v4017
    %v4019 = vlaneseq
    %v4020 = vshrl.u32 %v4019, 7
    %v4021 = vsub.s32 4, %v4020
    %v4022 = vrot.slane %v3964, %v4021
    %v4023 = vlaneseq
    %v4024 = vshrl.u32 %v4023, 7
    %v4025 = vsub.s32 5, %v4024
    %v4026 = vrot.slane %v3964, %v4025
    %v4027 = vlaneseq
    %v4028 = vshrl.u32 %v4027, 7
    %v4029 = vsub.s32 6, %v4028
    %v4030 = vrot.slane %v3964, %v4029
    %v4031 = vlaneseq
    %v4032 = vshrl.u32 %v4031, 7
    %v4033 = vsub.s32 7, %v4032
    %v4034 = vrot.slane %v3964, %v4033
    %v4035 = vlaneseq
    %v4036 = vshrl.u32 %v4035, 7
    %v4037 = vsub.s32 0, %v4036
    %v4038 = vrot.slane %v3965, %v4037
    %v4039 = vlaneseq
    %v4040 = vshrl.u32 %v4039, 7
    %v4041 = vsub.s32 1, %v4040
    %v4042 = vrot.slane %v3965, %v4041
    %v4043 = vlaneseq
    %v4044 = vshrl.u32 %v4043, 7
    %v4045 = vsub.s32 2, %v4044
    %v4046 = vrot.slane %v3965, %v4045
    %v4047 = vlaneseq
    %v4048 = vshrl.u32 %v4047, 7
    %v4049 = vsub.s32 3, %v4048
    %v4050 = vrot.slane %v3965, %v4049
    %v4051 = vlaneseq
    %v4052 = vshrl.u32 %v4051, 7
    %v4053 = vsub.s32 4, %v4052
    %v4054 = vrot.slane %v3965, %v4053
    %v4055 = vlaneseq
    %v4056 = vshrl.u32 %v4055, 7
    %v4057 = vsub.s32 5, %v4056
    %v4058 = vrot.slane %v3965, %v4057
    %v4059 = vlaneseq
    %v4060 = vshrl.u32 %v4059, 7
    %v4061 = vsub.s32 6, %v4060
    %v4062 = vrot.slane %v3965, %v4061
    %v4063 = vlaneseq
    %v4064 = vshrl.u32 %v4063, 7
    %v4065 = vsub.s32 7, %v4064
    %v4066 = vrot.slane %v3965, %v4065
    %v4067 = vlaneseq
    %v4068 = vshrl.u32 %v4067, 7
    %v4069 = vsub.s32 0, %v4068
    %v4070 = vrot.slane %v3966, %v4069
    %v4071 = vlaneseq
    %v4072 = vshrl.u32 %v4071, 7
    %v4073 = vsub.s32 1, %v4072
    %v4074 = vrot.slane %v3966, %v4073
    %v4075 = vlaneseq
    %v4076 = vshrl.u32 %v4075, 7
    %v4077 = vsub.s32 2, %v4076
    %v4078 = vrot.slane %v3966, %v4077
    %v4079 = vlaneseq
    %v4080 = vshrl.u32 %v4079, 7
    %v4081 = vsub.s32 3, %v4080
    %v4082 = vrot.slane %v3966, %v4081
    %v4083 = vlaneseq
    %v4084 = vshrl.u32 %v4083, 7
    %v4085 = vsub.s32 4, %v4084
    %v4086 = vrot.slane %v3966, %v4085
    %v4087 = vlaneseq
    %v4088 = vshrl.u32 %v4087, 7
    %v4089 = vsub.s32 5, %v4088
    %v4090 = vrot.slane %v3966, %v4089
    %v4091 = vlaneseq
    %v4092 = vshrl.u32 %v4091, 7
    %v4093 = vsub.s32 6, %v4092
    %v4094 = vrot.slane %v3966, %v4093
    %v4095 = vlaneseq
    %v4096 = vshrl.u32 %v4095, 7
    %v4097 = vsub.s32 7, %v4096
    %v4098 = vrot.slane %v3966, %v4097
    %v4131 = vrcp.pop %v3974
    %v4132 = vmul.f32 %v3236, %v4131
    %v4133 = vmul.f32 %v3237, %v4131
    %v4134 = vrcp.pop %v3978
    %v4135 = vmul.f32 %v3238, %v4134
    %v4136 = vmul.f32 %v3239, %v4134
    %v4137 = vrcp.pop %v3982
    %v4138 = vmul.f32 %v3240, %v4137
    %v4139 = vmul.f32 %v3241, %v4137
    %v4140 = vrcp.pop %v3986
    %v4141 = vmul.f32 %v3242, %v4140
    %v4142 = vmul.f32 %v3243, %v4140
    %v4143 = vrcp.pop %v3990
    %v4144 = vmul.f32 %v3244, %v4143
    %v4145 = vmul.f32 %v3245, %v4143
    %v4146 = vrcp.pop %v3994
    %v4147 = vmul.f32 %v3246, %v4146
    %v4148 = vmul.f32 %v3247, %v4146
    %v4149 = vrcp.pop %v3998
    %v4150 = vmul.f32 %v3248, %v4149
    %v4151 = vmul.f32 %v3249, %v4149
    %v4152 = vrcp.pop %v4002
    %v4153 = vmul.f32 %v3250, %v4152
    %v4154 = vmul.f32 %v3251, %v4152
    %v4155 = vrcp.pop %v4006
    %v4156 = vmul.f32 %v3252, %v4155
    %v4157 = vmul.f32 %v3253, %v4155
    %v4158 = vrcp.pop %v4010
    %v4159 = vmul.f32 %v3254, %v4158
    %v4160 = vmul.f32 %v3255, %v4158
    %v4161 = vrcp.pop %v4014
    %v4162 = vmul.f32 %v3256, %v4161
    %v4163 = vmul.f32 %v3257, %v4161
    %v4164 = vrcp.pop %v4018
    %v4165 = vmul.f32 %v3258, %v4164
    %v4166 = vmul.f32 %v3259, %v4164
    %v4167 = vrcp.pop %v4022
    %v4168 = vmul.f32 %v3260, %v4167
    %v4169 = vmul.f32 %v3261, %v4167
    %v4170 = vrcp.pop %v4026
    %v4171 = vmul.f32 %v3262, %v4170
    %v4172 = vmul.f32 %v3263, %v4170
    %v4173 = vrcp.pop %v4030
    %v4174 = vmul.f32 %v3264, %v4173
    %v4175 = vmul.f32 %v3265, %v4173
    %v4176 = vrcp.pop %v4034
    %v4177 = vmul.f32 %v3266, %v4176
    %v4178 = vmul.f32 %v3267, %v4176
    %v4179 = vrcp.pop %v4038
    %v4180 = vmul.f32 %v3268, %v4179
    %v4181 = vmul.f32 %v3269, %v4179
    %v4182 = vrcp.pop %v4042
    %v4183 = vmul.f32 %v3270, %v4182
    %v4184 = vmul.f32 %v3271, %v4182
    %v4185 = vrcp.pop %v4046
    %v4186 = vmul.f32 %v3272, %v4185
    %v4187 = vmul.f32 %v3273, %v4185
    %v4188 = vrcp.pop %v4050
    %v4189 = vmul.f32 %v3274, %v4188
    %v4190 = vmul.f32 %v3275, %v4188
    %v4191 = vrcp.pop %v4054
    %v4192 = vmul.f32 %v3276, %v4191
    %v4193 = vmul.f32 %v3277, %v4191
    %v4194 = vrcp.pop %v4058
    %v4195 = vmul.f32 %v3278, %v4194
    %v4196 = vmul.f32 %v3279, %v4194
    %v4197 = vrcp.pop %v4062
    %v4198 = vmul.f32 %v3280, %v4197
    %v4199 = vmul.f32 %v3281, %v4197
    %v4200 = vrcp.pop %v4066
    %v4201 = vmul.f32 %v3282, %v4200
    %v4202 = vmul.f32 %v3283, %v4200
    %v4203 = vrcp.pop %v4070
    %v4204 = vmul.f32 %v3284, %v4203
    %v4205 = vmul.f32 %v3285, %v4203
    %v4206 = vrcp.pop %v4074
    %v4207 = vmul.f32 %v3286, %v4206
    %v4208 = vmul.f32 %v3287, %v4206
    %v4209 = vrcp.pop %v4078
    %v4210 = vmul.f32 %v3288, %v4209
    %v4211 = vmul.f32 %v3289, %v4209
    %v4212 = vrcp.pop %v4082
    %v4213 = vmul.f32 %v3290, %v4212
    %v4214 = vmul.f32 %v3291, %v4212
    %v4215 = vrcp.pop %v4086
    %v4216 = vmul.f32 %v3292, %v4215
    %v4217 = vmul.f32 %v3293, %v4215
    %v4218 = vrcp.pop %v4090
    %v4219 = vmul.f32 %v3294, %v4218
    %v4220 = vmul.f32 %v3295, %v4218
    %v4221 = vrcp.pop %v4094
    %v4222 = vmul.f32 %v3296, %v4221
    %v4223 = vmul.f32 %v3297, %v4221
    %v4224 = vrcp.pop %v4098
    %v4225 = vmul.f32 %v3298, %v4224
    %v4226 = vmul.f32 %v3299, %v4224
    %v4231 = vlaneseq
    %v4232 = vshrl.u32 %v4231, 7
    %v4233 = vsub.s32 0, %v4232
    %v4234 = vrot.slane %v2806, %v4233
    %v4235 = vlaneseq
    %v4236 = vshrl.u32 %v4235, 7
    %v4237 = vsub.s32 1, %v4236
    %v4238 = vrot.slane %v2806, %v4237
    %v4239 = vlaneseq
    %v4240 = vshrl.u32 %v4239, 7
    %v4241 = vsub.s32 2, %v4240
    %v4242 = vrot.slane %v2806, %v4241
    %v4243 = vlaneseq
    %v4244 = vshrl.u32 %v4243, 7
    %v4245 = vsub.s32 3, %v4244
    %v4246 = vrot.slane %v2806, %v4245
    %v4247 = vlaneseq
    %v4248 = vshrl.u32 %v4247, 7
    %v4249 = vsub.s32 4, %v4248
    %v4250 = vrot.slane %v2806, %v4249
    %v4251 = vlaneseq
    %v4252 = vshrl.u32 %v4251, 7
    %v4253 = vsub.s32 5, %v4252
    %v4254 = vrot.slane %v2806, %v4253
    %v4255 = vlaneseq
    %v4256 = vshrl.u32 %v4255, 7
    %v4257 = vsub.s32 6, %v4256
    %v4258 = vrot.slane %v2806, %v4257
    %v4259 = vlaneseq
    %v4260 = vshrl.u32 %v4259, 7
    %v4261 = vsub.s32 7, %v4260
    %v4262 = vrot.slane %v2806, %v4261
    %v4263 = vlaneseq
    %v4264 = vshrl.u32 %v4263, 7
    %v4265 = vsub.s32 0, %v4264
    %v4266 = vrot.slane %v2809, %v4265
    %v4267 = vlaneseq
    %v4268 = vshrl.u32 %v4267, 7
    %v4269 = vsub.s32 1, %v4268
    %v4270 = vrot.slane %v2809, %v4269
    %v4271 = vlaneseq
    %v4272 = vshrl.u32 %v4271, 7
    %v4273 = vsub.s32 2, %v4272
    %v4274 = vrot.slane %v2809, %v4273
    %v4275 = vlaneseq
    %v4276 = vshrl.u32 %v4275, 7
    %v4277 = vsub.s32 3, %v4276
    %v4278 = vrot.slane %v2809, %v4277
    %v4279 = vlaneseq
    %v4280 = vshrl.u32 %v4279, 7
    %v4281 = vsub.s32 4, %v4280
    %v4282 = vrot.slane %v2809, %v4281
    %v4283 = vlaneseq
    %v4284 = vshrl.u32 %v4283, 7
    %v4285 = vsub.s32 5, %v4284
    %v4286 = vrot.slane %v2809, %v4285
    %v4287 = vlaneseq
    %v4288 = vshrl.u32 %v4287, 7
    %v4289 = vsub.s32 6, %v4288
    %v4290 = vrot.slane %v2809, %v4289
    %v4291 = vlaneseq
    %v4292 = vshrl.u32 %v4291, 7
    %v4293 = vsub.s32 7, %v4292
    %v4294 = vrot.slane %v2809, %v4293
    %v4295 = vlaneseq
    %v4296 = vshrl.u32 %v4295, 7
    %v4297 = vsub.s32 0, %v4296
    %v4298 = vrot.slane %v2812, %v4297
    %v4299 = vlaneseq
    %v4300 = vshrl.u32 %v4299, 7
    %v4301 = vsub.s32 1, %v4300
    %v4302 = vrot.slane %v2812, %v4301
    %v4303 = vlaneseq
    %v4304 = vshrl.u32 %v4303, 7
    %v4305 = vsub.s32 2, %v4304
    %v4306 = vrot.slane %v2812, %v4305
    %v4307 = vlaneseq
    %v4308 = vshrl.u32 %v4307, 7
    %v4309 = vsub.s32 3, %v4308
    %v4310 = vrot.slane %v2812, %v4309
    %v4311 = vlaneseq
    %v4312 = vshrl.u32 %v4311, 7
    %v4313 = vsub.s32 4, %v4312
    %v4314 = vrot.slane %v2812, %v4313
    %v4315 = vlaneseq
    %v4316 = vshrl.u32 %v4315, 7
    %v4317 = vsub.s32 5, %v4316
    %v4318 = vrot.slane %v2812, %v4317
    %v4319 = vlaneseq
    %v4320 = vshrl.u32 %v4319, 7
    %v4321 = vsub.s32 6, %v4320
    %v4322 = vrot.slane %v2812, %v4321
    %v4323 = vlaneseq
    %v4324 = vshrl.u32 %v4323, 7
    %v4325 = vsub.s32 7, %v4324
    %v4326 = vrot.slane %v2812, %v4325
    %v4327 = vlaneseq
    %v4328 = vshrl.u32 %v4327, 7
    %v4329 = vsub.s32 0, %v4328
    %v4330 = vrot.slane %v2815, %v4329
    %v4331 = vlaneseq
    %v4332 = vshrl.u32 %v4331, 7
    %v4333 = vsub.s32 1, %v4332
    %v4334 = vrot.slane %v2815, %v4333
    %v4335 = vlaneseq
    %v4336 = vshrl.u32 %v4335, 7
    %v4337 = vsub.s32 2, %v4336
    %v4338 = vrot.slane %v2815, %v4337
    %v4339 = vlaneseq
    %v4340 = vshrl.u32 %v4339, 7
    %v4341 = vsub.s32 3, %v4340
    %v4342 = vrot.slane %v2815, %v4341
    %v4343 = vlaneseq
    %v4344 = vshrl.u32 %v4343, 7
    %v4345 = vsub.s32 4, %v4344
    %v4346 = vrot.slane %v2815, %v4345
    %v4347 = vlaneseq
    %v4348 = vshrl.u32 %v4347, 7
    %v4349 = vsub.s32 5, %v4348
    %v4350 = vrot.slane %v2815, %v4349
    %v4351 = vlaneseq
    %v4352 = vshrl.u32 %v4351, 7
    %v4353 = vsub.s32 6, %v4352
    %v4354 = vrot.slane %v2815, %v4353
    %v4355 = vlaneseq
    %v4356 = vshrl.u32 %v4355, 7
    %v4357 = vsub.s32 7, %v4356
    %v4358 = vrot.slane %v2815, %v4357
    %v4391 = vmul.f32 %v4132, %v4234
    %v4392 = vmul.f32 %v4133, %v4234
    %v4393 = vmul.f32 %v4135, %v4238
    %v4394 = vmul.f32 %v4136, %v4238
    %v4395 = vmul.f32 %v4138, %v4242
    %v4396 = vmul.f32 %v4139, %v4242
    %v4397 = vmul.f32 %v4141, %v4246
    %v4398 = vmul.f32 %v4142, %v4246
    %v4399 = vmul.f32 %v4144, %v4250
    %v4400 = vmul.f32 %v4145, %v4250
    %v4401 = vmul.f32 %v4147, %v4254
    %v4402 = vmul.f32 %v4148, %v4254
    %v4403 = vmul.f32 %v4150, %v4258
    %v4404 = vmul.f32 %v4151, %v4258
    %v4405 = vmul.f32 %v4153, %v4262
    %v4406 = vmul.f32 %v4154, %v4262
    %v4407 = vmul.f32 %v4156, %v4266
    %v4408 = vmul.f32 %v4157, %v4266
    %v4409 = vmul.f32 %v4159, %v4270
    %v4410 = vmul.f32 %v4160, %v4270
    %v4411 = vmul.f32 %v4162, %v4274
    %v4412 = vmul.f32 %v4163, %v4274
    %v4413 = vmul.f32 %v4165, %v4278
    %v4414 = vmul.f32 %v4166, %v4278
    %v4415 = vmul.f32 %v4168, %v4282
    %v4416 = vmul.f32 %v4169, %v4282
    %v4417 = vmul.f32 %v4171, %v4286
    %v4418 = vmul.f32 %v4172, %v4286
    %v4419 = vmul.f32 %v4174, %v4290
    %v4420 = vmul.f32 %v4175, %v4290
    %v4421 = vmul.f32 %v4177, %v4294
    %v4422 = vmul.f32 %v4178, %v4294
    %v4423 = vmul.f32 %v4180, %v4298
    %v4424 = vmul.f32 %v4181, %v4298
    %v4425 = vmul.f32 %v4183, %v4302
    %v4426 = vmul.f32 %v4184, %v4302
    %v4427 = vmul.f32 %v4186, %v4306
    %v4428 = vmul.f32 %v4187, %v4306
    %v4429 = vmul.f32 %v4189, %v4310
    %v4430 = vmul.f32 %v4190, %v4310
    %v4431 = vmul.f32 %v4192, %v4314
    %v4432 = vmul.f32 %v4193, %v4314
    %v4433 = vmul.f32 %v4195, %v4318
    %v4434 = vmul.f32 %v4196, %v4318
    %v4435 = vmul.f32 %v4198, %v4322
    %v4436 = vmul.f32 %v4199, %v4322
    %v4437 = vmul.f32 %v4201, %v4326
    %v4438 = vmul.f32 %v4202, %v4326
    %v4439 = vmul.f32 %v4204, %v4330
    %v4440 = vmul.f32 %v4205, %v4330
    %v4441 = vmul.f32 %v4207, %v4334
    %v4442 = vmul.f32 %v4208, %v4334
    %v4443 = vmul.f32 %v4210, %v4338
    %v4444 = vmul.f32 %v4211, %v4338
    %v4445 = vmul.f32 %v4213, %v4342
    %v4446 = vmul.f32 %v4214, %v4342
    %v4447 = vmul.f32 %v4216, %v4346
    %v4448 = vmul.f32 %v4217, %v4346
    %v4449 = vmul.f32 %v4219, %v4350
    %v4450 = vmul.f32 %v4220, %v4350
    %v4451 = vmul.f32 %v4222, %v4354
    %v4452 = vmul.f32 %v4223, %v4354
    %v4453 = vmul.f32 %v4225, %v4358
    %v4454 = vmul.f32 %v4226, %v4358
    %v4459 = vlaneseq
    %v4460 = vshrl.u32 %v4459, 7
    %v4461 = vsub.s32 0, %v4460
    %v4462 = vrot.slane %v2792, %v4461
    %4464 = vbcast.lane.b32.xlu0 %v4462, 256
    %v4465 = vpop.permute.xlu0 %4464
    %s4467 = sor.u32 256, 8
    %4468 = vbcast.lane.b32.xlu0 %v4462, %s4467
    %v4469 = vpop.permute.xlu0 %4468
    %v4470 = vlaneseq
    %v4471 = vshrl.u32 %v4470, 7
    %v4472 = vsub.s32 1, %v4471
    %v4473 = vrot.slane %v2792, %v4472
    %4475 = vbcast.lane.b32.xlu0 %v4473, 256
    %v4476 = vpop.permute.xlu0 %4475
    %s4478 = sor.u32 256, 8
    %4479 = vbcast.lane.b32.xlu0 %v4473, %s4478
    %v4480 = vpop.permute.xlu0 %4479
    %v4481 = vlaneseq
    %v4482 = vshrl.u32 %v4481, 7
    %v4483 = vsub.s32 2, %v4482
    %v4484 = vrot.slane %v2792, %v4483
    %4486 = vbcast.lane.b32.xlu0 %v4484, 256
    %v4487 = vpop.permute.xlu0 %4486
    %s4489 = sor.u32 256, 8
    %4490 = vbcast.lane.b32.xlu0 %v4484, %s4489
    %v4491 = vpop.permute.xlu0 %4490
    %v4492 = vlaneseq
    %v4493 = vshrl.u32 %v4492, 7
    %v4494 = vsub.s32 3, %v4493
    %v4495 = vrot.slane %v2792, %v4494
    %4497 = vbcast.lane.b32.xlu0 %v4495, 256
    %v4498 = vpop.permute.xlu0 %4497
    %s4500 = sor.u32 256, 8
    %4501 = vbcast.lane.b32.xlu0 %v4495, %s4500
    %v4502 = vpop.permute.xlu0 %4501
    %v4503 = vlaneseq
    %v4504 = vshrl.u32 %v4503, 7
    %v4505 = vsub.s32 4, %v4504
    %v4506 = vrot.slane %v2792, %v4505
    %4508 = vbcast.lane.b32.xlu0 %v4506, 256
    %v4509 = vpop.permute.xlu0 %4508
    %s4511 = sor.u32 256, 8
    %4512 = vbcast.lane.b32.xlu0 %v4506, %s4511
    %v4513 = vpop.permute.xlu0 %4512
    %v4514 = vlaneseq
    %v4515 = vshrl.u32 %v4514, 7
    %v4516 = vsub.s32 5, %v4515
    %v4517 = vrot.slane %v2792, %v4516
    %4519 = vbcast.lane.b32.xlu0 %v4517, 256
    %v4520 = vpop.permute.xlu0 %4519
    %s4522 = sor.u32 256, 8
    %4523 = vbcast.lane.b32.xlu0 %v4517, %s4522
    %v4524 = vpop.permute.xlu0 %4523
    %v4525 = vlaneseq
    %v4526 = vshrl.u32 %v4525, 7
    %v4527 = vsub.s32 6, %v4526
    %v4528 = vrot.slane %v2792, %v4527
    %4530 = vbcast.lane.b32.xlu0 %v4528, 256
    %v4531 = vpop.permute.xlu0 %4530
    %s4533 = sor.u32 256, 8
    %4534 = vbcast.lane.b32.xlu0 %v4528, %s4533
    %v4535 = vpop.permute.xlu0 %4534
    %v4536 = vlaneseq
    %v4537 = vshrl.u32 %v4536, 7
    %v4538 = vsub.s32 7, %v4537
    %v4539 = vrot.slane %v2792, %v4538
    %4541 = vbcast.lane.b32.xlu0 %v4539, 256
    %v4542 = vpop.permute.xlu0 %4541
    %s4544 = sor.u32 256, 8
    %4545 = vbcast.lane.b32.xlu0 %v4539, %s4544
    %v4546 = vpop.permute.xlu0 %4545
    %v4547 = vlaneseq
    %v4548 = vshrl.u32 %v4547, 7
    %v4549 = vsub.s32 0, %v4548
    %v4550 = vrot.slane %v2793, %v4549
    %4552 = vbcast.lane.b32.xlu0 %v4550, 256
    %v4553 = vpop.permute.xlu0 %4552
    %s4555 = sor.u32 256, 8
    %4556 = vbcast.lane.b32.xlu0 %v4550, %s4555
    %v4557 = vpop.permute.xlu0 %4556
    %v4558 = vlaneseq
    %v4559 = vshrl.u32 %v4558, 7
    %v4560 = vsub.s32 1, %v4559
    %v4561 = vrot.slane %v2793, %v4560
    %4563 = vbcast.lane.b32.xlu0 %v4561, 256
    %v4564 = vpop.permute.xlu0 %4563
    %s4566 = sor.u32 256, 8
    %4567 = vbcast.lane.b32.xlu0 %v4561, %s4566
    %v4568 = vpop.permute.xlu0 %4567
    %v4569 = vlaneseq
    %v4570 = vshrl.u32 %v4569, 7
    %v4571 = vsub.s32 2, %v4570
    %v4572 = vrot.slane %v2793, %v4571
    %4574 = vbcast.lane.b32.xlu0 %v4572, 256
    %v4575 = vpop.permute.xlu0 %4574
    %s4577 = sor.u32 256, 8
    %4578 = vbcast.lane.b32.xlu0 %v4572, %s4577
    %v4579 = vpop.permute.xlu0 %4578
    %v4580 = vlaneseq
    %v4581 = vshrl.u32 %v4580, 7
    %v4582 = vsub.s32 3, %v4581
    %v4583 = vrot.slane %v2793, %v4582
    %4585 = vbcast.lane.b32.xlu0 %v4583, 256
    %v4586 = vpop.permute.xlu0 %4585
    %s4588 = sor.u32 256, 8
    %4589 = vbcast.lane.b32.xlu0 %v4583, %s4588
    %v4590 = vpop.permute.xlu0 %4589
    %v4591 = vlaneseq
    %v4592 = vshrl.u32 %v4591, 7
    %v4593 = vsub.s32 4, %v4592
    %v4594 = vrot.slane %v2793, %v4593
    %4596 = vbcast.lane.b32.xlu0 %v4594, 256
    %v4597 = vpop.permute.xlu0 %4596
    %s4599 = sor.u32 256, 8
    %4600 = vbcast.lane.b32.xlu0 %v4594, %s4599
    %v4601 = vpop.permute.xlu0 %4600
    %v4602 = vlaneseq
    %v4603 = vshrl.u32 %v4602, 7
    %v4604 = vsub.s32 5, %v4603
    %v4605 = vrot.slane %v2793, %v4604
    %4607 = vbcast.lane.b32.xlu0 %v4605, 256
    %v4608 = vpop.permute.xlu0 %4607
    %s4610 = sor.u32 256, 8
    %4611 = vbcast.lane.b32.xlu0 %v4605, %s4610
    %v4612 = vpop.permute.xlu0 %4611
    %v4613 = vlaneseq
    %v4614 = vshrl.u32 %v4613, 7
    %v4615 = vsub.s32 6, %v4614
    %v4616 = vrot.slane %v2793, %v4615
    %4618 = vbcast.lane.b32.xlu0 %v4616, 256
    %v4619 = vpop.permute.xlu0 %4618
    %s4621 = sor.u32 256, 8
    %4622 = vbcast.lane.b32.xlu0 %v4616, %s4621
    %v4623 = vpop.permute.xlu0 %4622
    %v4624 = vlaneseq
    %v4625 = vshrl.u32 %v4624, 7
    %v4626 = vsub.s32 7, %v4625
    %v4627 = vrot.slane %v2793, %v4626
    %4629 = vbcast.lane.b32.xlu0 %v4627, 256
    %v4630 = vpop.permute.xlu0 %4629
    %s4632 = sor.u32 256, 8
    %4633 = vbcast.lane.b32.xlu0 %v4627, %s4632
    %v4634 = vpop.permute.xlu0 %4633
    %v4635 = vlaneseq
    %v4636 = vshrl.u32 %v4635, 7
    %v4637 = vsub.s32 0, %v4636
    %v4638 = vrot.slane %v2794, %v4637
    %4640 = vbcast.lane.b32.xlu0 %v4638, 256
    %v4641 = vpop.permute.xlu0 %4640
    %s4643 = sor.u32 256, 8
    %4644 = vbcast.lane.b32.xlu0 %v4638, %s4643
    %v4645 = vpop.permute.xlu0 %4644
    %v4646 = vlaneseq
    %v4647 = vshrl.u32 %v4646, 7
    %v4648 = vsub.s32 1, %v4647
    %v4649 = vrot.slane %v2794, %v4648
    %4651 = vbcast.lane.b32.xlu0 %v4649, 256
    %v4652 = vpop.permute.xlu0 %4651
    %s4654 = sor.u32 256, 8
    %4655 = vbcast.lane.b32.xlu0 %v4649, %s4654
    %v4656 = vpop.permute.xlu0 %4655
    %v4657 = vlaneseq
    %v4658 = vshrl.u32 %v4657, 7
    %v4659 = vsub.s32 2, %v4658
    %v4660 = vrot.slane %v2794, %v4659
    %4662 = vbcast.lane.b32.xlu0 %v4660, 256
    %v4663 = vpop.permute.xlu0 %4662
    %s4665 = sor.u32 256, 8
    %4666 = vbcast.lane.b32.xlu0 %v4660, %s4665
    %v4667 = vpop.permute.xlu0 %4666
    %v4668 = vlaneseq
    %v4669 = vshrl.u32 %v4668, 7
    %v4670 = vsub.s32 3, %v4669
    %v4671 = vrot.slane %v2794, %v4670
    %4673 = vbcast.lane.b32.xlu0 %v4671, 256
    %v4674 = vpop.permute.xlu0 %4673
    %s4676 = sor.u32 256, 8
    %4677 = vbcast.lane.b32.xlu0 %v4671, %s4676
    %v4678 = vpop.permute.xlu0 %4677
    %v4679 = vlaneseq
    %v4680 = vshrl.u32 %v4679, 7
    %v4681 = vsub.s32 4, %v4680
    %v4682 = vrot.slane %v2794, %v4681
    %4684 = vbcast.lane.b32.xlu0 %v4682, 256
    %v4685 = vpop.permute.xlu0 %4684
    %s4687 = sor.u32 256, 8
    %4688 = vbcast.lane.b32.xlu0 %v4682, %s4687
    %v4689 = vpop.permute.xlu0 %4688
    %v4690 = vlaneseq
    %v4691 = vshrl.u32 %v4690, 7
    %v4692 = vsub.s32 5, %v4691
    %v4693 = vrot.slane %v2794, %v4692
    %4695 = vbcast.lane.b32.xlu0 %v4693, 256
    %v4696 = vpop.permute.xlu0 %4695
    %s4698 = sor.u32 256, 8
    %4699 = vbcast.lane.b32.xlu0 %v4693, %s4698
    %v4700 = vpop.permute.xlu0 %4699
    %v4701 = vlaneseq
    %v4702 = vshrl.u32 %v4701, 7
    %v4703 = vsub.s32 6, %v4702
    %v4704 = vrot.slane %v2794, %v4703
    %4706 = vbcast.lane.b32.xlu0 %v4704, 256
    %v4707 = vpop.permute.xlu0 %4706
    %s4709 = sor.u32 256, 8
    %4710 = vbcast.lane.b32.xlu0 %v4704, %s4709
    %v4711 = vpop.permute.xlu0 %4710
    %v4712 = vlaneseq
    %v4713 = vshrl.u32 %v4712, 7
    %v4714 = vsub.s32 7, %v4713
    %v4715 = vrot.slane %v2794, %v4714
    %4717 = vbcast.lane.b32.xlu0 %v4715, 256
    %v4718 = vpop.permute.xlu0 %4717
    %s4720 = sor.u32 256, 8
    %4721 = vbcast.lane.b32.xlu0 %v4715, %s4720
    %v4722 = vpop.permute.xlu0 %4721
    %v4723 = vlaneseq
    %v4724 = vshrl.u32 %v4723, 7
    %v4725 = vsub.s32 0, %v4724
    %v4726 = vrot.slane %v2795, %v4725
    %4728 = vbcast.lane.b32.xlu0 %v4726, 256
    %v4729 = vpop.permute.xlu0 %4728
    %s4731 = sor.u32 256, 8
    %4732 = vbcast.lane.b32.xlu0 %v4726, %s4731
    %v4733 = vpop.permute.xlu0 %4732
    %v4734 = vlaneseq
    %v4735 = vshrl.u32 %v4734, 7
    %v4736 = vsub.s32 1, %v4735
    %v4737 = vrot.slane %v2795, %v4736
    %4739 = vbcast.lane.b32.xlu0 %v4737, 256
    %v4740 = vpop.permute.xlu0 %4739
    %s4742 = sor.u32 256, 8
    %4743 = vbcast.lane.b32.xlu0 %v4737, %s4742
    %v4744 = vpop.permute.xlu0 %4743
    %v4745 = vlaneseq
    %v4746 = vshrl.u32 %v4745, 7
    %v4747 = vsub.s32 2, %v4746
    %v4748 = vrot.slane %v2795, %v4747
    %4750 = vbcast.lane.b32.xlu0 %v4748, 256
    %v4751 = vpop.permute.xlu0 %4750
    %s4753 = sor.u32 256, 8
    %4754 = vbcast.lane.b32.xlu0 %v4748, %s4753
    %v4755 = vpop.permute.xlu0 %4754
    %v4756 = vlaneseq
    %v4757 = vshrl.u32 %v4756, 7
    %v4758 = vsub.s32 3, %v4757
    %v4759 = vrot.slane %v2795, %v4758
    %4761 = vbcast.lane.b32.xlu0 %v4759, 256
    %v4762 = vpop.permute.xlu0 %4761
    %s4764 = sor.u32 256, 8
    %4765 = vbcast.lane.b32.xlu0 %v4759, %s4764
    %v4766 = vpop.permute.xlu0 %4765
    %v4767 = vlaneseq
    %v4768 = vshrl.u32 %v4767, 7
    %v4769 = vsub.s32 4, %v4768
    %v4770 = vrot.slane %v2795, %v4769
    %4772 = vbcast.lane.b32.xlu0 %v4770, 256
    %v4773 = vpop.permute.xlu0 %4772
    %s4775 = sor.u32 256, 8
    %4776 = vbcast.lane.b32.xlu0 %v4770, %s4775
    %v4777 = vpop.permute.xlu0 %4776
    %v4778 = vlaneseq
    %v4779 = vshrl.u32 %v4778, 7
    %v4780 = vsub.s32 5, %v4779
    %v4781 = vrot.slane %v2795, %v4780
    %4783 = vbcast.lane.b32.xlu0 %v4781, 256
    %v4784 = vpop.permute.xlu0 %4783
    %s4786 = sor.u32 256, 8
    %4787 = vbcast.lane.b32.xlu0 %v4781, %s4786
    %v4788 = vpop.permute.xlu0 %4787
    %v4789 = vlaneseq
    %v4790 = vshrl.u32 %v4789, 7
    %v4791 = vsub.s32 6, %v4790
    %v4792 = vrot.slane %v2795, %v4791
    %4794 = vbcast.lane.b32.xlu0 %v4792, 256
    %v4795 = vpop.permute.xlu0 %4794
    %s4797 = sor.u32 256, 8
    %4798 = vbcast.lane.b32.xlu0 %v4792, %s4797
    %v4799 = vpop.permute.xlu0 %4798
    %v4800 = vlaneseq
    %v4801 = vshrl.u32 %v4800, 7
    %v4802 = vsub.s32 7, %v4801
    %v4803 = vrot.slane %v2795, %v4802
    %4805 = vbcast.lane.b32.xlu0 %v4803, 256
    %v4806 = vpop.permute.xlu0 %4805
    %s4808 = sor.u32 256, 8
    %4809 = vbcast.lane.b32.xlu0 %v4803, %s4808
    %v4810 = vpop.permute.xlu0 %4809
    %v4875 = vadd.f32 %v4391, %v4465
    %v4876 = vadd.f32 %v4392, %v4469
    %v4877 = vadd.f32 %v4393, %v4476
    %v4878 = vadd.f32 %v4394, %v4480
    %v4879 = vadd.f32 %v4395, %v4487
    %v4880 = vadd.f32 %v4396, %v4491
    %v4881 = vadd.f32 %v4397, %v4498
    %v4882 = vadd.f32 %v4398, %v4502
    %v4883 = vadd.f32 %v4399, %v4509
    %v4884 = vadd.f32 %v4400, %v4513
    %v4885 = vadd.f32 %v4401, %v4520
    %v4886 = vadd.f32 %v4402, %v4524
    %v4887 = vadd.f32 %v4403, %v4531
    %v4888 = vadd.f32 %v4404, %v4535
    %v4889 = vadd.f32 %v4405, %v4542
    %v4890 = vadd.f32 %v4406, %v4546
    %v4891 = vadd.f32 %v4407, %v4553
    %v4892 = vadd.f32 %v4408, %v4557
    %v4893 = vadd.f32 %v4409, %v4564
    %v4894 = vadd.f32 %v4410, %v4568
    %v4895 = vadd.f32 %v4411, %v4575
    %v4896 = vadd.f32 %v4412, %v4579
    %v4897 = vadd.f32 %v4413, %v4586
    %v4898 = vadd.f32 %v4414, %v4590
    %v4899 = vadd.f32 %v4415, %v4597
    %v4900 = vadd.f32 %v4416, %v4601
    %v4901 = vadd.f32 %v4417, %v4608
    %v4902 = vadd.f32 %v4418, %v4612
    %v4903 = vadd.f32 %v4419, %v4619
    %v4904 = vadd.f32 %v4420, %v4623
    %v4905 = vadd.f32 %v4421, %v4630
    %v4906 = vadd.f32 %v4422, %v4634
    %v4907 = vadd.f32 %v4423, %v4641
    %v4908 = vadd.f32 %v4424, %v4645
    %v4909 = vadd.f32 %v4425, %v4652
    %v4910 = vadd.f32 %v4426, %v4656
    %v4911 = vadd.f32 %v4427, %v4663
    %v4912 = vadd.f32 %v4428, %v4667
    %v4913 = vadd.f32 %v4429, %v4674
    %v4914 = vadd.f32 %v4430, %v4678
    %v4915 = vadd.f32 %v4431, %v4685
    %v4916 = vadd.f32 %v4432, %v4689
    %v4917 = vadd.f32 %v4433, %v4696
    %v4918 = vadd.f32 %v4434, %v4700
    %v4919 = vadd.f32 %v4435, %v4707
    %v4920 = vadd.f32 %v4436, %v4711
    %v4921 = vadd.f32 %v4437, %v4718
    %v4922 = vadd.f32 %v4438, %v4722
    %v4923 = vadd.f32 %v4439, %v4729
    %v4924 = vadd.f32 %v4440, %v4733
    %v4925 = vadd.f32 %v4441, %v4740
    %v4926 = vadd.f32 %v4442, %v4744
    %v4927 = vadd.f32 %v4443, %v4751
    %v4928 = vadd.f32 %v4444, %v4755
    %v4929 = vadd.f32 %v4445, %v4762
    %v4930 = vadd.f32 %v4446, %v4766
    %v4931 = vadd.f32 %v4447, %v4773
    %v4932 = vadd.f32 %v4448, %v4777
    %v4933 = vadd.f32 %v4449, %v4784
    %v4934 = vadd.f32 %v4450, %v4788
    %v4935 = vadd.f32 %v4451, %v4795
    %v4936 = vadd.f32 %v4452, %v4799
    %v4937 = vadd.f32 %v4453, %v4806
    %v4938 = vadd.f32 %v4454, %v4810
    %v4939 = vadd.f32 %v4875, 1e-06
    %v4940 = vadd.f32 %v4876, 1e-06
    %v4941 = vadd.f32 %v4877, 1e-06
    %v4942 = vadd.f32 %v4878, 1e-06
    %v4943 = vadd.f32 %v4879, 1e-06
    %v4944 = vadd.f32 %v4880, 1e-06
    %v4945 = vadd.f32 %v4881, 1e-06
    %v4946 = vadd.f32 %v4882, 1e-06
    %v4947 = vadd.f32 %v4883, 1e-06
    %v4948 = vadd.f32 %v4884, 1e-06
    %v4949 = vadd.f32 %v4885, 1e-06
    %v4950 = vadd.f32 %v4886, 1e-06
    %v4951 = vadd.f32 %v4887, 1e-06
    %v4952 = vadd.f32 %v4888, 1e-06
    %v4953 = vadd.f32 %v4889, 1e-06
    %v4954 = vadd.f32 %v4890, 1e-06
    %v4955 = vadd.f32 %v4891, 1e-06
    %v4956 = vadd.f32 %v4892, 1e-06
    %v4957 = vadd.f32 %v4893, 1e-06
    %v4958 = vadd.f32 %v4894, 1e-06
    %v4959 = vadd.f32 %v4895, 1e-06
    %v4960 = vadd.f32 %v4896, 1e-06
    %v4961 = vadd.f32 %v4897, 1e-06
    %v4962 = vadd.f32 %v4898, 1e-06
    %v4963 = vadd.f32 %v4899, 1e-06
    %v4964 = vadd.f32 %v4900, 1e-06
    %v4965 = vadd.f32 %v4901, 1e-06
    %v4966 = vadd.f32 %v4902, 1e-06
    %v4967 = vadd.f32 %v4903, 1e-06
    %v4968 = vadd.f32 %v4904, 1e-06
    %v4969 = vadd.f32 %v4905, 1e-06
    %v4970 = vadd.f32 %v4906, 1e-06
    %v4971 = vadd.f32 %v4907, 1e-06
    %v4972 = vadd.f32 %v4908, 1e-06
    %v4973 = vadd.f32 %v4909, 1e-06
    %v4974 = vadd.f32 %v4910, 1e-06
    %v4975 = vadd.f32 %v4911, 1e-06
    %v4976 = vadd.f32 %v4912, 1e-06
    %v4977 = vadd.f32 %v4913, 1e-06
    %v4978 = vadd.f32 %v4914, 1e-06
    %v4979 = vadd.f32 %v4915, 1e-06
    %v4980 = vadd.f32 %v4916, 1e-06
    %v4981 = vadd.f32 %v4917, 1e-06
    %v4982 = vadd.f32 %v4918, 1e-06
    %v4983 = vadd.f32 %v4919, 1e-06
    %v4984 = vadd.f32 %v4920, 1e-06
    %v4985 = vadd.f32 %v4921, 1e-06
    %v4986 = vadd.f32 %v4922, 1e-06
    %v4987 = vadd.f32 %v4923, 1e-06
    %v4988 = vadd.f32 %v4924, 1e-06
    %v4989 = vadd.f32 %v4925, 1e-06
    %v4990 = vadd.f32 %v4926, 1e-06
    %v4991 = vadd.f32 %v4927, 1e-06
    %v4992 = vadd.f32 %v4928, 1e-06
    %v4993 = vadd.f32 %v4929, 1e-06
    %v4994 = vadd.f32 %v4930, 1e-06
    %v4995 = vadd.f32 %v4931, 1e-06
    %v4996 = vadd.f32 %v4932, 1e-06
    %v4997 = vadd.f32 %v4933, 1e-06
    %v4998 = vadd.f32 %v4934, 1e-06
    %v4999 = vadd.f32 %v4935, 1e-06
    %v5000 = vadd.f32 %v4936, 1e-06
    %v5001 = vadd.f32 %v4937, 1e-06
    %v5002 = vadd.f32 %v4938, 1e-06
    %5067 = vset.pattern.permute.xlu0 0
    %5068 = vperm.xlu0 %5067, %v4939
    %v5069 = vpop.permute.xlu0 %5068
    %5070 = vset.pattern.permute.xlu0 0
    %5071 = vperm.xlu0 %5070, %v4940
    %v5072 = vpop.permute.xlu0 %5071
    %5073 = vset.pattern.permute.xlu0 0
    %5074 = vperm.xlu0 %5073, %v4941
    %v5075 = vpop.permute.xlu0 %5074
    %5076 = vset.pattern.permute.xlu0 0
    %5077 = vperm.xlu0 %5076, %v4942
    %v5078 = vpop.permute.xlu0 %5077
    %5079 = vset.pattern.permute.xlu0 0
    %5080 = vperm.xlu0 %5079, %v4943
    %v5081 = vpop.permute.xlu0 %5080
    %5082 = vset.pattern.permute.xlu0 0
    %5083 = vperm.xlu0 %5082, %v4944
    %v5084 = vpop.permute.xlu0 %5083
    %5085 = vset.pattern.permute.xlu0 0
    %5086 = vperm.xlu0 %5085, %v4945
    %v5087 = vpop.permute.xlu0 %5086
    %5088 = vset.pattern.permute.xlu0 0
    %5089 = vperm.xlu0 %5088, %v4946
    %v5090 = vpop.permute.xlu0 %5089
    %5091 = vset.pattern.permute.xlu0 0
    %5092 = vperm.xlu0 %5091, %v4947
    %v5093 = vpop.permute.xlu0 %5092
    %5094 = vset.pattern.permute.xlu0 0
    %5095 = vperm.xlu0 %5094, %v4948
    %v5096 = vpop.permute.xlu0 %5095
    %5097 = vset.pattern.permute.xlu0 0
    %5098 = vperm.xlu0 %5097, %v4949
    %v5099 = vpop.permute.xlu0 %5098
    %5100 = vset.pattern.permute.xlu0 0
    %5101 = vperm.xlu0 %5100, %v4950
    %v5102 = vpop.permute.xlu0 %5101
    %5103 = vset.pattern.permute.xlu0 0
    %5104 = vperm.xlu0 %5103, %v4951
    %v5105 = vpop.permute.xlu0 %5104
    %5106 = vset.pattern.permute.xlu0 0
    %5107 = vperm.xlu0 %5106, %v4952
    %v5108 = vpop.permute.xlu0 %5107
    %5109 = vset.pattern.permute.xlu0 0
    %5110 = vperm.xlu0 %5109, %v4953
    %v5111 = vpop.permute.xlu0 %5110
    %5112 = vset.pattern.permute.xlu0 0
    %5113 = vperm.xlu0 %5112, %v4954
    %v5114 = vpop.permute.xlu0 %5113
    %5115 = vset.pattern.permute.xlu0 0
    %5116 = vperm.xlu0 %5115, %v4955
    %v5117 = vpop.permute.xlu0 %5116
    %5118 = vset.pattern.permute.xlu0 0
    %5119 = vperm.xlu0 %5118, %v4956
    %v5120 = vpop.permute.xlu0 %5119
    %5121 = vset.pattern.permute.xlu0 0
    %5122 = vperm.xlu0 %5121, %v4957
    %v5123 = vpop.permute.xlu0 %5122
    %5124 = vset.pattern.permute.xlu0 0
    %5125 = vperm.xlu0 %5124, %v4958
    %v5126 = vpop.permute.xlu0 %5125
    %5127 = vset.pattern.permute.xlu0 0
    %5128 = vperm.xlu0 %5127, %v4959
    %v5129 = vpop.permute.xlu0 %5128
    %5130 = vset.pattern.permute.xlu0 0
    %5131 = vperm.xlu0 %5130, %v4960
    %v5132 = vpop.permute.xlu0 %5131
    %5133 = vset.pattern.permute.xlu0 0
    %5134 = vperm.xlu0 %5133, %v4961
    %v5135 = vpop.permute.xlu0 %5134
    %5136 = vset.pattern.permute.xlu0 0
    %5137 = vperm.xlu0 %5136, %v4962
    %v5138 = vpop.permute.xlu0 %5137
    %5139 = vset.pattern.permute.xlu0 0
    %5140 = vperm.xlu0 %5139, %v4963
    %v5141 = vpop.permute.xlu0 %5140
    %5142 = vset.pattern.permute.xlu0 0
    %5143 = vperm.xlu0 %5142, %v4964
    %v5144 = vpop.permute.xlu0 %5143
    %5145 = vset.pattern.permute.xlu0 0
    %5146 = vperm.xlu0 %5145, %v4965
    %v5147 = vpop.permute.xlu0 %5146
    %5148 = vset.pattern.permute.xlu0 0
    %5149 = vperm.xlu0 %5148, %v4966
    %v5150 = vpop.permute.xlu0 %5149
    %5151 = vset.pattern.permute.xlu0 0
    %5152 = vperm.xlu0 %5151, %v4967
    %v5153 = vpop.permute.xlu0 %5152
    %5154 = vset.pattern.permute.xlu0 0
    %5155 = vperm.xlu0 %5154, %v4968
    %v5156 = vpop.permute.xlu0 %5155
    %5157 = vset.pattern.permute.xlu0 0
    %5158 = vperm.xlu0 %5157, %v4969
    %v5159 = vpop.permute.xlu0 %5158
    %5160 = vset.pattern.permute.xlu0 0
    %5161 = vperm.xlu0 %5160, %v4970
    %v5162 = vpop.permute.xlu0 %5161
    %5163 = vset.pattern.permute.xlu0 0
    %5164 = vperm.xlu0 %5163, %v4971
    %v5165 = vpop.permute.xlu0 %5164
    %5166 = vset.pattern.permute.xlu0 0
    %5167 = vperm.xlu0 %5166, %v4972
    %v5168 = vpop.permute.xlu0 %5167
    %5169 = vset.pattern.permute.xlu0 0
    %5170 = vperm.xlu0 %5169, %v4973
    %v5171 = vpop.permute.xlu0 %5170
    %5172 = vset.pattern.permute.xlu0 0
    %5173 = vperm.xlu0 %5172, %v4974
    %v5174 = vpop.permute.xlu0 %5173
    %5175 = vset.pattern.permute.xlu0 0
    %5176 = vperm.xlu0 %5175, %v4975
    %v5177 = vpop.permute.xlu0 %5176
    %5178 = vset.pattern.permute.xlu0 0
    %5179 = vperm.xlu0 %5178, %v4976
    %v5180 = vpop.permute.xlu0 %5179
    %5181 = vset.pattern.permute.xlu0 0
    %5182 = vperm.xlu0 %5181, %v4977
    %v5183 = vpop.permute.xlu0 %5182
    %5184 = vset.pattern.permute.xlu0 0
    %5185 = vperm.xlu0 %5184, %v4978
    %v5186 = vpop.permute.xlu0 %5185
    %5187 = vset.pattern.permute.xlu0 0
    %5188 = vperm.xlu0 %5187, %v4979
    %v5189 = vpop.permute.xlu0 %5188
    %5190 = vset.pattern.permute.xlu0 0
    %5191 = vperm.xlu0 %5190, %v4980
    %v5192 = vpop.permute.xlu0 %5191
    %5193 = vset.pattern.permute.xlu0 0
    %5194 = vperm.xlu0 %5193, %v4981
    %v5195 = vpop.permute.xlu0 %5194
    %5196 = vset.pattern.permute.xlu0 0
    %5197 = vperm.xlu0 %5196, %v4982
    %v5198 = vpop.permute.xlu0 %5197
    %5199 = vset.pattern.permute.xlu0 0
    %5200 = vperm.xlu0 %5199, %v4983
    %v5201 = vpop.permute.xlu0 %5200
    %5202 = vset.pattern.permute.xlu0 0
    %5203 = vperm.xlu0 %5202, %v4984
    %v5204 = vpop.permute.xlu0 %5203
    %5205 = vset.pattern.permute.xlu0 0
    %5206 = vperm.xlu0 %5205, %v4985
    %v5207 = vpop.permute.xlu0 %5206
    %5208 = vset.pattern.permute.xlu0 0
    %5209 = vperm.xlu0 %5208, %v4986
    %v5210 = vpop.permute.xlu0 %5209
    %5211 = vset.pattern.permute.xlu0 0
    %5212 = vperm.xlu0 %5211, %v4987
    %v5213 = vpop.permute.xlu0 %5212
    %5214 = vset.pattern.permute.xlu0 0
    %5215 = vperm.xlu0 %5214, %v4988
    %v5216 = vpop.permute.xlu0 %5215
    %5217 = vset.pattern.permute.xlu0 0
    %5218 = vperm.xlu0 %5217, %v4989
    %v5219 = vpop.permute.xlu0 %5218
    %5220 = vset.pattern.permute.xlu0 0
    %5221 = vperm.xlu0 %5220, %v4990
    %v5222 = vpop.permute.xlu0 %5221
    %5223 = vset.pattern.permute.xlu0 0
    %5224 = vperm.xlu0 %5223, %v4991
    %v5225 = vpop.permute.xlu0 %5224
    %5226 = vset.pattern.permute.xlu0 0
    %5227 = vperm.xlu0 %5226, %v4992
    %v5228 = vpop.permute.xlu0 %5227
    %5229 = vset.pattern.permute.xlu0 0
    %5230 = vperm.xlu0 %5229, %v4993
    %v5231 = vpop.permute.xlu0 %5230
    %5232 = vset.pattern.permute.xlu0 0
    %5233 = vperm.xlu0 %5232, %v4994
    %v5234 = vpop.permute.xlu0 %5233
    %5235 = vset.pattern.permute.xlu0 0
    %5236 = vperm.xlu0 %5235, %v4995
    %v5237 = vpop.permute.xlu0 %5236
    %5238 = vset.pattern.permute.xlu0 0
    %5239 = vperm.xlu0 %5238, %v4996
    %v5240 = vpop.permute.xlu0 %5239
    %5241 = vset.pattern.permute.xlu0 0
    %5242 = vperm.xlu0 %5241, %v4997
    %v5243 = vpop.permute.xlu0 %5242
    %5244 = vset.pattern.permute.xlu0 0
    %5245 = vperm.xlu0 %5244, %v4998
    %v5246 = vpop.permute.xlu0 %5245
    %5247 = vset.pattern.permute.xlu0 0
    %5248 = vperm.xlu0 %5247, %v4999
    %v5249 = vpop.permute.xlu0 %5248
    %5250 = vset.pattern.permute.xlu0 0
    %5251 = vperm.xlu0 %5250, %v5000
    %v5252 = vpop.permute.xlu0 %5251
    %5253 = vset.pattern.permute.xlu0 0
    %5254 = vperm.xlu0 %5253, %v5001
    %v5255 = vpop.permute.xlu0 %5254
    %5256 = vset.pattern.permute.xlu0 0
    %5257 = vperm.xlu0 %5256, %v5002
    %v5258 = vpop.permute.xlu0 %5257
    %v5259 = vlaneseq
    %v5260 = vshrl.u32 %v5259, 7
    %v5261 = vsub.s32 %v3621, %v5260
    %v5262 = vrot.slane %v5069, %v5261
    %v5263 = vlaneseq
    %v5264 = vshrl.u32 %v5263, 7
    %v5265 = vsub.s32 %v3626, %v5264
    %v5266 = vrot.slane %v5072, %v5265
    %v5267 = vsel %vm3631, %v5266, %v5262
    %v5268 = vlaneseq
    %v5269 = vshrl.u32 %v5268, 7
    %v5270 = vsub.s32 %v3621, %v5269
    %v5271 = vrot.slane %v5075, %v5270
    %v5272 = vlaneseq
    %v5273 = vshrl.u32 %v5272, 7
    %v5274 = vsub.s32 %v3626, %v5273
    %v5275 = vrot.slane %v5078, %v5274
    %v5276 = vsel %vm3631, %v5275, %v5271
    %v5277 = vlaneseq
    %v5278 = vshrl.u32 %v5277, 7
    %v5279 = vsub.s32 %v3621, %v5278
    %v5280 = vrot.slane %v5081, %v5279
    %v5281 = vlaneseq
    %v5282 = vshrl.u32 %v5281, 7
    %v5283 = vsub.s32 %v3626, %v5282
    %v5284 = vrot.slane %v5084, %v5283
    %v5285 = vsel %vm3631, %v5284, %v5280
    %v5286 = vlaneseq
    %v5287 = vshrl.u32 %v5286, 7
    %v5288 = vsub.s32 %v3621, %v5287
    %v5289 = vrot.slane %v5087, %v5288
    %v5290 = vlaneseq
    %v5291 = vshrl.u32 %v5290, 7
    %v5292 = vsub.s32 %v3626, %v5291
    %v5293 = vrot.slane %v5090, %v5292
    %v5294 = vsel %vm3631, %v5293, %v5289
    %v5295 = vlaneseq
    %v5296 = vshrl.u32 %v5295, 7
    %v5297 = vsub.s32 %v3621, %v5296
    %v5298 = vrot.slane %v5093, %v5297
    %v5299 = vlaneseq
    %v5300 = vshrl.u32 %v5299, 7
    %v5301 = vsub.s32 %v3626, %v5300
    %v5302 = vrot.slane %v5096, %v5301
    %v5303 = vsel %vm3631, %v5302, %v5298
    %v5304 = vlaneseq
    %v5305 = vshrl.u32 %v5304, 7
    %v5306 = vsub.s32 %v3621, %v5305
    %v5307 = vrot.slane %v5099, %v5306
    %v5308 = vlaneseq
    %v5309 = vshrl.u32 %v5308, 7
    %v5310 = vsub.s32 %v3626, %v5309
    %v5311 = vrot.slane %v5102, %v5310
    %v5312 = vsel %vm3631, %v5311, %v5307
    %v5313 = vlaneseq
    %v5314 = vshrl.u32 %v5313, 7
    %v5315 = vsub.s32 %v3621, %v5314
    %v5316 = vrot.slane %v5105, %v5315
    %v5317 = vlaneseq
    %v5318 = vshrl.u32 %v5317, 7
    %v5319 = vsub.s32 %v3626, %v5318
    %v5320 = vrot.slane %v5108, %v5319
    %v5321 = vsel %vm3631, %v5320, %v5316
    %v5322 = vlaneseq
    %v5323 = vshrl.u32 %v5322, 7
    %v5324 = vsub.s32 %v3621, %v5323
    %v5325 = vrot.slane %v5111, %v5324
    %v5326 = vlaneseq
    %v5327 = vshrl.u32 %v5326, 7
    %v5328 = vsub.s32 %v3626, %v5327
    %v5329 = vrot.slane %v5114, %v5328
    %v5330 = vsel %vm3631, %v5329, %v5325
    %v5331 = vlaneseq
    %v5332 = vshrl.u32 %v5331, 7
    %v5333 = vsub.s32 %v3621, %v5332
    %v5334 = vrot.slane %v5117, %v5333
    %v5335 = vlaneseq
    %v5336 = vshrl.u32 %v5335, 7
    %v5337 = vsub.s32 %v3626, %v5336
    %v5338 = vrot.slane %v5120, %v5337
    %v5339 = vsel %vm3631, %v5338, %v5334
    %v5340 = vlaneseq
    %v5341 = vshrl.u32 %v5340, 7
    %v5342 = vsub.s32 %v3621, %v5341
    %v5343 = vrot.slane %v5123, %v5342
    %v5344 = vlaneseq
    %v5345 = vshrl.u32 %v5344, 7
    %v5346 = vsub.s32 %v3626, %v5345
    %v5347 = vrot.slane %v5126, %v5346
    %v5348 = vsel %vm3631, %v5347, %v5343
    %v5349 = vlaneseq
    %v5350 = vshrl.u32 %v5349, 7
    %v5351 = vsub.s32 %v3621, %v5350
    %v5352 = vrot.slane %v5129, %v5351
    %v5353 = vlaneseq
    %v5354 = vshrl.u32 %v5353, 7
    %v5355 = vsub.s32 %v3626, %v5354
    %v5356 = vrot.slane %v5132, %v5355
    %v5357 = vsel %vm3631, %v5356, %v5352
    %v5358 = vlaneseq
    %v5359 = vshrl.u32 %v5358, 7
    %v5360 = vsub.s32 %v3621, %v5359
    %v5361 = vrot.slane %v5135, %v5360
    %v5362 = vlaneseq
    %v5363 = vshrl.u32 %v5362, 7
    %v5364 = vsub.s32 %v3626, %v5363
    %v5365 = vrot.slane %v5138, %v5364
    %v5366 = vsel %vm3631, %v5365, %v5361
    %v5367 = vlaneseq
    %v5368 = vshrl.u32 %v5367, 7
    %v5369 = vsub.s32 %v3621, %v5368
    %v5370 = vrot.slane %v5141, %v5369
    %v5371 = vlaneseq
    %v5372 = vshrl.u32 %v5371, 7
    %v5373 = vsub.s32 %v3626, %v5372
    %v5374 = vrot.slane %v5144, %v5373
    %v5375 = vsel %vm3631, %v5374, %v5370
    %v5376 = vlaneseq
    %v5377 = vshrl.u32 %v5376, 7
    %v5378 = vsub.s32 %v3621, %v5377
    %v5379 = vrot.slane %v5147, %v5378
    %v5380 = vlaneseq
    %v5381 = vshrl.u32 %v5380, 7
    %v5382 = vsub.s32 %v3626, %v5381
    %v5383 = vrot.slane %v5150, %v5382
    %v5384 = vsel %vm3631, %v5383, %v5379
    %v5385 = vlaneseq
    %v5386 = vshrl.u32 %v5385, 7
    %v5387 = vsub.s32 %v3621, %v5386
    %v5388 = vrot.slane %v5153, %v5387
    %v5389 = vlaneseq
    %v5390 = vshrl.u32 %v5389, 7
    %v5391 = vsub.s32 %v3626, %v5390
    %v5392 = vrot.slane %v5156, %v5391
    %v5393 = vsel %vm3631, %v5392, %v5388
    %v5394 = vlaneseq
    %v5395 = vshrl.u32 %v5394, 7
    %v5396 = vsub.s32 %v3621, %v5395
    %v5397 = vrot.slane %v5159, %v5396
    %v5398 = vlaneseq
    %v5399 = vshrl.u32 %v5398, 7
    %v5400 = vsub.s32 %v3626, %v5399
    %v5401 = vrot.slane %v5162, %v5400
    %v5402 = vsel %vm3631, %v5401, %v5397
    %v5403 = vlaneseq
    %v5404 = vshrl.u32 %v5403, 7
    %v5405 = vsub.s32 %v3621, %v5404
    %v5406 = vrot.slane %v5165, %v5405
    %v5407 = vlaneseq
    %v5408 = vshrl.u32 %v5407, 7
    %v5409 = vsub.s32 %v3626, %v5408
    %v5410 = vrot.slane %v5168, %v5409
    %v5411 = vsel %vm3631, %v5410, %v5406
    %v5412 = vlaneseq
    %v5413 = vshrl.u32 %v5412, 7
    %v5414 = vsub.s32 %v3621, %v5413
    %v5415 = vrot.slane %v5171, %v5414
    %v5416 = vlaneseq
    %v5417 = vshrl.u32 %v5416, 7
    %v5418 = vsub.s32 %v3626, %v5417
    %v5419 = vrot.slane %v5174, %v5418
    %v5420 = vsel %vm3631, %v5419, %v5415
    %v5421 = vlaneseq
    %v5422 = vshrl.u32 %v5421, 7
    %v5423 = vsub.s32 %v3621, %v5422
    %v5424 = vrot.slane %v5177, %v5423
    %v5425 = vlaneseq
    %v5426 = vshrl.u32 %v5425, 7
    %v5427 = vsub.s32 %v3626, %v5426
    %v5428 = vrot.slane %v5180, %v5427
    %v5429 = vsel %vm3631, %v5428, %v5424
    %v5430 = vlaneseq
    %v5431 = vshrl.u32 %v5430, 7
    %v5432 = vsub.s32 %v3621, %v5431
    %v5433 = vrot.slane %v5183, %v5432
    %v5434 = vlaneseq
    %v5435 = vshrl.u32 %v5434, 7
    %v5436 = vsub.s32 %v3626, %v5435
    %v5437 = vrot.slane %v5186, %v5436
    %v5438 = vsel %vm3631, %v5437, %v5433
    %v5439 = vlaneseq
    %v5440 = vshrl.u32 %v5439, 7
    %v5441 = vsub.s32 %v3621, %v5440
    %v5442 = vrot.slane %v5189, %v5441
    %v5443 = vlaneseq
    %v5444 = vshrl.u32 %v5443, 7
    %v5445 = vsub.s32 %v3626, %v5444
    %v5446 = vrot.slane %v5192, %v5445
    %v5447 = vsel %vm3631, %v5446, %v5442
    %v5448 = vlaneseq
    %v5449 = vshrl.u32 %v5448, 7
    %v5450 = vsub.s32 %v3621, %v5449
    %v5451 = vrot.slane %v5195, %v5450
    %v5452 = vlaneseq
    %v5453 = vshrl.u32 %v5452, 7
    %v5454 = vsub.s32 %v3626, %v5453
    %v5455 = vrot.slane %v5198, %v5454
    %v5456 = vsel %vm3631, %v5455, %v5451
    %v5457 = vlaneseq
    %v5458 = vshrl.u32 %v5457, 7
    %v5459 = vsub.s32 %v3621, %v5458
    %v5460 = vrot.slane %v5201, %v5459
    %v5461 = vlaneseq
    %v5462 = vshrl.u32 %v5461, 7
    %v5463 = vsub.s32 %v3626, %v5462
    %v5464 = vrot.slane %v5204, %v5463
    %v5465 = vsel %vm3631, %v5464, %v5460
    %v5466 = vlaneseq
    %v5467 = vshrl.u32 %v5466, 7
    %v5468 = vsub.s32 %v3621, %v5467
    %v5469 = vrot.slane %v5207, %v5468
    %v5470 = vlaneseq
    %v5471 = vshrl.u32 %v5470, 7
    %v5472 = vsub.s32 %v3626, %v5471
    %v5473 = vrot.slane %v5210, %v5472
    %v5474 = vsel %vm3631, %v5473, %v5469
    %v5475 = vlaneseq
    %v5476 = vshrl.u32 %v5475, 7
    %v5477 = vsub.s32 %v3621, %v5476
    %v5478 = vrot.slane %v5213, %v5477
    %v5479 = vlaneseq
    %v5480 = vshrl.u32 %v5479, 7
    %v5481 = vsub.s32 %v3626, %v5480
    %v5482 = vrot.slane %v5216, %v5481
    %v5483 = vsel %vm3631, %v5482, %v5478
    %v5484 = vlaneseq
    %v5485 = vshrl.u32 %v5484, 7
    %v5486 = vsub.s32 %v3621, %v5485
    %v5487 = vrot.slane %v5219, %v5486
    %v5488 = vlaneseq
    %v5489 = vshrl.u32 %v5488, 7
    %v5490 = vsub.s32 %v3626, %v5489
    %v5491 = vrot.slane %v5222, %v5490
    %v5492 = vsel %vm3631, %v5491, %v5487
    %v5493 = vlaneseq
    %v5494 = vshrl.u32 %v5493, 7
    %v5495 = vsub.s32 %v3621, %v5494
    %v5496 = vrot.slane %v5225, %v5495
    %v5497 = vlaneseq
    %v5498 = vshrl.u32 %v5497, 7
    %v5499 = vsub.s32 %v3626, %v5498
    %v5500 = vrot.slane %v5228, %v5499
    %v5501 = vsel %vm3631, %v5500, %v5496
    %v5502 = vlaneseq
    %v5503 = vshrl.u32 %v5502, 7
    %v5504 = vsub.s32 %v3621, %v5503
    %v5505 = vrot.slane %v5231, %v5504
    %v5506 = vlaneseq
    %v5507 = vshrl.u32 %v5506, 7
    %v5508 = vsub.s32 %v3626, %v5507
    %v5509 = vrot.slane %v5234, %v5508
    %v5510 = vsel %vm3631, %v5509, %v5505
    %v5511 = vlaneseq
    %v5512 = vshrl.u32 %v5511, 7
    %v5513 = vsub.s32 %v3621, %v5512
    %v5514 = vrot.slane %v5237, %v5513
    %v5515 = vlaneseq
    %v5516 = vshrl.u32 %v5515, 7
    %v5517 = vsub.s32 %v3626, %v5516
    %v5518 = vrot.slane %v5240, %v5517
    %v5519 = vsel %vm3631, %v5518, %v5514
    %v5520 = vlaneseq
    %v5521 = vshrl.u32 %v5520, 7
    %v5522 = vsub.s32 %v3621, %v5521
    %v5523 = vrot.slane %v5243, %v5522
    %v5524 = vlaneseq
    %v5525 = vshrl.u32 %v5524, 7
    %v5526 = vsub.s32 %v3626, %v5525
    %v5527 = vrot.slane %v5246, %v5526
    %v5528 = vsel %vm3631, %v5527, %v5523
    %v5529 = vlaneseq
    %v5530 = vshrl.u32 %v5529, 7
    %v5531 = vsub.s32 %v3621, %v5530
    %v5532 = vrot.slane %v5249, %v5531
    %v5533 = vlaneseq
    %v5534 = vshrl.u32 %v5533, 7
    %v5535 = vsub.s32 %v3626, %v5534
    %v5536 = vrot.slane %v5252, %v5535
    %v5537 = vsel %vm3631, %v5536, %v5532
    %v5538 = vlaneseq
    %v5539 = vshrl.u32 %v5538, 7
    %v5540 = vsub.s32 %v3621, %v5539
    %v5541 = vrot.slane %v5255, %v5540
    %v5542 = vlaneseq
    %v5543 = vshrl.u32 %v5542, 7
    %v5544 = vsub.s32 %v3626, %v5543
    %v5545 = vrot.slane %v5258, %v5544
    %v5546 = vsel %vm3631, %v5545, %v5541
    %v5547 = vsel %vm3912, %v5276, %v5267
    %v5548 = vsel %vm3914, %v5285, %v5547
    %v5549 = vsel %vm3916, %v5294, %v5548
    %v5550 = vsel %vm3918, %v5303, %v5549
    %v5551 = vsel %vm3920, %v5312, %v5550
    %v5552 = vsel %vm3922, %v5321, %v5551
    %v5553 = vsel %vm3924, %v5330, %v5552
    %v5554 = vsel %vm3912, %v5348, %v5339
    %v5555 = vsel %vm3914, %v5357, %v5554
    %v5556 = vsel %vm3916, %v5366, %v5555
    %v5557 = vsel %vm3918, %v5375, %v5556
    %v5558 = vsel %vm3920, %v5384, %v5557
    %v5559 = vsel %vm3922, %v5393, %v5558
    %v5560 = vsel %vm3924, %v5402, %v5559
    %v5561 = vsel %vm3912, %v5420, %v5411
    %v5562 = vsel %vm3914, %v5429, %v5561
    %v5563 = vsel %vm3916, %v5438, %v5562
    %v5564 = vsel %vm3918, %v5447, %v5563
    %v5565 = vsel %vm3920, %v5456, %v5564
    %v5566 = vsel %vm3922, %v5465, %v5565
    %v5567 = vsel %vm3924, %v5474, %v5566
    %v5568 = vsel %vm3912, %v5492, %v5483
    %v5569 = vsel %vm3914, %v5501, %v5568
    %v5570 = vsel %vm3916, %v5510, %v5569
    %v5571 = vsel %vm3918, %v5519, %v5570
    %v5572 = vsel %vm3920, %v5528, %v5571
    %v5573 = vsel %vm3922, %v5537, %v5572
    %v5574 = vsel %vm3924, %v5546, %v5573
    %v5579 = vsel %vm2143, %v5553, 0.0
    %5580 = vadd.xlane.f32.xlu0 %v5579
    %v5581 = vpop.xlane.xlu0 %5580
    %v5582 = vsel %vm2143, %v5560, 0.0
    %5583 = vadd.xlane.f32.xlu0 %v5582
    %v5584 = vpop.xlane.xlu0 %5583
    %v5585 = vsel %vm2143, %v5567, 0.0
    %5586 = vadd.xlane.f32.xlu0 %v5585
    %v5587 = vpop.xlane.xlu0 %5586
    %v5588 = vsel %vm2143, %v5574, 0.0
    %5589 = vadd.xlane.f32.xlu0 %v5588
    %v5590 = vpop.xlane.xlu0 %5589
    %v5595 = vlaneseq
    %v5596 = vshrl.u32 %v5595, 7
    %v5597 = vsub.s32 0, %v5596
    %v5598 = vrot.slane %v5581, %v5597
    %v5599 = vlaneseq
    %v5600 = vshrl.u32 %v5599, 7
    %v5601 = vsub.s32 1, %v5600
    %v5602 = vrot.slane %v5581, %v5601
    %v5603 = vlaneseq
    %v5604 = vshrl.u32 %v5603, 7
    %v5605 = vsub.s32 2, %v5604
    %v5606 = vrot.slane %v5581, %v5605
    %v5607 = vlaneseq
    %v5608 = vshrl.u32 %v5607, 7
    %v5609 = vsub.s32 3, %v5608
    %v5610 = vrot.slane %v5581, %v5609
    %v5611 = vlaneseq
    %v5612 = vshrl.u32 %v5611, 7
    %v5613 = vsub.s32 4, %v5612
    %v5614 = vrot.slane %v5581, %v5613
    %v5615 = vlaneseq
    %v5616 = vshrl.u32 %v5615, 7
    %v5617 = vsub.s32 5, %v5616
    %v5618 = vrot.slane %v5581, %v5617
    %v5619 = vlaneseq
    %v5620 = vshrl.u32 %v5619, 7
    %v5621 = vsub.s32 6, %v5620
    %v5622 = vrot.slane %v5581, %v5621
    %v5623 = vlaneseq
    %v5624 = vshrl.u32 %v5623, 7
    %v5625 = vsub.s32 7, %v5624
    %v5626 = vrot.slane %v5581, %v5625
    %v5627 = vlaneseq
    %v5628 = vshrl.u32 %v5627, 7
    %v5629 = vsub.s32 0, %v5628
    %v5630 = vrot.slane %v5584, %v5629
    %v5631 = vlaneseq
    %v5632 = vshrl.u32 %v5631, 7
    %v5633 = vsub.s32 1, %v5632
    %v5634 = vrot.slane %v5584, %v5633
    %v5635 = vlaneseq
    %v5636 = vshrl.u32 %v5635, 7
    %v5637 = vsub.s32 2, %v5636
    %v5638 = vrot.slane %v5584, %v5637
    %v5639 = vlaneseq
    %v5640 = vshrl.u32 %v5639, 7
    %v5641 = vsub.s32 3, %v5640
    %v5642 = vrot.slane %v5584, %v5641
    %v5643 = vlaneseq
    %v5644 = vshrl.u32 %v5643, 7
    %v5645 = vsub.s32 4, %v5644
    %v5646 = vrot.slane %v5584, %v5645
    %v5647 = vlaneseq
    %v5648 = vshrl.u32 %v5647, 7
    %v5649 = vsub.s32 5, %v5648
    %v5650 = vrot.slane %v5584, %v5649
    %v5651 = vlaneseq
    %v5652 = vshrl.u32 %v5651, 7
    %v5653 = vsub.s32 6, %v5652
    %v5654 = vrot.slane %v5584, %v5653
    %v5655 = vlaneseq
    %v5656 = vshrl.u32 %v5655, 7
    %v5657 = vsub.s32 7, %v5656
    %v5658 = vrot.slane %v5584, %v5657
    %v5659 = vlaneseq
    %v5660 = vshrl.u32 %v5659, 7
    %v5661 = vsub.s32 0, %v5660
    %v5662 = vrot.slane %v5587, %v5661
    %v5663 = vlaneseq
    %v5664 = vshrl.u32 %v5663, 7
    %v5665 = vsub.s32 1, %v5664
    %v5666 = vrot.slane %v5587, %v5665
    %v5667 = vlaneseq
    %v5668 = vshrl.u32 %v5667, 7
    %v5669 = vsub.s32 2, %v5668
    %v5670 = vrot.slane %v5587, %v5669
    %v5671 = vlaneseq
    %v5672 = vshrl.u32 %v5671, 7
    %v5673 = vsub.s32 3, %v5672
    %v5674 = vrot.slane %v5587, %v5673
    %v5675 = vlaneseq
    %v5676 = vshrl.u32 %v5675, 7
    %v5677 = vsub.s32 4, %v5676
    %v5678 = vrot.slane %v5587, %v5677
    %v5679 = vlaneseq
    %v5680 = vshrl.u32 %v5679, 7
    %v5681 = vsub.s32 5, %v5680
    %v5682 = vrot.slane %v5587, %v5681
    %v5683 = vlaneseq
    %v5684 = vshrl.u32 %v5683, 7
    %v5685 = vsub.s32 6, %v5684
    %v5686 = vrot.slane %v5587, %v5685
    %v5687 = vlaneseq
    %v5688 = vshrl.u32 %v5687, 7
    %v5689 = vsub.s32 7, %v5688
    %v5690 = vrot.slane %v5587, %v5689
    %v5691 = vlaneseq
    %v5692 = vshrl.u32 %v5691, 7
    %v5693 = vsub.s32 0, %v5692
    %v5694 = vrot.slane %v5590, %v5693
    %v5695 = vlaneseq
    %v5696 = vshrl.u32 %v5695, 7
    %v5697 = vsub.s32 1, %v5696
    %v5698 = vrot.slane %v5590, %v5697
    %v5699 = vlaneseq
    %v5700 = vshrl.u32 %v5699, 7
    %v5701 = vsub.s32 2, %v5700
    %v5702 = vrot.slane %v5590, %v5701
    %v5703 = vlaneseq
    %v5704 = vshrl.u32 %v5703, 7
    %v5705 = vsub.s32 3, %v5704
    %v5706 = vrot.slane %v5590, %v5705
    %v5707 = vlaneseq
    %v5708 = vshrl.u32 %v5707, 7
    %v5709 = vsub.s32 4, %v5708
    %v5710 = vrot.slane %v5590, %v5709
    %v5711 = vlaneseq
    %v5712 = vshrl.u32 %v5711, 7
    %v5713 = vsub.s32 5, %v5712
    %v5714 = vrot.slane %v5590, %v5713
    %v5715 = vlaneseq
    %v5716 = vshrl.u32 %v5715, 7
    %v5717 = vsub.s32 6, %v5716
    %v5718 = vrot.slane %v5590, %v5717
    %v5719 = vlaneseq
    %v5720 = vshrl.u32 %v5719, 7
    %v5721 = vsub.s32 7, %v5720
    %v5722 = vrot.slane %v5590, %v5721
    %v5755 = vrcp.pop %v5598
    %v5756 = vmul.f32 %v4939, %v5755
    %v5757 = vmul.f32 %v4940, %v5755
    %v5758 = vrcp.pop %v5602
    %v5759 = vmul.f32 %v4941, %v5758
    %v5760 = vmul.f32 %v4942, %v5758
    %v5761 = vrcp.pop %v5606
    %v5762 = vmul.f32 %v4943, %v5761
    %v5763 = vmul.f32 %v4944, %v5761
    %v5764 = vrcp.pop %v5610
    %v5765 = vmul.f32 %v4945, %v5764
    %v5766 = vmul.f32 %v4946, %v5764
    %v5767 = vrcp.pop %v5614
    %v5768 = vmul.f32 %v4947, %v5767
    %v5769 = vmul.f32 %v4948, %v5767
    %v5770 = vrcp.pop %v5618
    %v5771 = vmul.f32 %v4949, %v5770
    %v5772 = vmul.f32 %v4950, %v5770
    %v5773 = vrcp.pop %v5622
    %v5774 = vmul.f32 %v4951, %v5773
    %v5775 = vmul.f32 %v4952, %v5773
    %v5776 = vrcp.pop %v5626
    %v5777 = vmul.f32 %v4953, %v5776
    %v5778 = vmul.f32 %v4954, %v5776
    %v5779 = vrcp.pop %v5630
    %v5780 = vmul.f32 %v4955, %v5779
    %v5781 = vmul.f32 %v4956, %v5779
    %v5782 = vrcp.pop %v5634
    %v5783 = vmul.f32 %v4957, %v5782
    %v5784 = vmul.f32 %v4958, %v5782
    %v5785 = vrcp.pop %v5638
    %v5786 = vmul.f32 %v4959, %v5785
    %v5787 = vmul.f32 %v4960, %v5785
    %v5788 = vrcp.pop %v5642
    %v5789 = vmul.f32 %v4961, %v5788
    %v5790 = vmul.f32 %v4962, %v5788
    %v5791 = vrcp.pop %v5646
    %v5792 = vmul.f32 %v4963, %v5791
    %v5793 = vmul.f32 %v4964, %v5791
    %v5794 = vrcp.pop %v5650
    %v5795 = vmul.f32 %v4965, %v5794
    %v5796 = vmul.f32 %v4966, %v5794
    %v5797 = vrcp.pop %v5654
    %v5798 = vmul.f32 %v4967, %v5797
    %v5799 = vmul.f32 %v4968, %v5797
    %v5800 = vrcp.pop %v5658
    %v5801 = vmul.f32 %v4969, %v5800
    %v5802 = vmul.f32 %v4970, %v5800
    %v5803 = vrcp.pop %v5662
    %v5804 = vmul.f32 %v4971, %v5803
    %v5805 = vmul.f32 %v4972, %v5803
    %v5806 = vrcp.pop %v5666
    %v5807 = vmul.f32 %v4973, %v5806
    %v5808 = vmul.f32 %v4974, %v5806
    %v5809 = vrcp.pop %v5670
    %v5810 = vmul.f32 %v4975, %v5809
    %v5811 = vmul.f32 %v4976, %v5809
    %v5812 = vrcp.pop %v5674
    %v5813 = vmul.f32 %v4977, %v5812
    %v5814 = vmul.f32 %v4978, %v5812
    %v5815 = vrcp.pop %v5678
    %v5816 = vmul.f32 %v4979, %v5815
    %v5817 = vmul.f32 %v4980, %v5815
    %v5818 = vrcp.pop %v5682
    %v5819 = vmul.f32 %v4981, %v5818
    %v5820 = vmul.f32 %v4982, %v5818
    %v5821 = vrcp.pop %v5686
    %v5822 = vmul.f32 %v4983, %v5821
    %v5823 = vmul.f32 %v4984, %v5821
    %v5824 = vrcp.pop %v5690
    %v5825 = vmul.f32 %v4985, %v5824
    %v5826 = vmul.f32 %v4986, %v5824
    %v5827 = vrcp.pop %v5694
    %v5828 = vmul.f32 %v4987, %v5827
    %v5829 = vmul.f32 %v4988, %v5827
    %v5830 = vrcp.pop %v5698
    %v5831 = vmul.f32 %v4989, %v5830
    %v5832 = vmul.f32 %v4990, %v5830
    %v5833 = vrcp.pop %v5702
    %v5834 = vmul.f32 %v4991, %v5833
    %v5835 = vmul.f32 %v4992, %v5833
    %v5836 = vrcp.pop %v5706
    %v5837 = vmul.f32 %v4993, %v5836
    %v5838 = vmul.f32 %v4994, %v5836
    %v5839 = vrcp.pop %v5710
    %v5840 = vmul.f32 %v4995, %v5839
    %v5841 = vmul.f32 %v4996, %v5839
    %v5842 = vrcp.pop %v5714
    %v5843 = vmul.f32 %v4997, %v5842
    %v5844 = vmul.f32 %v4998, %v5842
    %v5845 = vrcp.pop %v5718
    %v5846 = vmul.f32 %v4999, %v5845
    %v5847 = vmul.f32 %v5000, %v5845
    %v5848 = vrcp.pop %v5722
    %v5849 = vmul.f32 %v5001, %v5848
    %v5850 = vmul.f32 %v5002, %v5848
    %5915 = vset.pattern.permute.xlu0 0
    %5916 = vperm.xlu0 %5915, %v5756
    %v5917 = vpop.permute.xlu0 %5916
    %5918 = vset.pattern.permute.xlu0 0
    %5919 = vperm.xlu0 %5918, %v5757
    %v5920 = vpop.permute.xlu0 %5919
    %5921 = vset.pattern.permute.xlu0 0
    %5922 = vperm.xlu0 %5921, %v5759
    %v5923 = vpop.permute.xlu0 %5922
    %5924 = vset.pattern.permute.xlu0 0
    %5925 = vperm.xlu0 %5924, %v5760
    %v5926 = vpop.permute.xlu0 %5925
    %5927 = vset.pattern.permute.xlu0 0
    %5928 = vperm.xlu0 %5927, %v5762
    %v5929 = vpop.permute.xlu0 %5928
    %5930 = vset.pattern.permute.xlu0 0
    %5931 = vperm.xlu0 %5930, %v5763
    %v5932 = vpop.permute.xlu0 %5931
    %5933 = vset.pattern.permute.xlu0 0
    %5934 = vperm.xlu0 %5933, %v5765
    %v5935 = vpop.permute.xlu0 %5934
    %5936 = vset.pattern.permute.xlu0 0
    %5937 = vperm.xlu0 %5936, %v5766
    %v5938 = vpop.permute.xlu0 %5937
    %5939 = vset.pattern.permute.xlu0 0
    %5940 = vperm.xlu0 %5939, %v5768
    %v5941 = vpop.permute.xlu0 %5940
    %5942 = vset.pattern.permute.xlu0 0
    %5943 = vperm.xlu0 %5942, %v5769
    %v5944 = vpop.permute.xlu0 %5943
    %5945 = vset.pattern.permute.xlu0 0
    %5946 = vperm.xlu0 %5945, %v5771
    %v5947 = vpop.permute.xlu0 %5946
    %5948 = vset.pattern.permute.xlu0 0
    %5949 = vperm.xlu0 %5948, %v5772
    %v5950 = vpop.permute.xlu0 %5949
    %5951 = vset.pattern.permute.xlu0 0
    %5952 = vperm.xlu0 %5951, %v5774
    %v5953 = vpop.permute.xlu0 %5952
    %5954 = vset.pattern.permute.xlu0 0
    %5955 = vperm.xlu0 %5954, %v5775
    %v5956 = vpop.permute.xlu0 %5955
    %5957 = vset.pattern.permute.xlu0 0
    %5958 = vperm.xlu0 %5957, %v5777
    %v5959 = vpop.permute.xlu0 %5958
    %5960 = vset.pattern.permute.xlu0 0
    %5961 = vperm.xlu0 %5960, %v5778
    %v5962 = vpop.permute.xlu0 %5961
    %5963 = vset.pattern.permute.xlu0 0
    %5964 = vperm.xlu0 %5963, %v5780
    %v5965 = vpop.permute.xlu0 %5964
    %5966 = vset.pattern.permute.xlu0 0
    %5967 = vperm.xlu0 %5966, %v5781
    %v5968 = vpop.permute.xlu0 %5967
    %5969 = vset.pattern.permute.xlu0 0
    %5970 = vperm.xlu0 %5969, %v5783
    %v5971 = vpop.permute.xlu0 %5970
    %5972 = vset.pattern.permute.xlu0 0
    %5973 = vperm.xlu0 %5972, %v5784
    %v5974 = vpop.permute.xlu0 %5973
    %5975 = vset.pattern.permute.xlu0 0
    %5976 = vperm.xlu0 %5975, %v5786
    %v5977 = vpop.permute.xlu0 %5976
    %5978 = vset.pattern.permute.xlu0 0
    %5979 = vperm.xlu0 %5978, %v5787
    %v5980 = vpop.permute.xlu0 %5979
    %5981 = vset.pattern.permute.xlu0 0
    %5982 = vperm.xlu0 %5981, %v5789
    %v5983 = vpop.permute.xlu0 %5982
    %5984 = vset.pattern.permute.xlu0 0
    %5985 = vperm.xlu0 %5984, %v5790
    %v5986 = vpop.permute.xlu0 %5985
    %5987 = vset.pattern.permute.xlu0 0
    %5988 = vperm.xlu0 %5987, %v5792
    %v5989 = vpop.permute.xlu0 %5988
    %5990 = vset.pattern.permute.xlu0 0
    %5991 = vperm.xlu0 %5990, %v5793
    %v5992 = vpop.permute.xlu0 %5991
    %5993 = vset.pattern.permute.xlu0 0
    %5994 = vperm.xlu0 %5993, %v5795
    %v5995 = vpop.permute.xlu0 %5994
    %5996 = vset.pattern.permute.xlu0 0
    %5997 = vperm.xlu0 %5996, %v5796
    %v5998 = vpop.permute.xlu0 %5997
    %5999 = vset.pattern.permute.xlu0 0
    %6000 = vperm.xlu0 %5999, %v5798
    %v6001 = vpop.permute.xlu0 %6000
    %6002 = vset.pattern.permute.xlu0 0
    %6003 = vperm.xlu0 %6002, %v5799
    %v6004 = vpop.permute.xlu0 %6003
    %6005 = vset.pattern.permute.xlu0 0
    %6006 = vperm.xlu0 %6005, %v5801
    %v6007 = vpop.permute.xlu0 %6006
    %6008 = vset.pattern.permute.xlu0 0
    %6009 = vperm.xlu0 %6008, %v5802
    %v6010 = vpop.permute.xlu0 %6009
    %6011 = vset.pattern.permute.xlu0 0
    %6012 = vperm.xlu0 %6011, %v5804
    %v6013 = vpop.permute.xlu0 %6012
    %6014 = vset.pattern.permute.xlu0 0
    %6015 = vperm.xlu0 %6014, %v5805
    %v6016 = vpop.permute.xlu0 %6015
    %6017 = vset.pattern.permute.xlu0 0
    %6018 = vperm.xlu0 %6017, %v5807
    %v6019 = vpop.permute.xlu0 %6018
    %6020 = vset.pattern.permute.xlu0 0
    %6021 = vperm.xlu0 %6020, %v5808
    %v6022 = vpop.permute.xlu0 %6021
    %6023 = vset.pattern.permute.xlu0 0
    %6024 = vperm.xlu0 %6023, %v5810
    %v6025 = vpop.permute.xlu0 %6024
    %6026 = vset.pattern.permute.xlu0 0
    %6027 = vperm.xlu0 %6026, %v5811
    %v6028 = vpop.permute.xlu0 %6027
    %6029 = vset.pattern.permute.xlu0 0
    %6030 = vperm.xlu0 %6029, %v5813
    %v6031 = vpop.permute.xlu0 %6030
    %6032 = vset.pattern.permute.xlu0 0
    %6033 = vperm.xlu0 %6032, %v5814
    %v6034 = vpop.permute.xlu0 %6033
    %6035 = vset.pattern.permute.xlu0 0
    %6036 = vperm.xlu0 %6035, %v5816
    %v6037 = vpop.permute.xlu0 %6036
    %6038 = vset.pattern.permute.xlu0 0
    %6039 = vperm.xlu0 %6038, %v5817
    %v6040 = vpop.permute.xlu0 %6039
    %6041 = vset.pattern.permute.xlu0 0
    %6042 = vperm.xlu0 %6041, %v5819
    %v6043 = vpop.permute.xlu0 %6042
    %6044 = vset.pattern.permute.xlu0 0
    %6045 = vperm.xlu0 %6044, %v5820
    %v6046 = vpop.permute.xlu0 %6045
    %6047 = vset.pattern.permute.xlu0 0
    %6048 = vperm.xlu0 %6047, %v5822
    %v6049 = vpop.permute.xlu0 %6048
    %6050 = vset.pattern.permute.xlu0 0
    %6051 = vperm.xlu0 %6050, %v5823
    %v6052 = vpop.permute.xlu0 %6051
    %6053 = vset.pattern.permute.xlu0 0
    %6054 = vperm.xlu0 %6053, %v5825
    %v6055 = vpop.permute.xlu0 %6054
    %6056 = vset.pattern.permute.xlu0 0
    %6057 = vperm.xlu0 %6056, %v5826
    %v6058 = vpop.permute.xlu0 %6057
    %6059 = vset.pattern.permute.xlu0 0
    %6060 = vperm.xlu0 %6059, %v5828
    %v6061 = vpop.permute.xlu0 %6060
    %6062 = vset.pattern.permute.xlu0 0
    %6063 = vperm.xlu0 %6062, %v5829
    %v6064 = vpop.permute.xlu0 %6063
    %6065 = vset.pattern.permute.xlu0 0
    %6066 = vperm.xlu0 %6065, %v5831
    %v6067 = vpop.permute.xlu0 %6066
    %6068 = vset.pattern.permute.xlu0 0
    %6069 = vperm.xlu0 %6068, %v5832
    %v6070 = vpop.permute.xlu0 %6069
    %6071 = vset.pattern.permute.xlu0 0
    %6072 = vperm.xlu0 %6071, %v5834
    %v6073 = vpop.permute.xlu0 %6072
    %6074 = vset.pattern.permute.xlu0 0
    %6075 = vperm.xlu0 %6074, %v5835
    %v6076 = vpop.permute.xlu0 %6075
    %6077 = vset.pattern.permute.xlu0 0
    %6078 = vperm.xlu0 %6077, %v5837
    %v6079 = vpop.permute.xlu0 %6078
    %6080 = vset.pattern.permute.xlu0 0
    %6081 = vperm.xlu0 %6080, %v5838
    %v6082 = vpop.permute.xlu0 %6081
    %6083 = vset.pattern.permute.xlu0 0
    %6084 = vperm.xlu0 %6083, %v5840
    %v6085 = vpop.permute.xlu0 %6084
    %6086 = vset.pattern.permute.xlu0 0
    %6087 = vperm.xlu0 %6086, %v5841
    %v6088 = vpop.permute.xlu0 %6087
    %6089 = vset.pattern.permute.xlu0 0
    %6090 = vperm.xlu0 %6089, %v5843
    %v6091 = vpop.permute.xlu0 %6090
    %6092 = vset.pattern.permute.xlu0 0
    %6093 = vperm.xlu0 %6092, %v5844
    %v6094 = vpop.permute.xlu0 %6093
    %6095 = vset.pattern.permute.xlu0 0
    %6096 = vperm.xlu0 %6095, %v5846
    %v6097 = vpop.permute.xlu0 %6096
    %6098 = vset.pattern.permute.xlu0 0
    %6099 = vperm.xlu0 %6098, %v5847
    %v6100 = vpop.permute.xlu0 %6099
    %6101 = vset.pattern.permute.xlu0 0
    %6102 = vperm.xlu0 %6101, %v5849
    %v6103 = vpop.permute.xlu0 %6102
    %6104 = vset.pattern.permute.xlu0 0
    %6105 = vperm.xlu0 %6104, %v5850
    %v6106 = vpop.permute.xlu0 %6105
    %v6107 = vlaneseq
    %v6108 = vshrl.u32 %v6107, 7
    %v6109 = vsub.s32 %v3621, %v6108
    %v6110 = vrot.slane %v5917, %v6109
    %v6111 = vlaneseq
    %v6112 = vshrl.u32 %v6111, 7
    %v6113 = vsub.s32 %v3626, %v6112
    %v6114 = vrot.slane %v5920, %v6113
    %v6115 = vsel %vm3631, %v6114, %v6110
    %v6116 = vlaneseq
    %v6117 = vshrl.u32 %v6116, 7
    %v6118 = vsub.s32 %v3621, %v6117
    %v6119 = vrot.slane %v5923, %v6118
    %v6120 = vlaneseq
    %v6121 = vshrl.u32 %v6120, 7
    %v6122 = vsub.s32 %v3626, %v6121
    %v6123 = vrot.slane %v5926, %v6122
    %v6124 = vsel %vm3631, %v6123, %v6119
    %v6125 = vlaneseq
    %v6126 = vshrl.u32 %v6125, 7
    %v6127 = vsub.s32 %v3621, %v6126
    %v6128 = vrot.slane %v5929, %v6127
    %v6129 = vlaneseq
    %v6130 = vshrl.u32 %v6129, 7
    %v6131 = vsub.s32 %v3626, %v6130
    %v6132 = vrot.slane %v5932, %v6131
    %v6133 = vsel %vm3631, %v6132, %v6128
    %v6134 = vlaneseq
    %v6135 = vshrl.u32 %v6134, 7
    %v6136 = vsub.s32 %v3621, %v6135
    %v6137 = vrot.slane %v5935, %v6136
    %v6138 = vlaneseq
    %v6139 = vshrl.u32 %v6138, 7
    %v6140 = vsub.s32 %v3626, %v6139
    %v6141 = vrot.slane %v5938, %v6140
    %v6142 = vsel %vm3631, %v6141, %v6137
    %v6143 = vlaneseq
    %v6144 = vshrl.u32 %v6143, 7
    %v6145 = vsub.s32 %v3621, %v6144
    %v6146 = vrot.slane %v5941, %v6145
    %v6147 = vlaneseq
    %v6148 = vshrl.u32 %v6147, 7
    %v6149 = vsub.s32 %v3626, %v6148
    %v6150 = vrot.slane %v5944, %v6149
    %v6151 = vsel %vm3631, %v6150, %v6146
    %v6152 = vlaneseq
    %v6153 = vshrl.u32 %v6152, 7
    %v6154 = vsub.s32 %v3621, %v6153
    %v6155 = vrot.slane %v5947, %v6154
    %v6156 = vlaneseq
    %v6157 = vshrl.u32 %v6156, 7
    %v6158 = vsub.s32 %v3626, %v6157
    %v6159 = vrot.slane %v5950, %v6158
    %v6160 = vsel %vm3631, %v6159, %v6155
    %v6161 = vlaneseq
    %v6162 = vshrl.u32 %v6161, 7
    %v6163 = vsub.s32 %v3621, %v6162
    %v6164 = vrot.slane %v5953, %v6163
    %v6165 = vlaneseq
    %v6166 = vshrl.u32 %v6165, 7
    %v6167 = vsub.s32 %v3626, %v6166
    %v6168 = vrot.slane %v5956, %v6167
    %v6169 = vsel %vm3631, %v6168, %v6164
    %v6170 = vlaneseq
    %v6171 = vshrl.u32 %v6170, 7
    %v6172 = vsub.s32 %v3621, %v6171
    %v6173 = vrot.slane %v5959, %v6172
    %v6174 = vlaneseq
    %v6175 = vshrl.u32 %v6174, 7
    %v6176 = vsub.s32 %v3626, %v6175
    %v6177 = vrot.slane %v5962, %v6176
    %v6178 = vsel %vm3631, %v6177, %v6173
    %v6179 = vlaneseq
    %v6180 = vshrl.u32 %v6179, 7
    %v6181 = vsub.s32 %v3621, %v6180
    %v6182 = vrot.slane %v5965, %v6181
    %v6183 = vlaneseq
    %v6184 = vshrl.u32 %v6183, 7
    %v6185 = vsub.s32 %v3626, %v6184
    %v6186 = vrot.slane %v5968, %v6185
    %v6187 = vsel %vm3631, %v6186, %v6182
    %v6188 = vlaneseq
    %v6189 = vshrl.u32 %v6188, 7
    %v6190 = vsub.s32 %v3621, %v6189
    %v6191 = vrot.slane %v5971, %v6190
    %v6192 = vlaneseq
    %v6193 = vshrl.u32 %v6192, 7
    %v6194 = vsub.s32 %v3626, %v6193
    %v6195 = vrot.slane %v5974, %v6194
    %v6196 = vsel %vm3631, %v6195, %v6191
    %v6197 = vlaneseq
    %v6198 = vshrl.u32 %v6197, 7
    %v6199 = vsub.s32 %v3621, %v6198
    %v6200 = vrot.slane %v5977, %v6199
    %v6201 = vlaneseq
    %v6202 = vshrl.u32 %v6201, 7
    %v6203 = vsub.s32 %v3626, %v6202
    %v6204 = vrot.slane %v5980, %v6203
    %v6205 = vsel %vm3631, %v6204, %v6200
    %v6206 = vlaneseq
    %v6207 = vshrl.u32 %v6206, 7
    %v6208 = vsub.s32 %v3621, %v6207
    %v6209 = vrot.slane %v5983, %v6208
    %v6210 = vlaneseq
    %v6211 = vshrl.u32 %v6210, 7
    %v6212 = vsub.s32 %v3626, %v6211
    %v6213 = vrot.slane %v5986, %v6212
    %v6214 = vsel %vm3631, %v6213, %v6209
    %v6215 = vlaneseq
    %v6216 = vshrl.u32 %v6215, 7
    %v6217 = vsub.s32 %v3621, %v6216
    %v6218 = vrot.slane %v5989, %v6217
    %v6219 = vlaneseq
    %v6220 = vshrl.u32 %v6219, 7
    %v6221 = vsub.s32 %v3626, %v6220
    %v6222 = vrot.slane %v5992, %v6221
    %v6223 = vsel %vm3631, %v6222, %v6218
    %v6224 = vlaneseq
    %v6225 = vshrl.u32 %v6224, 7
    %v6226 = vsub.s32 %v3621, %v6225
    %v6227 = vrot.slane %v5995, %v6226
    %v6228 = vlaneseq
    %v6229 = vshrl.u32 %v6228, 7
    %v6230 = vsub.s32 %v3626, %v6229
    %v6231 = vrot.slane %v5998, %v6230
    %v6232 = vsel %vm3631, %v6231, %v6227
    %v6233 = vlaneseq
    %v6234 = vshrl.u32 %v6233, 7
    %v6235 = vsub.s32 %v3621, %v6234
    %v6236 = vrot.slane %v6001, %v6235
    %v6237 = vlaneseq
    %v6238 = vshrl.u32 %v6237, 7
    %v6239 = vsub.s32 %v3626, %v6238
    %v6240 = vrot.slane %v6004, %v6239
    %v6241 = vsel %vm3631, %v6240, %v6236
    %v6242 = vlaneseq
    %v6243 = vshrl.u32 %v6242, 7
    %v6244 = vsub.s32 %v3621, %v6243
    %v6245 = vrot.slane %v6007, %v6244
    %v6246 = vlaneseq
    %v6247 = vshrl.u32 %v6246, 7
    %v6248 = vsub.s32 %v3626, %v6247
    %v6249 = vrot.slane %v6010, %v6248
    %v6250 = vsel %vm3631, %v6249, %v6245
    %v6251 = vlaneseq
    %v6252 = vshrl.u32 %v6251, 7
    %v6253 = vsub.s32 %v3621, %v6252
    %v6254 = vrot.slane %v6013, %v6253
    %v6255 = vlaneseq
    %v6256 = vshrl.u32 %v6255, 7
    %v6257 = vsub.s32 %v3626, %v6256
    %v6258 = vrot.slane %v6016, %v6257
    %v6259 = vsel %vm3631, %v6258, %v6254
    %v6260 = vlaneseq
    %v6261 = vshrl.u32 %v6260, 7
    %v6262 = vsub.s32 %v3621, %v6261
    %v6263 = vrot.slane %v6019, %v6262
    %v6264 = vlaneseq
    %v6265 = vshrl.u32 %v6264, 7
    %v6266 = vsub.s32 %v3626, %v6265
    %v6267 = vrot.slane %v6022, %v6266
    %v6268 = vsel %vm3631, %v6267, %v6263
    %v6269 = vlaneseq
    %v6270 = vshrl.u32 %v6269, 7
    %v6271 = vsub.s32 %v3621, %v6270
    %v6272 = vrot.slane %v6025, %v6271
    %v6273 = vlaneseq
    %v6274 = vshrl.u32 %v6273, 7
    %v6275 = vsub.s32 %v3626, %v6274
    %v6276 = vrot.slane %v6028, %v6275
    %v6277 = vsel %vm3631, %v6276, %v6272
    %v6278 = vlaneseq
    %v6279 = vshrl.u32 %v6278, 7
    %v6280 = vsub.s32 %v3621, %v6279
    %v6281 = vrot.slane %v6031, %v6280
    %v6282 = vlaneseq
    %v6283 = vshrl.u32 %v6282, 7
    %v6284 = vsub.s32 %v3626, %v6283
    %v6285 = vrot.slane %v6034, %v6284
    %v6286 = vsel %vm3631, %v6285, %v6281
    %v6287 = vlaneseq
    %v6288 = vshrl.u32 %v6287, 7
    %v6289 = vsub.s32 %v3621, %v6288
    %v6290 = vrot.slane %v6037, %v6289
    %v6291 = vlaneseq
    %v6292 = vshrl.u32 %v6291, 7
    %v6293 = vsub.s32 %v3626, %v6292
    %v6294 = vrot.slane %v6040, %v6293
    %v6295 = vsel %vm3631, %v6294, %v6290
    %v6296 = vlaneseq
    %v6297 = vshrl.u32 %v6296, 7
    %v6298 = vsub.s32 %v3621, %v6297
    %v6299 = vrot.slane %v6043, %v6298
    %v6300 = vlaneseq
    %v6301 = vshrl.u32 %v6300, 7
    %v6302 = vsub.s32 %v3626, %v6301
    %v6303 = vrot.slane %v6046, %v6302
    %v6304 = vsel %vm3631, %v6303, %v6299
    %v6305 = vlaneseq
    %v6306 = vshrl.u32 %v6305, 7
    %v6307 = vsub.s32 %v3621, %v6306
    %v6308 = vrot.slane %v6049, %v6307
    %v6309 = vlaneseq
    %v6310 = vshrl.u32 %v6309, 7
    %v6311 = vsub.s32 %v3626, %v6310
    %v6312 = vrot.slane %v6052, %v6311
    %v6313 = vsel %vm3631, %v6312, %v6308
    %v6314 = vlaneseq
    %v6315 = vshrl.u32 %v6314, 7
    %v6316 = vsub.s32 %v3621, %v6315
    %v6317 = vrot.slane %v6055, %v6316
    %v6318 = vlaneseq
    %v6319 = vshrl.u32 %v6318, 7
    %v6320 = vsub.s32 %v3626, %v6319
    %v6321 = vrot.slane %v6058, %v6320
    %v6322 = vsel %vm3631, %v6321, %v6317
    %v6323 = vlaneseq
    %v6324 = vshrl.u32 %v6323, 7
    %v6325 = vsub.s32 %v3621, %v6324
    %v6326 = vrot.slane %v6061, %v6325
    %v6327 = vlaneseq
    %v6328 = vshrl.u32 %v6327, 7
    %v6329 = vsub.s32 %v3626, %v6328
    %v6330 = vrot.slane %v6064, %v6329
    %v6331 = vsel %vm3631, %v6330, %v6326
    %v6332 = vlaneseq
    %v6333 = vshrl.u32 %v6332, 7
    %v6334 = vsub.s32 %v3621, %v6333
    %v6335 = vrot.slane %v6067, %v6334
    %v6336 = vlaneseq
    %v6337 = vshrl.u32 %v6336, 7
    %v6338 = vsub.s32 %v3626, %v6337
    %v6339 = vrot.slane %v6070, %v6338
    %v6340 = vsel %vm3631, %v6339, %v6335
    %v6341 = vlaneseq
    %v6342 = vshrl.u32 %v6341, 7
    %v6343 = vsub.s32 %v3621, %v6342
    %v6344 = vrot.slane %v6073, %v6343
    %v6345 = vlaneseq
    %v6346 = vshrl.u32 %v6345, 7
    %v6347 = vsub.s32 %v3626, %v6346
    %v6348 = vrot.slane %v6076, %v6347
    %v6349 = vsel %vm3631, %v6348, %v6344
    %v6350 = vlaneseq
    %v6351 = vshrl.u32 %v6350, 7
    %v6352 = vsub.s32 %v3621, %v6351
    %v6353 = vrot.slane %v6079, %v6352
    %v6354 = vlaneseq
    %v6355 = vshrl.u32 %v6354, 7
    %v6356 = vsub.s32 %v3626, %v6355
    %v6357 = vrot.slane %v6082, %v6356
    %v6358 = vsel %vm3631, %v6357, %v6353
    %v6359 = vlaneseq
    %v6360 = vshrl.u32 %v6359, 7
    %v6361 = vsub.s32 %v3621, %v6360
    %v6362 = vrot.slane %v6085, %v6361
    %v6363 = vlaneseq
    %v6364 = vshrl.u32 %v6363, 7
    %v6365 = vsub.s32 %v3626, %v6364
    %v6366 = vrot.slane %v6088, %v6365
    %v6367 = vsel %vm3631, %v6366, %v6362
    %v6368 = vlaneseq
    %v6369 = vshrl.u32 %v6368, 7
    %v6370 = vsub.s32 %v3621, %v6369
    %v6371 = vrot.slane %v6091, %v6370
    %v6372 = vlaneseq
    %v6373 = vshrl.u32 %v6372, 7
    %v6374 = vsub.s32 %v3626, %v6373
    %v6375 = vrot.slane %v6094, %v6374
    %v6376 = vsel %vm3631, %v6375, %v6371
    %v6377 = vlaneseq
    %v6378 = vshrl.u32 %v6377, 7
    %v6379 = vsub.s32 %v3621, %v6378
    %v6380 = vrot.slane %v6097, %v6379
    %v6381 = vlaneseq
    %v6382 = vshrl.u32 %v6381, 7
    %v6383 = vsub.s32 %v3626, %v6382
    %v6384 = vrot.slane %v6100, %v6383
    %v6385 = vsel %vm3631, %v6384, %v6380
    %v6386 = vlaneseq
    %v6387 = vshrl.u32 %v6386, 7
    %v6388 = vsub.s32 %v3621, %v6387
    %v6389 = vrot.slane %v6103, %v6388
    %v6390 = vlaneseq
    %v6391 = vshrl.u32 %v6390, 7
    %v6392 = vsub.s32 %v3626, %v6391
    %v6393 = vrot.slane %v6106, %v6392
    %v6394 = vsel %vm3631, %v6393, %v6389
    %v6395 = vsel %vm3912, %v6124, %v6115
    %v6396 = vsel %vm3914, %v6133, %v6395
    %v6397 = vsel %vm3916, %v6142, %v6396
    %v6398 = vsel %vm3918, %v6151, %v6397
    %v6399 = vsel %vm3920, %v6160, %v6398
    %v6400 = vsel %vm3922, %v6169, %v6399
    %v6401 = vsel %vm3924, %v6178, %v6400
    %v6402 = vsel %vm3912, %v6196, %v6187
    %v6403 = vsel %vm3914, %v6205, %v6402
    %v6404 = vsel %vm3916, %v6214, %v6403
    %v6405 = vsel %vm3918, %v6223, %v6404
    %v6406 = vsel %vm3920, %v6232, %v6405
    %v6407 = vsel %vm3922, %v6241, %v6406
    %v6408 = vsel %vm3924, %v6250, %v6407
    %v6409 = vsel %vm3912, %v6268, %v6259
    %v6410 = vsel %vm3914, %v6277, %v6409
    %v6411 = vsel %vm3916, %v6286, %v6410
    %v6412 = vsel %vm3918, %v6295, %v6411
    %v6413 = vsel %vm3920, %v6304, %v6412
    %v6414 = vsel %vm3922, %v6313, %v6413
    %v6415 = vsel %vm3924, %v6322, %v6414
    %v6416 = vsel %vm3912, %v6340, %v6331
    %v6417 = vsel %vm3914, %v6349, %v6416
    %v6418 = vsel %vm3916, %v6358, %v6417
    %v6419 = vsel %vm3918, %v6367, %v6418
    %v6420 = vsel %vm3920, %v6376, %v6419
    %v6421 = vsel %vm3922, %v6385, %v6420
    %v6422 = vsel %vm3924, %v6394, %v6421
    %6427 = vst.msk [vmem:[#allocation2] sm:$0xff] %vm2143, %v6401
    %6428 = vst.msk [vmem:[#allocation2 + $0x8] sm:$0xff] %vm2143, %v6408
    %6429 = vst.msk [vmem:[#allocation2 + $0x10] sm:$0xff] %vm2143, %v6415
    %6430 = vst.msk [vmem:[#allocation2 + $0x18] sm:$0xff] %vm2143, %v6422
    // Predicated region
    $region26: #{tpu_custom_call.1} parent=1 // pred_check
      _
    $region27: #{tpu_custom_call.1} parent=1 // pred_check_branch
      %6432 = sbr.rel (0) target = $region29
    $region28: #{tpu_custom_call.1} parent=1 // pred_region
      %s6434 = ssub.s32 512, 512
      %6435 = vsyncadd [#allocation3], %s6434
      %s6436 = sshll.u32 [#allocation2], 4
      %s6437 = int_to_ptr.vmem [resolvable:$true] %s6436
      %6442 = dma.vmem_to_hbm [thread:$0]  %s6437, 512, %s6, [#allocation3], 128, 128, 8
    $region29: #{tpu_custom_call.1} parent=1 // pred_fallthru
      _
    // Predicated region
    $region30: #{tpu_custom_call.1} parent=1 // pred_check
      _
    $region31: #{tpu_custom_call.1} parent=1 // pred_check_branch
      %6444 = sbr.rel (0) target = $region33
    $region32: #{tpu_custom_call.1} parent=1 // pred_region
      %6445 = dma.done [#allocation3], 512
    $region33: #{tpu_custom_call.1} parent=1 // pred_fallthru
      _
    %6446 = vsyncpa [#allocation3], 1

</llo_original>
